<compile_context>
chip_gen: v7x
topology: tpu7x:2x2x1
jax: 0.10.0
libtpu: 0.0.40
codegen_flags: <defaults>
</compile_context>

<pallas_src>
import functools

import jax
import jax.numpy as jnp
from jax import lax
from jax.experimental import pallas as pl
from jax.experimental.pallas import tpu as pltpu


# ---------------------------------------------------------------------------
# Generation-aware budgets
# ---------------------------------------------------------------------------
def _vmem_limit_bytes():
    """~85% of physical VMEM, capped at 100 MiB; 48 MiB conservative fallback."""
    try:
        cap = pltpu.get_tpu_info().vmem_capacity_bytes
        return min(int(cap * 0.85), 100 * 1024 * 1024)
    except Exception:  # no TPU visible / older runtime
        return 48 * 1024 * 1024


_VMEM_LIMIT_BYTES = _vmem_limit_bytes()
# Bigger row tiles on 128-MiB-VMEM parts (v5e/v6e); capped at 512 on v7x (64 MiB / TC).
_M_TILES = (1024, 512, 256, 128) if _VMEM_LIMIT_BYTES >= 80 * 2**20 else (512, 256, 128)
_N_TILES = (512, 256, 128)
_K_TILES = (256, 128)          # 256-deep contraction matches the v6e/v7x MXU depth


def _round_up(x, m):
    return (x + m - 1) // m * m


def _choose_tile(dim, preferred):
    """Return (tile, padded_dim); tile divides padded_dim and padded_dim >= dim."""
    for t in preferred:
        if dim % t == 0:
            return t, dim
    if dim < preferred[-1]:
        return dim, dim                      # single full-extent block (always legal)
    t = preferred[-1]                        # pad awkward large dims, keep pipelining
    return t, _round_up(dim, t)


# ---------------------------------------------------------------------------
# Kernel 1: tiled matmul (+ optional bias) for the QKV / output projections.
# MXU operands bf16, accumulation f32.
# ---------------------------------------------------------------------------
def _matmul_kernel(x_ref, w_ref, o_ref, acc_ref):
    @pl.when(pl.program_id(2) == 0)
    def _():
        acc_ref[...] = jnp.zeros_like(acc_ref)

    acc_ref[...] += jnp.dot(x_ref[...], w_ref[...],
                            preferred_element_type=jnp.float32)

    @pl.when(pl.program_id(2) == pl.num_programs(2) - 1)
    def _():
        o_ref[...] = acc_ref[...].astype(o_ref.dtype)


def _matmul_bias_kernel(x_ref, w_ref, b_ref, o_ref, acc_ref):
    @pl.when(pl.program_id(2) == 0)
    def _():
        acc_ref[...] = jnp.zeros_like(acc_ref)

    acc_ref[...] += jnp.dot(x_ref[...], w_ref[...],
                            preferred_element_type=jnp.float32)

    @pl.when(pl.program_id(2) == pl.num_programs(2) - 1)
    def _():
        o_ref[...] = (acc_ref[...] + b_ref[...].astype(jnp.float32)).astype(o_ref.dtype)


def _matmul_kernel_1k(x_ref, w_ref, o_ref):
    # Single K step: no accumulator round-trip, no predicated init/writeback.
    o_ref[...] = jnp.dot(x_ref[...], w_ref[...],
                         preferred_element_type=jnp.float32).astype(o_ref.dtype)


def _matmul_bias_kernel_1k(x_ref, w_ref, b_ref, o_ref):
    acc = jnp.dot(x_ref[...], w_ref[...], preferred_element_type=jnp.float32)
    o_ref[...] = (acc + b_ref[...].astype(jnp.float32)).astype(o_ref.dtype)


def pallas_matmul(x, w, bias=None, out_dtype=jnp.float32):
    """out = x @ w (+ bias). Inputs are cast to bf16 (halves HBM DMA), f32 accumulation."""
    M, K = x.shape
    K2, N = w.shape
    assert K == K2
    tm, Mp = _choose_tile(M, _M_TILES)
    tn, Np = _choose_tile(N, _N_TILES)
    tk, Kp = _choose_tile(K, _K_TILES)

    xb = x.astype(jnp.bfloat16)
    wb = w.astype(jnp.bfloat16)
    if (Mp, Kp) != (M, K):
        xb = jnp.pad(xb, ((0, Mp - M), (0, Kp - K)))      # zero rows/cols: exact result
    if (Kp, Np) != (K, N):
        wb = jnp.pad(wb, ((0, Kp - K), (0, Np - N)))

    bp = None
    if bias is not None:
        bp = bias.astype(jnp.float32)
        if Np != N:
            bp = jnp.pad(bp, ((0, Np - N),))
        bp = bp.reshape(1, Np)

    nk = Kp // tk
    cost = pl.CostEstimate(
        flops=2 * M * N * K,
        transcendentals=0,
        bytes_accessed=2 * (M * K + K * N) + jnp.dtype(out_dtype).itemsize * M * N)

    if nk == 1:
        grid = (Mp // tm, Np // tn)
        in_specs = [pl.BlockSpec((tm, tk), lambda i, j: (i, 0)),
                    pl.BlockSpec((tk, tn), lambda i, j: (0, j))]
        args = [xb, wb]
        if bias is None:
            kernel = _matmul_kernel_1k
        else:
            kernel = _matmul_bias_kernel_1k
            in_specs.append(pl.BlockSpec((1, tn), lambda i, j: (0, j)))
            args.append(bp)
        out = pl.pallas_call(
            kernel,
            out_shape=jax.ShapeDtypeStruct((Mp, Np), out_dtype),
            grid=grid,
            in_specs=in_specs,
            out_specs=pl.BlockSpec((tm, tn), lambda i, j: (i, j)),
            compiler_params=pltpu.CompilerParams(
                dimension_semantics=("parallel", "parallel"),
                vmem_limit_bytes=_VMEM_LIMIT_BYTES),
            cost_estimate=cost,
        )(*args)
    else:
        grid = (Mp // tm, Np // tn, nk)
        in_specs = [pl.BlockSpec((tm, tk), lambda i, j, k: (i, k)),
                    pl.BlockSpec((tk, tn), lambda i, j, k: (k, j))]
        args = [xb, wb]
        if bias is None:
            kernel = _matmul_kernel
        else:
            kernel = _matmul_bias_kernel
            in_specs.append(pl.BlockSpec((1, tn), lambda i, j, k: (0, j)))
            args.append(bp)
        out = pl.pallas_call(
            kernel,
            out_shape=jax.ShapeDtypeStruct((Mp, Np), out_dtype),
            grid=grid,
            in_specs=in_specs,
            out_specs=pl.BlockSpec((tm, tn), lambda i, j, k: (i, j)),
            scratch_shapes=[pltpu.VMEM((tm, tn), jnp.float32)],
            compiler_params=pltpu.CompilerParams(
                dimension_semantics=("parallel", "parallel", "arbitrary"),
                vmem_limit_bytes=_VMEM_LIMIT_BYTES),
            cost_estimate=cost,
        )(*args)

    if (Mp, Np) != (M, N):
        out = out[:M, :N]
    return out


# ---------------------------------------------------------------------------
# Kernel 2: flash-style multi-head attention.
# Blocks are head-major (1, t_tile, heads, dim_head) taken from a free 4-D view of the
# fused qkv projection; all heads of the block go through one batched dot_general.
# ---------------------------------------------------------------------------
def _flash_attn_kernel(q_ref, k_ref, v_ref, o_ref, q_sc, m_sc, l_sc, acc_sc, *, scale):
    kv = pl.program_id(2)

    @pl.when(kv == 0)
    def _():
        # Head-major, pre-scaled, bf16 copy of the q tile (reused for every kv step).
        q = q_ref[0].astype(jnp.float32) * scale                  # (tq, H, dh)
        q_sc[...] = jnp.swapaxes(q, 0, 1).astype(jnp.bfloat16)    # (H, tq, dh)
        m_sc[...] = jnp.full(m_sc.shape, -jnp.inf, m_sc.dtype)
        l_sc[...] = jnp.zeros(l_sc.shape, l_sc.dtype)
        acc_sc[...] = jnp.zeros(acc_sc.shape, acc_sc.dtype)

    # (tk, H, dh) -> (H, tk, dh); bf16 MXU operands (pltpu.einshape is the layout-aware
    # alternative to swapaxes).
    k = jnp.swapaxes(k_ref[0], 0, 1).astype(jnp.bfloat16)
    v = jnp.swapaxes(v_ref[0], 0, 1).astype(jnp.bfloat16)

    # scores: batched over heads, contracting dim_head -> (H, tq, tk), f32 accumulation
    s = lax.dot_general(q_sc[...], k, (((2,), (2,)), ((0,), (0,))),
                        preferred_element_type=jnp.float32)

    m_prev = m_sc[...]
    m_new = jnp.maximum(m_prev, jnp.max(s, axis=-1, keepdims=True))
    alpha = jnp.exp(m_prev - m_new)                               # rescale of old stats
    p = jnp.exp(s - m_new)                                        # (H, tq, tk), f32
    l_sc[...] = alpha * l_sc[...] + jnp.sum(p, axis=-1, keepdims=True)
    pv = lax.dot_general(p.astype(jnp.bfloat16), v, (((2,), (1,)), ((0,), (0,))),
                         preferred_element_type=jnp.float32)      # (H, tq, dh)
    acc_sc[...] = alpha * acc_sc[...] + pv
    m_sc[...] = m_new

    @pl.when(kv == pl.num_programs(2) - 1)
    def _():
        out = acc_sc[...] / l_sc[...]                             # exact softmax divide
        o_ref[0] = jnp.swapaxes(out, 0, 1).astype(o_ref.dtype)    # (tq, H, dh)


def _seq_tile(t):
    for c in (256, 128):
        if t % c == 0:
            return c
    return t


def _qkv_spec(block, head_block, use_q_index):
    if use_q_index:
        return pl.BlockSpec(block, lambda n, qi, ki: (n, qi, head_block, 0))
    return pl.BlockSpec(block, lambda n, qi, ki: (n, ki, head_block, 0))


def pallas_flash_attention(qkv, heads, dim_head):
    """(N, T, 3*heads*dim_head) fused qkv projection -> (N, T, heads*dim_head)."""
    N, T, three_inner = qkv.shape
    inner = heads * dim_head
    assert three_inner == 3 * inner
    scale = dim_head ** (-0.5)
    tq = _seq_tile(T)
    tk = _seq_tile(T)
    n_q, n_kv = T // tq, T // tk

    if heads % 8 == 0:
        # Free 4-D view of the fused projection: q/k/v head groups picked straight out of
        # it by the BlockSpecs (head-axis block = heads, a multiple of 8 -> legal).
        qkv4 = qkv.reshape(N, T, 3 * heads, dim_head)
        operands = (qkv4, qkv4, qkv4)
        hq, hk, hv = 0, 1, 2          # block index along the 3*heads axis
    else:
        # Fallback: split q/k/v so the head-axis block equals the full extent.
        q4, k4, v4 = [t.reshape(N, T, heads, dim_head)
                      for t in jnp.split(qkv, 3, axis=-1)]
        operands = (q4, k4, v4)
        hq = hk = hv = 0

    q_block = (1, tq, heads, dim_head)
    kv_block = (1, tk, heads, dim_head)
    in_specs = [_qkv_spec(q_block, hq, True),
                _qkv_spec(kv_block, hk, False),
                _qkv_spec(kv_block, hv, False)]
    out_specs = pl.BlockSpec(q_block, lambda n, qi, ki: (n, qi, 0, 0))

    out = pl.pallas_call(
        functools.partial(_flash_attn_kernel, scale=scale),
        out_shape=jax.ShapeDtypeStruct((N, T, heads, dim_head), qkv.dtype),
        grid=(N, n_q, n_kv),
        in_specs=in_specs,
        out_specs=out_specs,
        scratch_shapes=[
            pltpu.VMEM((heads, tq, dim_head), jnp.bfloat16),   # scaled q, head-major
            pltpu.VMEM((heads, tq, 1), jnp.float32),           # running max
            pltpu.VMEM((heads, tq, 1), jnp.float32),           # running sum
            pltpu.VMEM((heads, tq, dim_head), jnp.float32),    # output accumulator
        ],
        compiler_params=pltpu.CompilerParams(
            dimension_semantics=("parallel", "parallel", "arbitrary"),
            vmem_limit_bytes=_VMEM_LIMIT_BYTES),
        cost_estimate=pl.CostEstimate(
            flops=4 * N * heads * T * T * dim_head,
            transcendentals=N * heads * T * T,
            bytes_accessed=qkv.dtype.itemsize * 4 * N * T * inner),
    )(*operands)
    return out.reshape(N, T, inner)


# ---------------------------------------------------------------------------
# Full forward pass: all compute in Pallas; wrapper does only free reshapes / casts.
# ---------------------------------------------------------------------------
def attention_forward(x, w_qkv, w_out, b_out, heads, dim_head):
    """to_qkv (Linear, no bias) -> multi-head SDPA -> to_out (Linear + bias).
    Dropout(p=0.0) is the identity in eval mode."""
    N, T, dim = x.shape
    inner = heads * dim_head

    # to_qkv: Linear(dim, 3*inner, bias=False); bf16 activations out (halves attn DMA)
    qkv = pallas_matmul(x.reshape(N * T, dim), w_qkv,
                        out_dtype=jnp.bfloat16).reshape(N, T, 3 * inner)

    # fused multi-head flash attention; output already in 'n t (h d)' layout
    attn = pallas_flash_attention(qkv, heads, dim_head)          # (N, T, inner) bf16

    # to_out: Linear(inner, dim) with bias
    out = pallas_matmul(attn.reshape(N * T, inner), w_out, bias=b_out,
                        out_dtype=jnp.float32)
    return out.reshape(N, T, dim)


# ---------------------------------------------------------------------------
# Pure-JAX f32 reference (mirrors the PyTorch module exactly)
# ---------------------------------------------------------------------------
def reference_forward(x, w_qkv, w_out, b_out, heads, dim_head):
    N, T, dim = x.shape
    inner = heads * dim_head
    scale = dim_head ** (-0.5)
    qkv = x @ w_qkv
    q, k, v = jnp.split(qkv, 3, axis=-1)

    def sh(t):
        return t.reshape(N, T, heads, dim_head).transpose(0, 2, 1, 3)

    q, k, v = sh(q), sh(k), sh(v)
    dots = jnp.einsum("nhid,nhjd->nhij", q, k) * scale
    attn = jax.nn.softmax(dots, axis=-1)
    out = jnp.einsum("nhij,nhjd->nhid", attn, v)
    out = out.transpose(0, 2, 1, 3).reshape(N, T, inner)
    return out @ w_out + b_out


if __name__ == "__main__":
    # Small shapes consistent with the module: (N, T, dim) input, default heads/dim_head.
    N, T, dim = 2, 8, 32
    heads, dim_head = 8, 64
    inner = heads * dim_head

    key = jax.random.PRNGKey(0)
    k1, k2, k3, k4 = jax.random.split(key, 4)
    x = jax.random.normal(k1, (N, T, dim), jnp.float32)
    # Weights stored as (in, out): y = x @ W  (same math as torch's x @ W.T)
    w_qkv = jax.random.normal(k2, (dim, 3 * inner), jnp.float32) * dim ** -0.5
    w_out = jax.random.normal(k3, (inner, dim), jnp.float32) * inner ** -0.5
    b_out = jax.random.normal(k4, (dim,), jnp.float32) * 0.1

    fwd = jax.jit(functools.partial(attention_forward, heads=heads, dim_head=dim_head))
    out = jax.block_until_ready(fwd(x, w_qkv, w_out, b_out))
    ref = reference_forward(x, w_qkv, w_out, b_out, heads, dim_head)

    assert out.shape == (N, T, dim) and out.dtype == jnp.float32
    # Kernel uses bf16 MXU operands (f32 accumulation), so compare against the pure-f32
    # reference with bf16-appropriate tolerances.
    rel = float(jnp.linalg.norm(out - ref) / jnp.linalg.norm(ref))
    assert rel < 5e-2, f"relative error vs reference too large: {rel}"
    assert jnp.allclose(out, ref, atol=1e-1, rtol=1e-1), "mismatch vs reference"
    print("KERNEL_OK")
</pallas_src>

<mosaic_0001>
module attributes {stable_mosaic.version = 11 : i64} {
  func.func @_matmul_kernel_1k(%arg0: i32, %arg1: i32, %arg2: memref<16x32xbf16, #tpu.memory_space<vmem>>, %arg3: memref<32x512xbf16, #tpu.memory_space<vmem>>, %arg4: memref<16x512xbf16, #tpu.memory_space<vmem>>) attributes {dimension_semantics = [#tpu.dimension_semantics<parallel>, #tpu.dimension_semantics<parallel>], iteration_bounds = array<i64: 1, 3>, scalar_prefetch = 0 : i64, scratch_operands = 0 : i64, tpu.core_type = #tpu.core_type<tc>, window_params = [{transform_indices = @transform_0, window_bounds = array<i64: 16, 32>}, {transform_indices = @transform_1, window_bounds = array<i64: 32, 512>}, {transform_indices = @transform_2, window_bounds = array<i64: 16, 512>}]} {
    %c0 = arith.constant 0 : index
    %c0_0 = arith.constant 0 : index
    %0 = vector.load %arg2[%c0, %c0_0] : memref<16x32xbf16, #tpu.memory_space<vmem>>, vector<16x32xbf16>
    %c0_1 = arith.constant 0 : index
    %c0_2 = arith.constant 0 : index
    %1 = vector.load %arg3[%c0_1, %c0_2] : memref<32x512xbf16, #tpu.memory_space<vmem>>, vector<32x512xbf16>
    %cst = arith.constant dense<0.000000e+00> : vector<16x512xf32>
    %2 = tpu.matmul %0, %1, %cst {dimension_numbers = #tpu.dot_dimension_numbers<[1], [0], [0], [1], [0, 0, 1, 1], [], []>} : vector<16x32xbf16>, vector<32x512xbf16>, vector<16x512xf32> -> vector<16x512xf32>
    %3 = arith.truncf %2 : vector<16x512xf32> to vector<16x512xbf16>
    %c0_3 = arith.constant 0 : index
    %c0_4 = arith.constant 0 : index
    %4 = vector.load %arg4[%c0_3, %c0_4] : memref<16x512xbf16, #tpu.memory_space<vmem>>, vector<16x512xbf16>
    tpu.vector_store %arg4[%c0_3, %c0_4], %3 {strides = array<i32>} : memref<16x512xbf16, #tpu.memory_space<vmem>>, vector<16x512xbf16>,
    return
  }
  func.func @transform_0(%arg0: i32, %arg1: i32) -> (i32, i32) {
    %c0_i32 = arith.constant 0 : i32
    %c0_i32_0 = arith.constant 0 : i32
    return %arg0, %c0_i32 : i32, i32
  }
  func.func @transform_1(%arg0: i32, %arg1: i32) -> (i32, i32) {
    %c0_i32 = arith.constant 0 : i32
    %c0_i32_0 = arith.constant 0 : i32
    return %c0_i32, %arg1 : i32, i32
  }
  func.func @transform_2(%arg0: i32, %arg1: i32) -> (i32, i32) {
    %c0_i32 = arith.constant 0 : i32
    return %arg0, %arg1 : i32, i32
  }
}

module attributes {stable_mosaic.version = 11 : i64} {
  func.func @_flash_attn_kernel(%arg0: i32, %arg1: i32, %arg2: i32, %arg3: memref<1x8x8x64xbf16, #tpu.memory_space<vmem>>, %arg4: memref<1x8x8x64xbf16, #tpu.memory_space<vmem>>, %arg5: memref<1x8x8x64xbf16, #tpu.memory_space<vmem>>, %arg6: memref<1x8x8x64xbf16, #tpu.memory_space<vmem>>, %arg7: memref<8x8x64xbf16, #tpu.memory_space<vmem>>, %arg8: memref<8x8x1xf32, #tpu.memory_space<vmem>>, %arg9: memref<8x8x1xf32, #tpu.memory_space<vmem>>, %arg10: memref<8x8x64xf32, #tpu.memory_space<vmem>>) attributes {dimension_semantics = [#tpu.dimension_semantics<parallel>, #tpu.dimension_semantics<parallel>, #tpu.dimension_semantics<arbitrary>], iteration_bounds = array<i64: 2, 1, 1>, scalar_prefetch = 0 : i64, scratch_operands = 4 : i64, tpu.core_type = #tpu.core_type<tc>, window_params = [{transform_indices = @transform_0, window_bounds = array<i64: 1, 8, 8, 64>}, {transform_indices = @transform_1, window_bounds = array<i64: 1, 8, 8, 64>}, {transform_indices = @transform_2, window_bounds = array<i64: 1, 8, 8, 64>}, {transform_indices = @transform_3, window_bounds = array<i64: 1, 8, 8, 64>}]} {
    %c0_i32 = arith.constant 0 : i32
    %0 = arith.cmpi eq, %arg2, %c0_i32 : i32
    %1 = arith.extui %0 : i1 to i32
    %c0_i32_0 = arith.constant 0 : i32
    %2 = arith.cmpi ne, %1, %c0_i32_0 : i32
    scf.if %2 {
      %c0_34 = arith.constant 0 : index
      %c0_35 = arith.constant 0 : index
      %c0_36 = arith.constant 0 : index
      %c0_37 = arith.constant 0 : index
      %37 = vector.load %arg3[%c0_34, %c0_35, %c0_36, %c0_37] : memref<1x8x8x64xbf16, #tpu.memory_space<vmem>>, vector<1x8x8x64xbf16>
      %38 = vector.shape_cast %37 : vector<1x8x8x64xbf16> to vector<8x8x64xbf16>
      %39 = arith.extf %38 : vector<8x8x64xbf16> to vector<8x8x64xf32>
      %cst_38 = arith.constant 1.250000e-01 : f32
      %40 = vector.broadcast %cst_38 : f32 to vector<8x8x64xf32>
      %41 = arith.mulf %39, %40 : vector<8x8x64xf32>
      %42 = tpu.transpose %41, [1, 0, 2] : vector<8x8x64xf32> -> vector<8x8x64xf32>
      %43 = arith.truncf %42 : vector<8x8x64xf32> to vector<8x8x64xbf16>
      %c0_39 = arith.constant 0 : index
      %c0_40 = arith.constant 0 : index
      %c0_41 = arith.constant 0 : index
      %44 = vector.load %arg7[%c0_39, %c0_40, %c0_41] : memref<8x8x64xbf16, #tpu.memory_space<vmem>>, vector<8x8x64xbf16>
      tpu.vector_store %arg7[%c0_39, %c0_40, %c0_41], %43 {strides = array<i32>} : memref<8x8x64xbf16, #tpu.memory_space<vmem>>, vector<8x8x64xbf16>,
      %cst_42 = arith.constant 0xFF800000 : f32
      %45 = vector.broadcast %cst_42 : f32 to vector<8x8x1xf32>
      %c0_43 = arith.constant 0 : index
      %c0_44 = arith.constant 0 : index
      %c0_45 = arith.constant 0 : index
      %46 = vector.load %arg8[%c0_43, %c0_44, %c0_45] : memref<8x8x1xf32, #tpu.memory_space<vmem>>, vector<8x8x1xf32>
      tpu.vector_store %arg8[%c0_43, %c0_44, %c0_45], %45 {strides = array<i32>} : memref<8x8x1xf32, #tpu.memory_space<vmem>>, vector<8x8x1xf32>,
      %cst_46 = arith.constant 0.000000e+00 : f32
      %47 = vector.broadcast %cst_46 : f32 to vector<8x8x1xf32>
      %c0_47 = arith.constant 0 : index
      %c0_48 = arith.constant 0 : index
      %c0_49 = arith.constant 0 : index
      %48 = vector.load %arg9[%c0_47, %c0_48, %c0_49] : memref<8x8x1xf32, #tpu.memory_space<vmem>>, vector<8x8x1xf32>
      tpu.vector_store %arg9[%c0_47, %c0_48, %c0_49], %47 {strides = array<i32>} : memref<8x8x1xf32, #tpu.memory_space<vmem>>, vector<8x8x1xf32>,
      %cst_50 = arith.constant 0.000000e+00 : f32
      %49 = vector.broadcast %cst_50 : f32 to vector<8x8x64xf32>
      %c0_51 = arith.constant 0 : index
      %c0_52 = arith.constant 0 : index
      %c0_53 = arith.constant 0 : index
      %50 = vector.load %arg10[%c0_51, %c0_52, %c0_53] : memref<8x8x64xf32, #tpu.memory_space<vmem>>, vector<8x8x64xf32>
      tpu.vector_store %arg10[%c0_51, %c0_52, %c0_53], %49 {strides = array<i32>} : memref<8x8x64xf32, #tpu.memory_space<vmem>>, vector<8x8x64xf32>,
    } else {
    }
    %c0 = arith.constant 0 : index
    %c0_1 = arith.constant 0 : index
    %c0_2 = arith.constant 0 : index
    %c0_3 = arith.constant 0 : index
    %3 = vector.load %arg4[%c0, %c0_1, %c0_2, %c0_3] : memref<1x8x8x64xbf16, #tpu.memory_space<vmem>>, vector<1x8x8x64xbf16>
    %4 = vector.shape_cast %3 : vector<1x8x8x64xbf16> to vector<8x8x64xbf16>
    %5 = tpu.transpose %4, [1, 0, 2] : vector<8x8x64xbf16> -> vector<8x8x64xbf16>
    %c0_4 = arith.constant 0 : index
    %c0_5 = arith.constant 0 : index
    %c0_6 = arith.constant 0 : index
    %c0_7 = arith.constant 0 : index
    %6 = vector.load %arg5[%c0_4, %c0_5, %c0_6, %c0_7] : memref<1x8x8x64xbf16, #tpu.memory_space<vmem>>, vector<1x8x8x64xbf16>
    %7 = vector.shape_cast %6 : vector<1x8x8x64xbf16> to vector<8x8x64xbf16>
    %8 = tpu.transpose %7, [1, 0, 2] : vector<8x8x64xbf16> -> vector<8x8x64xbf16>
    %c0_8 = arith.constant 0 : index
    %c0_9 = arith.constant 0 : index
    %c0_10 = arith.constant 0 : index
    %9 = vector.load %arg7[%c0_8, %c0_9, %c0_10] : memref<8x8x64xbf16, #tpu.memory_space<vmem>>, vector<8x8x64xbf16>
    %cst = arith.constant dense<0.000000e+00> : vector<8x8x8xf32>
    %10 = tpu.matmul %9, %5, %cst {dimension_numbers = #tpu.dot_dimension_numbers<[2], [2], [1], [1], [0, 0, 0, 1, 1, 1], [0], [0]>} : vector<8x8x64xbf16>, vector<8x8x64xbf16>, vector<8x8x8xf32> -> vector<8x8x8xf32>
    %c0_11 = arith.constant 0 : index
    %c0_12 = arith.constant 0 : index
    %c0_13 = arith.constant 0 : index
    %11 = vector.load %arg8[%c0_11, %c0_12, %c0_13] : memref<8x8x1xf32, #tpu.memory_space<vmem>>, vector<8x8x1xf32>
    %cst_14 = arith.constant dense<0xFF800000> : vector<8x8xf32>
    %12 = vector.multi_reduction <maximumf>, %10, %cst_14 [2] : vector<8x8x8xf32> to vector<8x8xf32>
    %13 = vector.shape_cast %12 : vector<8x8xf32> to vector<8x8x1xf32>
    %14 = arith.maximumf %11, %13 : vector<8x8x1xf32>
    %15 = arith.subf %11, %14 : vector<8x8x1xf32>
    %16 = math.exp %15 : vector<8x8x1xf32>
    %17 = vector.broadcast %14 : vector<8x8x1xf32> to vector<8x8x8xf32>
    %18 = arith.subf %10, %17 : vector<8x8x8xf32>
    %19 = math.exp %18 : vector<8x8x8xf32>
    %c0_15 = arith.constant 0 : index
    %c0_16 = arith.constant 0 : index
    %c0_17 = arith.constant 0 : index
    %20 = vector.load %arg9[%c0_15, %c0_16, %c0_17] : memref<8x8x1xf32, #tpu.memory_space<vmem>>, vector<8x8x1xf32>
    %21 = arith.mulf %16, %20 : vector<8x8x1xf32>
    %cst_18 = arith.constant dense<0.000000e+00> : vector<8x8xf32>
    %22 = vector.multi_reduction <add>, %19, %cst_18 [2] : vector<8x8x8xf32> to vector<8x8xf32>
    %23 = vector.shape_cast %22 : vector<8x8xf32> to vector<8x8x1xf32>
    %24 = arith.addf %21, %23 : vector<8x8x1xf32>
    %c0_19 = arith.constant 0 : index
    %c0_20 = arith.constant 0 : index
    %c0_21 = arith.constant 0 : index
    %25 = vector.load %arg9[%c0_19, %c0_20, %c0_21] : memref<8x8x1xf32, #tpu.memory_space<vmem>>, vector<8x8x1xf32>
    tpu.vector_store %arg9[%c0_19, %c0_20, %c0_21], %24 {strides = array<i32>} : memref<8x8x1xf32, #tpu.memory_space<vmem>>, vector<8x8x1xf32>,
    %26 = arith.truncf %19 : vector<8x8x8xf32> to vector<8x8x8xbf16>
    %cst_22 = arith.constant dense<0.000000e+00> : vector<8x8x64xf32>
    %27 = tpu.matmul %26, %8, %cst_22 {dimension_numbers = #tpu.dot_dimension_numbers<[2], [1], [1], [2], [0, 0, 0, 1, 1, 2], [0], [0]>} : vector<8x8x8xbf16>, vector<8x8x64xbf16>, vector<8x8x64xf32> -> vector<8x8x64xf32>
    %c0_23 = arith.constant 0 : index
    %c0_24 = arith.constant 0 : index
    %c0_25 = arith.constant 0 : index
    %28 = vector.load %arg10[%c0_23, %c0_24, %c0_25] : memref<8x8x64xf32, #tpu.memory_space<vmem>>, vector<8x8x64xf32>
    %29 = vector.broadcast %16 : vector<8x8x1xf32> to vector<8x8x64xf32>
    %30 = arith.mulf %29, %28 : vector<8x8x64xf32>
    %31 = arith.addf %30, %27 : vector<8x8x64xf32>
    %c0_26 = arith.constant 0 : index
    %c0_27 = arith.constant 0 : index
    %c0_28 = arith.constant 0 : index
    %32 = vector.load %arg10[%c0_26, %c0_27, %c0_28] : memref<8x8x64xf32, #tpu.memory_space<vmem>>, vector<8x8x64xf32>
    tpu.vector_store %arg10[%c0_26, %c0_27, %c0_28], %31 {strides = array<i32>} : memref<8x8x64xf32, #tpu.memory_space<vmem>>, vector<8x8x64xf32>,
    %c0_29 = arith.constant 0 : index
    %c0_30 = arith.constant 0 : index
    %c0_31 = arith.constant 0 : index
    %33 = vector.load %arg8[%c0_29, %c0_30, %c0_31] : memref<8x8x1xf32, #tpu.memory_space<vmem>>, vector<8x8x1xf32>
    tpu.vector_store %arg8[%c0_29, %c0_30, %c0_31], %14 {strides = array<i32>} : memref<8x8x1xf32, #tpu.memory_space<vmem>>, vector<8x8x1xf32>,
    %c0_i32_32 = arith.constant 0 : i32
    %34 = arith.cmpi eq, %arg2, %c0_i32_32 : i32
    %35 = arith.extui %34 : i1 to i32
    %c0_i32_33 = arith.constant 0 : i32
    %36 = arith.cmpi ne, %35, %c0_i32_33 : i32
    scf.if %36 {
      %c0_34 = arith.constant 0 : index
      %c0_35 = arith.constant 0 : index
      %c0_36 = arith.constant 0 : index
      %37 = vector.load %arg10[%c0_34, %c0_35, %c0_36] : memref<8x8x64xf32, #tpu.memory_space<vmem>>, vector<8x8x64xf32>
      %c0_37 = arith.constant 0 : index
      %c0_38 = arith.constant 0 : index
      %c0_39 = arith.constant 0 : index
      %38 = vector.load %arg9[%c0_37, %c0_38, %c0_39] : memref<8x8x1xf32, #tpu.memory_space<vmem>>, vector<8x8x1xf32>
      %39 = vector.broadcast %38 : vector<8x8x1xf32> to vector<8x8x64xf32>
      %40 = arith.divf %37, %39 : vector<8x8x64xf32>
      %41 = tpu.transpose %40, [1, 0, 2] : vector<8x8x64xf32> -> vector<8x8x64xf32>
      %42 = arith.truncf %41 : vector<8x8x64xf32> to vector<8x8x64xbf16>
      %c0_40 = arith.constant 0 : index
      %c0_41 = arith.constant 0 : index
      %c0_42 = arith.constant 0 : index
      %c0_43 = arith.constant 0 : index
      %43 = vector.load %arg6[%c0_40, %c0_41, %c0_42, %c0_43] : memref<1x8x8x64xbf16, #tpu.memory_space<vmem>>, vector<1x8x8x64xbf16>
      %44 = vector.shape_cast %43 : vector<1x8x8x64xbf16> to vector<8x8x64xbf16>
      %45 = vector.shape_cast %42 : vector<8x8x64xbf16> to vector<1x8x8x64xbf16>
      tpu.vector_store %arg6[%c0_40, %c0_41, %c0_42, %c0_43], %45 {strides = array<i32>} : memref<1x8x8x64xbf16, #tpu.memory_space<vmem>>, vector<1x8x8x64xbf16>,
    } else {
    }
    return
  }
  func.func @transform_0(%arg0: i32, %arg1: i32, %arg2: i32) -> (i32, i32, i32, i32) {
    %c0_i32 = arith.constant 0 : i32
    %c0_i32_0 = arith.constant 0 : i32
    %c0_i32_1 = arith.constant 0 : i32
    return %arg0, %arg1, %c0_i32, %c0_i32_0 : i32, i32, i32, i32
  }
  func.func @transform_1(%arg0: i32, %arg1: i32, %arg2: i32) -> (i32, i32, i32, i32) {
    %c1_i32 = arith.constant 1 : i32
    %c0_i32 = arith.constant 0 : i32
    %c0_i32_0 = arith.constant 0 : i32
    return %arg0, %arg2, %c1_i32, %c0_i32 : i32, i32, i32, i32
  }
  func.func @transform_2(%arg0: i32, %arg1: i32, %arg2: i32) -> (i32, i32, i32, i32) {
    %c2_i32 = arith.constant 2 : i32
    %c0_i32 = arith.constant 0 : i32
    %c0_i32_0 = arith.constant 0 : i32
    return %arg0, %arg2, %c2_i32, %c0_i32 : i32, i32, i32, i32
  }
  func.func @transform_3(%arg0: i32, %arg1: i32, %arg2: i32) -> (i32, i32, i32, i32) {
    %c0_i32 = arith.constant 0 : i32
    %c0_i32_0 = arith.constant 0 : i32
    %c0_i32_1 = arith.constant 0 : i32
    return %arg0, %arg1, %c0_i32, %c0_i32_0 : i32, i32, i32, i32
  }
}

module attributes {stable_mosaic.version = 11 : i64} {
  func.func @_matmul_bias_kernel(%arg0: i32, %arg1: i32, %arg2: i32, %arg3: memref<16x256xbf16, #tpu.memory_space<vmem>>, %arg4: memref<256x32xbf16, #tpu.memory_space<vmem>>, %arg5: memref<1x32xf32, #tpu.memory_space<vmem>>, %arg6: memref<16x32xf32, #tpu.memory_space<vmem>>, %arg7: memref<16x32xf32, #tpu.memory_space<vmem>>) attributes {dimension_semantics = [#tpu.dimension_semantics<parallel>, #tpu.dimension_semantics<parallel>, #tpu.dimension_semantics<arbitrary>], iteration_bounds = array<i64: 1, 1, 2>, scalar_prefetch = 0 : i64, scratch_operands = 1 : i64, tpu.core_type = #tpu.core_type<tc>, window_params = [{transform_indices = @transform_0, window_bounds = array<i64: 16, 256>}, {transform_indices = @transform_1, window_bounds = array<i64: 256, 32>}, {transform_indices = @transform_2, window_bounds = array<i64: 1, 32>}, {transform_indices = @transform_3, window_bounds = array<i64: 16, 32>}]} {
    %c0_i32 = arith.constant 0 : i32
    %0 = arith.cmpi eq, %arg2, %c0_i32 : i32
    %1 = arith.extui %0 : i1 to i32
    %c0_i32_0 = arith.constant 0 : i32
    %2 = arith.cmpi ne, %1, %c0_i32_0 : i32
    scf.if %2 {
      %cst_9 = arith.constant 0.000000e+00 : f32
      %12 = vector.broadcast %cst_9 : f32 to vector<16x32xf32>
      %c0_10 = arith.constant 0 : index
      %c0_11 = arith.constant 0 : index
      %13 = vector.load %arg7[%c0_10, %c0_11] : memref<16x32xf32, #tpu.memory_space<vmem>>, vector<16x32xf32>
      tpu.vector_store %arg7[%c0_10, %c0_11], %12 {strides = array<i32>} : memref<16x32xf32, #tpu.memory_space<vmem>>, vector<16x32xf32>,
    } else {
    }
    %c0 = arith.constant 0 : index
    %c0_1 = arith.constant 0 : index
    %3 = vector.load %arg7[%c0, %c0_1] : memref<16x32xf32, #tpu.memory_space<vmem>>, vector<16x32xf32>
    %c0_2 = arith.constant 0 : index
    %c0_3 = arith.constant 0 : index
    %4 = vector.load %arg3[%c0_2, %c0_3] : memref<16x256xbf16, #tpu.memory_space<vmem>>, vector<16x256xbf16>
    %c0_4 = arith.constant 0 : index
    %c0_5 = arith.constant 0 : index
    %5 = vector.load %arg4[%c0_4, %c0_5] : memref<256x32xbf16, #tpu.memory_space<vmem>>, vector<256x32xbf16>
    %cst = arith.constant dense<0.000000e+00> : vector<16x32xf32>
    %6 = tpu.matmul %4, %5, %cst {dimension_numbers = #tpu.dot_dimension_numbers<[1], [0], [0], [1], [0, 0, 1, 1], [], []>} : vector<16x256xbf16>, vector<256x32xbf16>, vector<16x32xf32> -> vector<16x32xf32>
    %7 = arith.addf %3, %6 : vector<16x32xf32>
    %c0_6 = arith.constant 0 : index
    %c0_7 = arith.constant 0 : index
    %8 = vector.load %arg7[%c0_6, %c0_7] : memref<16x32xf32, #tpu.memory_space<vmem>>, vector<16x32xf32>
    tpu.vector_store %arg7[%c0_6, %c0_7], %7 {strides = array<i32>} : memref<16x32xf32, #tpu.memory_space<vmem>>, vector<16x32xf32>,
    %c1_i32 = arith.constant 1 : i32
    %9 = arith.cmpi eq, %arg2, %c1_i32 : i32
    %10 = arith.extui %9 : i1 to i32
    %c0_i32_8 = arith.constant 0 : i32
    %11 = arith.cmpi ne, %10, %c0_i32_8 : i32
    scf.if %11 {
      %c0_9 = arith.constant 0 : index
      %c0_10 = arith.constant 0 : index
      %12 = vector.load %arg7[%c0_9, %c0_10] : memref<16x32xf32, #tpu.memory_space<vmem>>, vector<16x32xf32>
      %c0_11 = arith.constant 0 : index
      %c0_12 = arith.constant 0 : index
      %13 = vector.load %arg5[%c0_11, %c0_12] : memref<1x32xf32, #tpu.memory_space<vmem>>, vector<1x32xf32>
      %14 = vector.broadcast %13 : vector<1x32xf32> to vector<16x32xf32>
      %15 = arith.addf %12, %14 : vector<16x32xf32>
      %c0_13 = arith.constant 0 : index
      %c0_14 = arith.constant 0 : index
      %16 = vector.load %arg6[%c0_13, %c0_14] : memref<16x32xf32, #tpu.memory_space<vmem>>, vector<16x32xf32>
      tpu.vector_store %arg6[%c0_13, %c0_14], %15 {strides = array<i32>} : memref<16x32xf32, #tpu.memory_space<vmem>>, vector<16x32xf32>,
    } else {
    }
    return
  }
  func.func @transform_0(%arg0: i32, %arg1: i32, %arg2: i32) -> (i32, i32) {
    %c0_i32 = arith.constant 0 : i32
    return %arg0, %arg2 : i32, i32
  }
  func.func @transform_1(%arg0: i32, %arg1: i32, %arg2: i32) -> (i32, i32) {
    %c0_i32 = arith.constant 0 : i32
    return %arg2, %arg1 : i32, i32
  }
  func.func @transform_2(%arg0: i32, %arg1: i32, %arg2: i32) -> (i32, i32) {
    %c0_i32 = arith.constant 0 : i32
    %c0_i32_0 = arith.constant 0 : i32
    return %c0_i32, %arg1 : i32, i32
  }
  func.func @transform_3(%arg0: i32, %arg1: i32, %arg2: i32) -> (i32, i32) {
    %c0_i32 = arith.constant 0 : i32
    return %arg0, %arg1 : i32, i32
  }
}

</mosaic_0001>

<llo_original>
// kernel: attention_forward.3
$region0: #{attention_forward.3}
  #allocation0 [shape = 'u32[]', space=smem, size = 0x4, offset = 0x4, fixed_abs, tag = 'smem constant byte address 0x4 - core index']
  #allocation1 [shape = 'u32[144,128]{1,0:T(1,128)}', space=vmem, size = 0x12000, scoped, tag = 'internal scratch']
  %s0 = inlined_call_operand.vmem [shape: bf16[16,32], index: 0, kind: input, shape index: {}]
  %s1 = inlined_call_operand.vmem [shape: bf16[32,1536], index: 1, kind: input, shape index: {}]
  %s2 = inlined_call_operand.vmem [shape: bf16[16,1536], index: 2, kind: output, shape index: {}]
  %s3 = sld [smem:[#allocation0]]
  $region83: #{attention_forward.3} parent=0
    _
  %s5 = ssub.s32 1, %s3
  %s6 = scalar_select 0, %s5, %s3
  $region1: #{attention_forward.3} parent=0
    #allocation2 [shape = 'u8[65536]{0}', space=vmem, size = 0x10000, scoped, tag = 'input window, operand 1']
    #allocation3 [shape = 'u8[32768]{0}', space=vmem, size = 0x8000, scoped, tag = 'output window, operand 0']
    loop: start=0, step=1, limit=5
    $region2: #{attention_forward.3} parent=1 // loop_pre_header
      _
    $region3: #{attention_forward.3} parent=1 // loop_header
      %s8 = sphi 0, %s12
      %p9 = scmp.ge.s32.totalorder %s8, 5
      %s15 = sphi 0, %s27
      %s16 = sphi 0, %s23
      %s17 = sphi 0, %s15
      %s18 = sphi 0, %s16
      %s19 = sphi 0, %s17
      %s20 = sphi 0, %s18
      %s30 = sphi 0, %s32
      %s33 = sphi 0, %s30
      %s34 = sphi 0, %s33
      %s50 = sphi 0, %s34
      %s56 = sphi 0, %s58
      %s59 = sphi 0, %s56
      %s60 = sphi 0, %s59
      %s76 = sphi 0, %s60
      %s84 = sphi 0, %s86
      %s87 = sphi 0, %s84
      %s88 = sphi 0, %s87
      %s104 = sphi 0, %s88
    $region4: #{attention_forward.3} parent=1 // loop_header_branch
      %11 = sbr.rel (%p9) target = $region8
    $region5: #{attention_forward.3} parent=1 // loop_body
      %s13 = ssub.s32 %s8, 1
      %s14 = ssub.s32 %s8, 2
      %s21 = sadd.s32 1, %s16
      %p22 = scmp.ge.s32.totalorder %s21, 3
      %s23 = scalar_select %p22, 0, %s21
      %s24 = sadd.s32 1, %s15
      %s25 = scalar_select %p22, %s24, %s15
      %p26 = scmp.ge.s32.totalorder %s25, 1
      %s27 = scalar_select %p26, 0, %s25
      %s28 = ssub.s32 %s15, %s27
      %p29 = scmp.eq.s32.totalorder %s28, 0
      %s31 = sadd.s32 %s30, 1
      %s32 = scalar_select %p29, %s30, %s31
      %p35 = pneg %p29
      %p36 = scmp.eq.s32.totalorder %s8, 2
      %p37 = por %p35, %p36
      %p38 = scmp.ne.s32.totalorder %s30, %s33
      %p39 = scmp.eq.s32.totalorder %s8, 0
      %p40 = por %p38, %p39
      %p41 = scmp.ne.s32.totalorder %s30, %s33
      %p42 = scmp.eq.s32.totalorder %s13, 2
      %p43 = por %p41, %p42
      %p44 = scmp.ne.s32.totalorder %s33, %s34
      %p45 = scmp.eq.s32.totalorder %s13, 0
      %p46 = por %p44, %p45
      %p47 = scmp.ne.s32.totalorder %s33, %s34
      %p48 = scmp.eq.s32.totalorder %s14, 2
      %p49 = por %p47, %p48
      %p51 = scmp.ne.s32.totalorder %s34, %s50
      %p52 = scmp.eq.s32.totalorder %s14, 0
      %p53 = por %p51, %p52
      %s54 = ssub.s32 %s16, %s23
      %p55 = scmp.eq.s32.totalorder %s54, 0
      %s57 = sadd.s32 %s56, 1
      %s58 = scalar_select %p55, %s56, %s57
      %p61 = pneg %p55
      %p62 = scmp.eq.s32.totalorder %s8, 2
      %p63 = por %p61, %p62
      %p64 = scmp.ne.s32.totalorder %s56, %s59
      %p65 = scmp.eq.s32.totalorder %s8, 0
      %p66 = por %p64, %p65
      %p67 = scmp.ne.s32.totalorder %s56, %s59
      %p68 = scmp.eq.s32.totalorder %s13, 2
      %p69 = por %p67, %p68
      %p70 = scmp.ne.s32.totalorder %s59, %s60
      %p71 = scmp.eq.s32.totalorder %s13, 0
      %p72 = por %p70, %p71
      %p73 = scmp.ne.s32.totalorder %s59, %s60
      %p74 = scmp.eq.s32.totalorder %s14, 2
      %p75 = por %p73, %p74
      %p77 = scmp.ne.s32.totalorder %s60, %s76
      %p78 = scmp.eq.s32.totalorder %s14, 0
      %p79 = por %p77, %p78
      %s80 = ssub.s32 %s15, %s27
      %s81 = ssub.s32 %s16, %s23
      %s82 = sor.u32 %s80, %s81
      %p83 = scmp.eq.s32.totalorder %s82, 0
      %s85 = sadd.s32 %s84, 1
      %s86 = scalar_select %p83, %s84, %s85
      %p89 = pneg %p83
      %p90 = scmp.eq.s32.totalorder %s8, 2
      %p91 = por %p89, %p90
      %p92 = scmp.ne.s32.totalorder %s84, %s87
      %p93 = scmp.eq.s32.totalorder %s8, 0
      %p94 = por %p92, %p93
      %p95 = scmp.ne.s32.totalorder %s84, %s87
      %p96 = scmp.eq.s32.totalorder %s13, 2
      %p97 = por %p95, %p96
      %p98 = scmp.ne.s32.totalorder %s87, %s88
      %p99 = scmp.eq.s32.totalorder %s13, 0
      %p100 = por %p98, %p99
      %p101 = scmp.ne.s32.totalorder %s87, %s88
      %p102 = scmp.eq.s32.totalorder %s14, 2
      %p103 = por %p101, %p102
      %p105 = scmp.ne.s32.totalorder %s88, %s104
      %p106 = scmp.eq.s32.totalorder %s14, 0
      %p107 = por %p105, %p106
      %p108 = scmp.le.s32.totalorder 1, %s8
      %p109 = scmp.lt.s32.totalorder %s8, 4
      %p110 = pnand %p108, %p109
      %p111 = pneg %p110
      // Predicated region
      $region9: #{attention_forward.3} parent=5 // pred_check
        _
      $region10: #{attention_forward.3} parent=5 // pred_check_branch
        %113 = sbr.rel (%p110) target = $region12
      $region11: #{attention_forward.3} parent=5 // pred_region
        %s114 = ssub.s32 %s8, 1
        // Predicated region
        $region13: #{attention_forward.3} parent=11 // pred_check
          %p115 = pneg %p46
        $region14: #{attention_forward.3} parent=11 // pred_check_branch
          %117 = sbr.rel (%p115) target = $region16
        $region15: #{attention_forward.3} parent=11 // pred_region
          %s118 = smul.u32 2, %s17
          %p119 = scmp.lt.s32.totalorder %s118, 1
          %s120 = scalar_select %p119, %s118, 1
          %s121 = smul.addr %s120, 4
          %s122 = scalar_lea.vmem %s0, %s121
          %s123 = smul.u32 2, %s17
        $region16: #{attention_forward.3} parent=11 // pred_fallthru
          _
      $region12: #{attention_forward.3} parent=5 // pred_fallthru
        _
      %p124 = scmp.lt.s32.totalorder %s8, 3
      // Predicated region
      $region17: #{attention_forward.3} parent=5 // pred_check
        %p125 = pneg %p124
      $region18: #{attention_forward.3} parent=5 // pred_check_branch
        %127 = sbr.rel (%p125) target = $region20
      $region19: #{attention_forward.3} parent=5 // pred_region
        // Predicated region
        $region21: #{attention_forward.3} parent=19 // pred_check
          %p128 = pneg %p66
        $region22: #{attention_forward.3} parent=19 // pred_check_branch
          %130 = sbr.rel (%p128) target = $region24
        $region23: #{attention_forward.3} parent=19 // pred_region
          %s131 = sand.u32 %s56, 1
          %s132 = sand.u32 %s56, 1
          %s133 = smul.addr %s132, 64
          %s134 = scalar_lea.vmem [#allocation2], %s133
          %s135 = smul.u32 4, %s16
          %s136 = smul.addr %s135, 4
          %s137 = scalar_lea.vmem %s1, %s136
          // Predicated region
          $region25: #{attention_forward.3} parent=23 // pred_check
            _
          $region26: #{attention_forward.3} parent=23 // pred_check_branch
            %139 = sbr.rel (0) target = $region28
          $region27: #{attention_forward.3} parent=23 // pred_region
            // Predicated region
            $region29: #{attention_forward.3} parent=27 // pred_check
              _
            $region30: #{attention_forward.3} parent=27 // pred_check_branch
              %141 = sbr.rel (0) target = $region32
            $region31: #{attention_forward.3} parent=27 // pred_region
              loop: start=0, step=1, limit=1
              $region33: #{attention_forward.3} parent=31 // loop_pre_header
                _
              $region34: #{attention_forward.3} parent=31 // loop_header
                %s143 = sphi 0, %s147
                %p144 = scmp.ge.s32.totalorder %s143, 1
                %s148 = sphi %s137, %s137
                %s149 = sphi %s134, %s134
              $region35: #{attention_forward.3} parent=31 // loop_header_branch
                %146 = sbr.rel (%p144) target = $region39
              $region36: #{attention_forward.3} parent=31 // loop_body
                %v150 = vld [vmem:[%s148] sm:$0xff]
                %151 = vst [vmem:[%s149] sm:$0xff] %v150
                %v152 = vld [vmem:[%s148 + $0x8] sm:$0xff]
                %153 = vst [vmem:[%s149 + $0x8] sm:$0xff] %v152
                %v154 = vld [vmem:[%s148 + $0x30] sm:$0xff]
                %155 = vst [vmem:[%s149 + $0x10] sm:$0xff] %v154
                %v156 = vld [vmem:[%s148 + $0x38] sm:$0xff]
                %157 = vst [vmem:[%s149 + $0x18] sm:$0xff] %v156
                %v158 = vld [vmem:[%s148 + $0x60] sm:$0xff]
                %159 = vst [vmem:[%s149 + $0x20] sm:$0xff] %v158
                %v160 = vld [vmem:[%s148 + $0x68] sm:$0xff]
                %161 = vst [vmem:[%s149 + $0x28] sm:$0xff] %v160
                %v162 = vld [vmem:[%s148 + $0x90] sm:$0xff]
                %163 = vst [vmem:[%s149 + $0x30] sm:$0xff] %v162
                %v164 = vld [vmem:[%s148 + $0x98] sm:$0xff]
                %165 = vst [vmem:[%s149 + $0x38] sm:$0xff] %v164
              $region37: #{attention_forward.3} parent=31 // loop_footer
                %s147 = sadd.s32 1, %s143
              $region38: #{attention_forward.3} parent=31 // loop_footer_branch
                %142 = sbr.rel target = $region34
              $region39: #{attention_forward.3} parent=31 // loop_exit
                _
            $region32: #{attention_forward.3} parent=27 // pred_fallthru
              _
            // Predicated region
            $region40: #{attention_forward.3} parent=27 // pred_check
              _
            $region41: #{attention_forward.3} parent=27 // pred_check_branch
              %167 = sbr.rel target = $region43
            $region42: #{attention_forward.3} parent=27 // pred_region
              _
            $region43: #{attention_forward.3} parent=27 // pred_fallthru
              _
          $region28: #{attention_forward.3} parent=23 // pred_fallthru
            _
          %168 = vnop
        $region24: #{attention_forward.3} parent=19 // pred_fallthru
          _
      $region20: #{attention_forward.3} parent=5 // pred_fallthru
        _
      %p169 = scmp.le.s32.totalorder 1, %s8
      %p170 = scmp.lt.s32.totalorder %s8, 4
      %p171 = pnand %p169, %p170
      %p172 = pneg %p171
      // Predicated region
      $region44: #{attention_forward.3} parent=5 // pred_check
        _
      $region45: #{attention_forward.3} parent=5 // pred_check_branch
        %174 = sbr.rel (%p171) target = $region47
      $region46: #{attention_forward.3} parent=5 // pred_region
        %s175 = ssub.s32 %s8, 1
        %s176 = sand.u32 %s59, 1
        %s177 = sand.u32 %s59, 1
        %s178 = smul.addr %s177, 64
        %s179 = scalar_lea.vmem [#allocation2], %s178
        // Predicated region
        $region48: #{attention_forward.3} parent=46 // pred_check
          %p180 = pneg %p72
        $region49: #{attention_forward.3} parent=46 // pred_check_branch
          %182 = sbr.rel (%p180) target = $region51
        $region50: #{attention_forward.3} parent=46 // pred_region
          _
        $region51: #{attention_forward.3} parent=46 // pred_fallthru
          _
        %s183 = smul.u32 2, %s17
        %p184 = scmp.lt.s32.totalorder %s183, 1
        %s185 = scalar_select %p184, %s183, 1
        %s186 = smul.addr %s185, 4
        %s187 = scalar_lea.vmem %s0, %s186
        %p188 = pneg %p46
        %p189 = pneg %p43
        %s190 = sand.u32 %s59, 1
        %s191 = sand.u32 %s59, 1
        %s192 = smul.addr %s191, 64
        %s193 = scalar_lea.vmem [#allocation2], %s192
        %p194 = pneg %p72
        %p195 = pneg %p69
        %p196 = pneg %p100
        %p197 = pneg %p97
        %s198 = sand.u32 %s87, 1
        %s199 = sand.u32 %s87, 1
        %s200 = smul.addr %s199, 32
        %s201 = scalar_lea.vmem [#allocation3], %s200
        %s202 = smul.u32 2, %s17
        %p203 = scmp.lt.s32.totalorder %s202, 1
        %s204 = scalar_select %p203, %s202, 1
        %s205 = smul.addr %s204, 4
        %s206 = scalar_lea.vmem %s0, %s205
        %s207 = smul.u32 2, %s17
        %s208 = smul.u32 4, %s18
        %s209 = smul.u32 2, %s17
        %s210 = smul.u32 4, %s18
        %v212 = vld [vmem:[%s206] sm:$0xf]
        %v213 = vld [vmem:[%s206 + $0x4] sm:$0xf]
        %v214 = vld [vmem:[%s179] sm:$0xff]
        %v215 = vld [vmem:[%s179 + $0x8] sm:$0xff]
        %v216 = vld [vmem:[%s179 + $0x10] sm:$0xff]
        %v217 = vld [vmem:[%s179 + $0x18] sm:$0xff]
        %v218 = vld [vmem:[%s179 + $0x20] sm:$0xff]
        %v219 = vld [vmem:[%s179 + $0x28] sm:$0xff]
        %v220 = vld [vmem:[%s179 + $0x30] sm:$0xff]
        %v221 = vld [vmem:[%s179 + $0x38] sm:$0xff]
        %v224 = vunpack.c.l.b16 %v212
        %v225 = vunpack.c.l.b16 %v213
        %v226 = vpack.c.b16 %v225, %v224
        %v235 = vunpack.c.l.b16 %v214
        %v236 = vunpack.c.h.b16 %v214
        %v237 = vunpack.c.l.b16 %v215
        %v238 = vunpack.c.h.b16 %v215
        %v239 = vunpack.c.l.b16 %v216
        %v240 = vunpack.c.h.b16 %v216
        %v241 = vunpack.c.l.b16 %v217
        %v242 = vunpack.c.h.b16 %v217
        %v243 = vunpack.c.l.b16 %v218
        %v244 = vunpack.c.h.b16 %v218
        %v245 = vunpack.c.l.b16 %v219
        %v246 = vunpack.c.h.b16 %v219
        %v247 = vunpack.c.l.b16 %v220
        %v248 = vunpack.c.h.b16 %v220
        %v249 = vunpack.c.l.b16 %v221
        %v250 = vunpack.c.h.b16 %v221
        %v251 = vpack.c.b16 %v239, %v235
        %v252 = vpack.c.b16 %v240, %v236
        %v253 = vpack.c.b16 %v241, %v237
        %v254 = vpack.c.b16 %v242, %v238
        %v255 = vpack.c.b16 %v247, %v243
        %v256 = vpack.c.b16 %v248, %v244
        %v257 = vpack.c.b16 %v249, %v245
        %v258 = vpack.c.b16 %v250, %v246
        %vm267 = vcmask 261120
        %v269 = vsel %vm267, %v226, 0
        %271 = vmatprep.subr.bf16.mxu0 %v252
        %272 = vmatpush1.bf16.msra.mxu0 %v251
        %273 = vmatprep.subr.bf16.mxu0 %v256
        %274 = vmatpush1.bf16.msra.mxu0 %v255
        %275 = vmatprep.subr.bf16.mxu0 0
        %276 = vmatpush1.bf16.msra.mxu0 0
        %277 = vmatprep.subr.bf16.mxu0 0
        %278 = vmatpush1.bf16.msra.mxu0 0
        %279 = vmatprep.subr.bf16.mxu0 0
        %280 = vmatpush1.bf16.msra.mxu0 0
        %281 = vmatprep.subr.bf16.mxu0 0
        %282 = vmatpush1.bf16.msra.mxu0 0
        %283 = vmatprep.subr.bf16.mxu0 0
        %284 = vmatpush1.bf16.msra.mxu0 0
        %285 = vmatprep.subr.bf16.mxu0 0
        %286 = vmatpush1.bf16.msra.mxu0 0
        %287 = vmatprep.subr.bf16.mxu0 0
        %288 = vmatpush1.bf16.msra.mxu0 0
        %289 = vmatprep.subr.bf16.mxu0 0
        %290 = vmatpush1.bf16.msra.mxu0 0
        %291 = vmatprep.subr.bf16.mxu0 0
        %292 = vmatpush1.bf16.msra.mxu0 0
        %293 = vmatprep.subr.bf16.mxu0 0
        %294 = vmatpush1.bf16.msra.mxu0 0
        %295 = vmatprep.subr.bf16.mxu0 0
        %296 = vmatpush1.bf16.msra.mxu0 0
        %297 = vmatprep.subr.bf16.mxu0 0
        %298 = vmatpush1.bf16.msra.mxu0 0
        %299 = vmatprep.subr.bf16.mxu0 0
        %300 = vmatpush1.bf16.msra.mxu0 0
        %301 = vmatprep.subr.bf16.mxu0 0
        %302 = vmatpush1.bf16.msra.mxu0 0
        %303 = vmatprep.mubr.bf16.mxu0 0
        %304 = vmatmul.mubr.bf16.gmra.mrb[0].mxu0 %v269
        %v305 = vpop.f32.mrb[0].mxu0
        %v306 = vadd.f32 0.0, %v305
        %v307 = vpop.f32.mrb[0].mxu0
        %v308 = vadd.f32 0.0, %v307
        %v309 = vpop.f32.mrb[0].mxu0
        %v310 = vadd.f32 0.0, %v309
        %v311 = vpop.f32.mrb[0].mxu0
        %v312 = vadd.f32 0.0, %v311
        %313 = vdwg.mxu0
        %314 = vmatprep.subr.bf16.mxu0 %v254
        %315 = vmatpush1.bf16.msra.mxu0 %v253
        %316 = vmatprep.subr.bf16.mxu0 %v258
        %317 = vmatpush1.bf16.msra.mxu0 %v257
        %318 = vmatprep.subr.bf16.mxu0 0
        %319 = vmatpush1.bf16.msra.mxu0 0
        %320 = vmatprep.subr.bf16.mxu0 0
        %321 = vmatpush1.bf16.msra.mxu0 0
        %322 = vmatprep.subr.bf16.mxu0 0
        %323 = vmatpush1.bf16.msra.mxu0 0
        %324 = vmatprep.subr.bf16.mxu0 0
        %325 = vmatpush1.bf16.msra.mxu0 0
        %326 = vmatprep.subr.bf16.mxu0 0
        %327 = vmatpush1.bf16.msra.mxu0 0
        %328 = vmatprep.subr.bf16.mxu0 0
        %329 = vmatpush1.bf16.msra.mxu0 0
        %330 = vmatprep.subr.bf16.mxu0 0
        %331 = vmatpush1.bf16.msra.mxu0 0
        %332 = vmatprep.subr.bf16.mxu0 0
        %333 = vmatpush1.bf16.msra.mxu0 0
        %334 = vmatprep.subr.bf16.mxu0 0
        %335 = vmatpush1.bf16.msra.mxu0 0
        %336 = vmatprep.subr.bf16.mxu0 0
        %337 = vmatpush1.bf16.msra.mxu0 0
        %338 = vmatprep.subr.bf16.mxu0 0
        %339 = vmatpush1.bf16.msra.mxu0 0
        %340 = vmatprep.subr.bf16.mxu0 0
        %341 = vmatpush1.bf16.msra.mxu0 0
        %342 = vmatprep.subr.bf16.mxu0 0
        %343 = vmatpush1.bf16.msra.mxu0 0
        %344 = vmatprep.subr.bf16.mxu0 0
        %345 = vmatpush1.bf16.msra.mxu0 0
        %346 = vmatprep.mubr.bf16.mxu0 0
        %347 = vmatmul.mubr.bf16.gmra.mrb[0].mxu0 %v269
        %v348 = vpop.f32.mrb[0].mxu0
        %v349 = vadd.f32 0.0, %v348
        %v350 = vpop.f32.mrb[0].mxu0
        %v351 = vadd.f32 0.0, %v350
        %v352 = vpop.f32.mrb[0].mxu0
        %v353 = vadd.f32 0.0, %v352
        %v354 = vpop.f32.mrb[0].mxu0
        %v355 = vadd.f32 0.0, %v354
        %356 = vdwg.mxu0
        %v357 = vpack.c.bf16 %v310, %v306
        %v358 = vpack.c.bf16 %v312, %v308
        %v359 = vpack.c.bf16 %v353, %v349
        %v360 = vpack.c.bf16 %v355, %v351
        %v365 = vunpack.c.l.b16 %v357
        %v366 = vunpack.c.l.b16 %v358
        %v367 = vunpack.c.l.b16 %v359
        %v368 = vunpack.c.l.b16 %v360
        %v369 = vunpack.c.h.b16 %v357
        %v370 = vunpack.c.h.b16 %v358
        %v371 = vunpack.c.h.b16 %v359
        %v372 = vunpack.c.h.b16 %v360
        %v373 = vpack.c.b16 %v366, %v365
        %v374 = vpack.c.b16 %v368, %v367
        %v375 = vpack.c.b16 %v370, %v369
        %v376 = vpack.c.b16 %v372, %v371
        %381 = vst [vmem:[%s201] sm:$0xff] %v373
        %382 = vst [vmem:[%s201 + $0x8] sm:$0xff] %v374
        %383 = vst [vmem:[%s201 + $0x10] sm:$0xff] %v375
        %384 = vst [vmem:[%s201 + $0x18] sm:$0xff] %v376
        %s385 = sand.u32 %s87, 1
        %s386 = sand.u32 %s87, 1
        %s387 = smul.addr %s386, 32
        %s388 = scalar_lea.vmem [#allocation3], %s387
        // Predicated region
        $region52: #{attention_forward.3} parent=46 // pred_check
          %p389 = pneg %p97
        $region53: #{attention_forward.3} parent=46 // pred_check_branch
          %391 = sbr.rel (%p389) target = $region55
        $region54: #{attention_forward.3} parent=46 // pred_region
          %s392 = smul.u32 2, %s17
          %s393 = smul.u32 4, %s18
          %s394 = smul.addr %s392, 12
          %s395 = sadd.s32 %s393, %s394
          %s396 = smul.addr %s395, 4
          %s397 = scalar_lea.vmem %s2, %s396
          // Predicated region
          $region56: #{attention_forward.3} parent=54 // pred_check
            _
          $region57: #{attention_forward.3} parent=54 // pred_check_branch
            %399 = sbr.rel (0) target = $region59
          $region58: #{attention_forward.3} parent=54 // pred_region
            // Predicated region
            $region60: #{attention_forward.3} parent=58 // pred_check
              _
            $region61: #{attention_forward.3} parent=58 // pred_check_branch
              %401 = sbr.rel (0) target = $region63
            $region62: #{attention_forward.3} parent=58 // pred_region
              loop: start=0, step=1, limit=1
              $region64: #{attention_forward.3} parent=62 // loop_pre_header
                _
              $region65: #{attention_forward.3} parent=62 // loop_header
                %s403 = sphi 0, %s407
                %p404 = scmp.ge.s32.totalorder %s403, 1
                %s408 = sphi %s388, %s388
                %s409 = sphi %s397, %s397
              $region66: #{attention_forward.3} parent=62 // loop_header_branch
                %406 = sbr.rel (%p404) target = $region70
              $region67: #{attention_forward.3} parent=62 // loop_body
                %v410 = vld [vmem:[%s408] sm:$0xff]
                %411 = vst [vmem:[%s409] sm:$0xff] %v410
                %v412 = vld [vmem:[%s408 + $0x8] sm:$0xff]
                %413 = vst [vmem:[%s409 + $0x8] sm:$0xff] %v412
                %v414 = vld [vmem:[%s408 + $0x10] sm:$0xff]
                %415 = vst [vmem:[%s409 + $0x30] sm:$0xff] %v414
                %v416 = vld [vmem:[%s408 + $0x18] sm:$0xff]
                %417 = vst [vmem:[%s409 + $0x38] sm:$0xff] %v416
              $region68: #{attention_forward.3} parent=62 // loop_footer
                %s407 = sadd.s32 1, %s403
              $region69: #{attention_forward.3} parent=62 // loop_footer_branch
                %402 = sbr.rel target = $region65
              $region70: #{attention_forward.3} parent=62 // loop_exit
                _
            $region63: #{attention_forward.3} parent=58 // pred_fallthru
              _
            // Predicated region
            $region71: #{attention_forward.3} parent=58 // pred_check
              _
            $region72: #{attention_forward.3} parent=58 // pred_check_branch
              %419 = sbr.rel target = $region74
            $region73: #{attention_forward.3} parent=58 // pred_region
              _
            $region74: #{attention_forward.3} parent=58 // pred_fallthru
              _
          $region59: #{attention_forward.3} parent=54 // pred_fallthru
            _
          %420 = vnop
        $region55: #{attention_forward.3} parent=46 // pred_fallthru
          _
      $region47: #{attention_forward.3} parent=5 // pred_fallthru
        _
      %p421 = scmp.le.s32.totalorder 2, %s8
      // Predicated region
      $region75: #{attention_forward.3} parent=5 // pred_check
        %p422 = pneg %p421
      $region76: #{attention_forward.3} parent=5 // pred_check_branch
        %424 = sbr.rel (%p422) target = $region78
      $region77: #{attention_forward.3} parent=5 // pred_region
        %s425 = ssub.s32 %s8, 2
        // Predicated region
        $region79: #{attention_forward.3} parent=77 // pred_check
          %p426 = pneg %p103
        $region80: #{attention_forward.3} parent=77 // pred_check_branch
          %428 = sbr.rel (%p426) target = $region82
        $region81: #{attention_forward.3} parent=77 // pred_region
          %s429 = sand.u32 %s88, 1
          %s430 = sand.u32 %s88, 1
          %s431 = smul.addr %s430, 32
          %s432 = scalar_lea.vmem [#allocation3], %s431
        $region82: #{attention_forward.3} parent=77 // pred_fallthru
          _
      $region78: #{attention_forward.3} parent=5 // pred_fallthru
        _
    $region6: #{attention_forward.3} parent=1 // loop_footer
      %s12 = sadd.s32 1, %s8
    $region7: #{attention_forward.3} parent=1 // loop_footer_branch
      %7 = sbr.rel target = $region3
    $region8: #{attention_forward.3} parent=1 // loop_exit
      _

// kernel: attention_forward.5
$region0: #{attention_forward.5}
  #allocation0 [shape = 'u32[]', space=smem, size = 0x4, offset = 0x4, fixed_abs, tag = 'smem constant byte address 0x4 - core index']
  #allocation1 [shape = 'u32[144,128]{1,0:T(1,128)}', space=vmem, size = 0x12000, scoped, tag = 'internal scratch']
  #allocation2 [shape = 'f32[16,32]{1,0:T(8,128)}', space=vmem, size = 0x2000, scoped, tag = 'scratch operand']
  %s0 = inlined_call_operand.vmem [shape: bf16[16,512], index: 0, kind: input, shape index: {}]
  %s1 = inlined_call_operand.vmem [shape: bf16[512,32], index: 1, kind: input, shape index: {}]
  %s2 = inlined_call_operand.vmem [shape: f32[1,32], index: 2, kind: input, shape index: {}]
  %s3 = inlined_call_operand.hbm [shape: f32[16,32], index: 3, kind: output, shape index: {}]
  %s4 = sld [smem:[#allocation0]]
  $region91: #{attention_forward.5} parent=0
    _
  %s6 = ssub.s32 1, %s4
  %s7 = scalar_select 0, %s6, %s4
  $region1: #{attention_forward.5} parent=0
    #allocation3 [shape = 'u8[16384]{0}', space=vmem, size = 0x4000, scoped, tag = 'input window, operand 0']
    #allocation4 [shape = 'u8[8192]{0}', space=vmem, size = 0x2000, scoped, tag = 'output window, operand 0, single buffered']
    #allocation5 [shape = 's32[2]{0}', space=sflag, size = 0x8, scoped, tag = 'scoped memory for attention_forward.5']
    %8 = vsyncpa [#allocation5], 0
    loop: start=0, step=1, limit=4
    $region2: #{attention_forward.5} parent=1 // loop_pre_header
      _
    $region3: #{attention_forward.5} parent=1 // loop_header
      %s10 = sphi 0, %s14
      %p11 = scmp.ge.s32.totalorder %s10, 4
      %s17 = sphi 0, %s36
      %s18 = sphi 0, %s32
      %s19 = sphi 0, %s28
      %s20 = sphi 0, %s17
      %s21 = sphi 0, %s18
      %s22 = sphi 0, %s19
      %s23 = sphi 0, %s20
      %s24 = sphi 0, %s21
      %s25 = sphi 0, %s22
      %s41 = sphi 0, %s43
      %s44 = sphi 0, %s41
      %s45 = sphi 0, %s44
      %s61 = sphi 0, %s45
      %s69 = sphi 0, %s71
      %s72 = sphi 0, %s69
      %s73 = sphi 0, %s72
      %s89 = sphi 0, %s73
      %s95 = sphi 0, %s97
      %s98 = sphi 0, %s95
      %s99 = sphi 0, %s98
      %s115 = sphi 0, %s99
      %s123 = sphi 0, %s125
      %s126 = sphi 0, %s123
      %s127 = sphi 0, %s126
      %s143 = sphi 0, %s127
    $region4: #{attention_forward.5} parent=1 // loop_header_branch
      %13 = sbr.rel (%p11) target = $region8
    $region5: #{attention_forward.5} parent=1 // loop_body
      %s15 = ssub.s32 %s10, 1
      %s16 = ssub.s32 %s10, 2
      %s26 = sadd.s32 1, %s19
      %p27 = scmp.ge.s32.totalorder %s26, 2
      %s28 = scalar_select %p27, 0, %s26
      %s29 = sadd.s32 1, %s18
      %s30 = scalar_select %p27, %s29, %s18
      %p31 = scmp.ge.s32.totalorder %s30, 1
      %s32 = scalar_select %p31, 0, %s30
      %s33 = sadd.s32 1, %s17
      %s34 = scalar_select %p31, %s33, %s17
      %p35 = scmp.ge.s32.totalorder %s34, 1
      %s36 = scalar_select %p35, 0, %s34
      %s37 = ssub.s32 %s17, %s36
      %s38 = ssub.s32 %s19, %s28
      %s39 = sor.u32 %s37, %s38
      %p40 = scmp.eq.s32.totalorder %s39, 0
      %s42 = sadd.s32 %s41, 1
      %s43 = scalar_select %p40, %s41, %s42
      %p46 = pneg %p40
      %p47 = scmp.eq.s32.totalorder %s10, 1
      %p48 = por %p46, %p47
      %p49 = scmp.ne.s32.totalorder %s41, %s44
      %p50 = scmp.eq.s32.totalorder %s10, 0
      %p51 = por %p49, %p50
      %p52 = scmp.ne.s32.totalorder %s41, %s44
      %p53 = scmp.eq.s32.totalorder %s15, 1
      %p54 = por %p52, %p53
      %p55 = scmp.ne.s32.totalorder %s44, %s45
      %p56 = scmp.eq.s32.totalorder %s15, 0
      %p57 = por %p55, %p56
      %p58 = scmp.ne.s32.totalorder %s44, %s45
      %p59 = scmp.eq.s32.totalorder %s16, 1
      %p60 = por %p58, %p59
      %p62 = scmp.ne.s32.totalorder %s45, %s61
      %p63 = scmp.eq.s32.totalorder %s16, 0
      %p64 = por %p62, %p63
      %s65 = ssub.s32 %s19, %s28
      %s66 = ssub.s32 %s18, %s32
      %s67 = sor.u32 %s65, %s66
      %p68 = scmp.eq.s32.totalorder %s67, 0
      %s70 = sadd.s32 %s69, 1
      %s71 = scalar_select %p68, %s69, %s70
      %p74 = pneg %p68
      %p75 = scmp.eq.s32.totalorder %s10, 1
      %p76 = por %p74, %p75
      %p77 = scmp.ne.s32.totalorder %s69, %s72
      %p78 = scmp.eq.s32.totalorder %s10, 0
      %p79 = por %p77, %p78
      %p80 = scmp.ne.s32.totalorder %s69, %s72
      %p81 = scmp.eq.s32.totalorder %s15, 1
      %p82 = por %p80, %p81
      %p83 = scmp.ne.s32.totalorder %s72, %s73
      %p84 = scmp.eq.s32.totalorder %s15, 0
      %p85 = por %p83, %p84
      %p86 = scmp.ne.s32.totalorder %s72, %s73
      %p87 = scmp.eq.s32.totalorder %s16, 1
      %p88 = por %p86, %p87
      %p90 = scmp.ne.s32.totalorder %s73, %s89
      %p91 = scmp.eq.s32.totalorder %s16, 0
      %p92 = por %p90, %p91
      %s93 = ssub.s32 %s18, %s32
      %p94 = scmp.eq.s32.totalorder %s93, 0
      %s96 = sadd.s32 %s95, 1
      %s97 = scalar_select %p94, %s95, %s96
      %p100 = pneg %p94
      %p101 = scmp.eq.s32.totalorder %s10, 1
      %p102 = por %p100, %p101
      %p103 = scmp.ne.s32.totalorder %s95, %s98
      %p104 = scmp.eq.s32.totalorder %s10, 0
      %p105 = por %p103, %p104
      %p106 = scmp.ne.s32.totalorder %s95, %s98
      %p107 = scmp.eq.s32.totalorder %s15, 1
      %p108 = por %p106, %p107
      %p109 = scmp.ne.s32.totalorder %s98, %s99
      %p110 = scmp.eq.s32.totalorder %s15, 0
      %p111 = por %p109, %p110
      %p112 = scmp.ne.s32.totalorder %s98, %s99
      %p113 = scmp.eq.s32.totalorder %s16, 1
      %p114 = por %p112, %p113
      %p116 = scmp.ne.s32.totalorder %s99, %s115
      %p117 = scmp.eq.s32.totalorder %s16, 0
      %p118 = por %p116, %p117
      %s119 = ssub.s32 %s17, %s36
      %s120 = ssub.s32 %s18, %s32
      %s121 = sor.u32 %s119, %s120
      %p122 = scmp.eq.s32.totalorder %s121, 0
      %s124 = sadd.s32 %s123, 1
      %s125 = scalar_select %p122, %s123, %s124
      %p128 = pneg %p122
      %p129 = scmp.eq.s32.totalorder %s10, 1
      %p130 = por %p128, %p129
      %p131 = scmp.ne.s32.totalorder %s123, %s126
      %p132 = scmp.eq.s32.totalorder %s10, 0
      %p133 = por %p131, %p132
      %p134 = scmp.ne.s32.totalorder %s123, %s126
      %p135 = scmp.eq.s32.totalorder %s15, 1
      %p136 = por %p134, %p135
      %p137 = scmp.ne.s32.totalorder %s126, %s127
      %p138 = scmp.eq.s32.totalorder %s15, 0
      %p139 = por %p137, %p138
      %p140 = scmp.ne.s32.totalorder %s126, %s127
      %p141 = scmp.eq.s32.totalorder %s16, 1
      %p142 = por %p140, %p141
      %p144 = scmp.ne.s32.totalorder %s127, %s143
      %p145 = scmp.eq.s32.totalorder %s16, 0
      %p146 = por %p144, %p145
      %p147 = scmp.le.s32.totalorder 1, %s10
      %p148 = scmp.lt.s32.totalorder %s10, 3
      %p149 = pnand %p147, %p148
      %p150 = pneg %p149
      // Predicated region
      $region9: #{attention_forward.5} parent=5 // pred_check
        _
      $region10: #{attention_forward.5} parent=5 // pred_check_branch
        %152 = sbr.rel (%p149) target = $region12
      $region11: #{attention_forward.5} parent=5 // pred_region
        %s153 = ssub.s32 %s10, 1
        // Predicated region
        $region13: #{attention_forward.5} parent=11 // pred_check
          %p154 = pneg %p111
        $region14: #{attention_forward.5} parent=11 // pred_check_branch
          %156 = sbr.rel (%p154) target = $region16
        $region15: #{attention_forward.5} parent=11 // pred_region
          %p157 = scmp.lt.s32.totalorder %s21, 0
          %s158 = scalar_select %p157, %s21, 0
          %s159 = scalar_lea.vmem %s2, %s158
        $region16: #{attention_forward.5} parent=11 // pred_fallthru
          _
      $region12: #{attention_forward.5} parent=5 // pred_fallthru
        _
      %p160 = scmp.lt.s32.totalorder %s10, 2
      // Predicated region
      $region17: #{attention_forward.5} parent=5 // pred_check
        %p161 = pneg %p160
      $region18: #{attention_forward.5} parent=5 // pred_check_branch
        %163 = sbr.rel (%p161) target = $region20
      $region19: #{attention_forward.5} parent=5 // pred_region
        // Predicated region
        $region21: #{attention_forward.5} parent=19 // pred_check
          %p164 = pneg %p51
        $region22: #{attention_forward.5} parent=19 // pred_check_branch
          %166 = sbr.rel (%p164) target = $region24
        $region23: #{attention_forward.5} parent=19 // pred_region
          %s167 = sand.u32 %s41, 1
          %s168 = sand.u32 %s41, 1
          %s169 = smul.addr %s168, 16
          %s170 = scalar_lea.vmem [#allocation3], %s169
          %s171 = smul.u32 2, %s17
          %s172 = smul.u32 2, %s19
          %s173 = smul.addr %s171, 4
          %s174 = sadd.s32 %s172, %s173
          %s175 = smul.addr %s174, 4
          %s176 = scalar_lea.vmem %s0, %s175
          // Predicated region
          $region25: #{attention_forward.5} parent=23 // pred_check
            _
          $region26: #{attention_forward.5} parent=23 // pred_check_branch
            %178 = sbr.rel (0) target = $region28
          $region27: #{attention_forward.5} parent=23 // pred_region
            // Predicated region
            $region29: #{attention_forward.5} parent=27 // pred_check
              _
            $region30: #{attention_forward.5} parent=27 // pred_check_branch
              %180 = sbr.rel (0) target = $region32
            $region31: #{attention_forward.5} parent=27 // pred_region
              // Predicated region
              $region44: #{attention_forward.5} parent=31 // pred_check
                _
              $region45: #{attention_forward.5} parent=31 // pred_check_branch
                %197 = sbr.rel (0) target = $region47
              $region46: #{attention_forward.5} parent=31 // pred_region
                loop: start=0, step=1, limit=1
                $region48: #{attention_forward.5} parent=46 // loop_pre_header
                  _
                $region49: #{attention_forward.5} parent=46 // loop_header
                  %s199 = sphi 0, %s203
                  %p200 = scmp.ge.s32.totalorder %s199, 1
                  %s204 = sphi %s176, %s176
                  %s205 = sphi %s170, %s170
                $region50: #{attention_forward.5} parent=46 // loop_header_branch
                  %202 = sbr.rel (%p200) target = $region54
                $region51: #{attention_forward.5} parent=46 // loop_body
                  %v206 = vld [vmem:[%s204] sm:$0xff]
                  %207 = vst [vmem:[%s205] sm:$0xff] %v206
                  %v208 = vld [vmem:[%s204 + $0x10] sm:$0xff]
                  %209 = vst [vmem:[%s205 + $0x8] sm:$0xff] %v208
                $region52: #{attention_forward.5} parent=46 // loop_footer
                  %s203 = sadd.s32 1, %s199
                $region53: #{attention_forward.5} parent=46 // loop_footer_branch
                  %198 = sbr.rel target = $region49
                $region54: #{attention_forward.5} parent=46 // loop_exit
                  _
              $region47: #{attention_forward.5} parent=31 // pred_fallthru
                _
              // Predicated region
              $region55: #{attention_forward.5} parent=31 // pred_check
                _
              $region56: #{attention_forward.5} parent=31 // pred_check_branch
                %211 = sbr.rel target = $region58
              $region57: #{attention_forward.5} parent=31 // pred_region
                _
              $region58: #{attention_forward.5} parent=31 // pred_fallthru
                _
            $region32: #{attention_forward.5} parent=27 // pred_fallthru
              _
            // Predicated region
            $region33: #{attention_forward.5} parent=27 // pred_check
              _
            $region34: #{attention_forward.5} parent=27 // pred_check_branch
              %182 = sbr.rel target = $region36
            $region35: #{attention_forward.5} parent=27 // pred_region
              loop: start=0, step=1, limit=1
              $region37: #{attention_forward.5} parent=35 // loop_pre_header
                _
              $region38: #{attention_forward.5} parent=35 // loop_header
                %s185 = sphi 0, %s189
                %p186 = scmp.ge.s32.totalorder %s185, 1
                %s190 = sphi %s176, %s176
                %s191 = sphi %s170, %s170
              $region39: #{attention_forward.5} parent=35 // loop_header_branch
                %188 = sbr.rel (%p186) target = $region43
              $region40: #{attention_forward.5} parent=35 // loop_body
                %v192 = vld [vmem:[%s190] sm:$0xff]
                %193 = vst [vmem:[%s191] sm:$0xff] %v192
                %v194 = vld [vmem:[%s190 + $0x10] sm:$0xff]
                %195 = vst [vmem:[%s191 + $0x8] sm:$0xff] %v194
              $region41: #{attention_forward.5} parent=35 // loop_footer
                %s189 = sadd.s32 1, %s185
              $region42: #{attention_forward.5} parent=35 // loop_footer_branch
                %184 = sbr.rel target = $region38
              $region43: #{attention_forward.5} parent=35 // loop_exit
                _
            $region36: #{attention_forward.5} parent=27 // pred_fallthru
              _
          $region28: #{attention_forward.5} parent=23 // pred_fallthru
            _
          %212 = vnop
        $region24: #{attention_forward.5} parent=19 // pred_fallthru
          _
        // Predicated region
        $region59: #{attention_forward.5} parent=19 // pred_check
          %p213 = pneg %p79
        $region60: #{attention_forward.5} parent=19 // pred_check_branch
          %215 = sbr.rel (%p213) target = $region62
        $region61: #{attention_forward.5} parent=19 // pred_region
          %s216 = smul.u32 32, %s19
          %p217 = scmp.lt.s32.totalorder %s216, 63
          %s218 = scalar_select %p217, %s216, 63
          %p219 = scmp.lt.s32.totalorder %s18, 0
          %s220 = scalar_select %p219, %s18, 0
          %s221 = sadd.s32 %s220, %s218
          %s222 = smul.addr %s221, 4
          %s223 = scalar_lea.vmem %s1, %s222
          %s224 = smul.u32 32, %s19
        $region62: #{attention_forward.5} parent=19 // pred_fallthru
          _
      $region20: #{attention_forward.5} parent=5 // pred_fallthru
        _
      %p225 = scmp.le.s32.totalorder 1, %s10
      %p226 = scmp.lt.s32.totalorder %s10, 3
      %p227 = pnand %p225, %p226
      %p228 = pneg %p227
      // Predicated region
      $region63: #{attention_forward.5} parent=5 // pred_check
        _
      $region64: #{attention_forward.5} parent=5 // pred_check_branch
        %230 = sbr.rel (%p227) target = $region66
      $region65: #{attention_forward.5} parent=5 // pred_region
        %s231 = ssub.s32 %s10, 1
        %s232 = sand.u32 %s44, 1
        %s233 = sand.u32 %s44, 1
        %s234 = smul.addr %s233, 16
        %s235 = scalar_lea.vmem [#allocation3], %s234
        // Predicated region
        $region67: #{attention_forward.5} parent=65 // pred_check
          %p236 = pneg %p57
        $region68: #{attention_forward.5} parent=65 // pred_check_branch
          %238 = sbr.rel (%p236) target = $region70
        $region69: #{attention_forward.5} parent=65 // pred_region
          _
        $region70: #{attention_forward.5} parent=65 // pred_fallthru
          _
        %s239 = sand.u32 %s44, 1
        %s240 = sand.u32 %s44, 1
        %s241 = smul.addr %s240, 16
        %s242 = scalar_lea.vmem [#allocation3], %s241
        %p243 = pneg %p57
        %p244 = pneg %p54
        %s245 = smul.u32 32, %s22
        %p246 = scmp.lt.s32.totalorder %s245, 63
        %s247 = scalar_select %p246, %s245, 63
        %p248 = scmp.lt.s32.totalorder %s21, 0
        %s249 = scalar_select %p248, %s21, 0
        %s250 = sadd.s32 %s249, %s247
        %s251 = smul.addr %s250, 4
        %s252 = scalar_lea.vmem %s1, %s251
        %p253 = pneg %p85
        %p254 = pneg %p82
        %p255 = scmp.lt.s32.totalorder %s21, 0
        %s256 = scalar_select %p255, %s21, 0
        %s257 = scalar_lea.vmem %s2, %s256
        %p258 = pneg %p111
        %p259 = pneg %p108
        %p260 = pneg %p139
        %p261 = pneg %p136
        %s262 = smul.u32 2, %s20
        %s263 = smul.u32 2, %s22
        %s264 = smul.u32 32, %s22
        %p265 = scmp.lt.s32.totalorder %s264, 63
        %s266 = scalar_select %p265, %s264, 63
        %p267 = scmp.lt.s32.totalorder %s21, 0
        %s268 = scalar_select %p267, %s21, 0
        %s269 = sadd.s32 %s268, %s266
        %s270 = smul.addr %s269, 4
        %s271 = scalar_lea.vmem %s1, %s270
        %s272 = smul.u32 32, %s22
        %p273 = scmp.lt.s32.totalorder %s21, 0
        %s274 = scalar_select %p273, %s21, 0
        %s275 = scalar_lea.vmem %s2, %s274
        %s276 = smul.u32 2, %s20
        %p278 = scmp.eq.s32.totalorder %s22, 0
        // Predicated region
        $region71: #{attention_forward.5} parent=65 // pred_check
          %p279 = pneg %p278
        $region72: #{attention_forward.5} parent=65 // pred_check_branch
          %281 = sbr.rel (%p279) target = $region74
        $region73: #{attention_forward.5} parent=65 // pred_region
          %vm282 = vcmask 261120
          %283 = vst.msk [vmem:[#allocation2] sm:$0xff] %vm282, 0.0
          %284 = vst.msk [vmem:[#allocation2 + $0x8] sm:$0xff] %vm282, 0.0
        $region74: #{attention_forward.5} parent=65 // pred_fallthru
          _
        %v285 = vld [vmem:[#allocation2] sm:$0xff]
        %v286 = vld [vmem:[#allocation2 + $0x8] sm:$0xff]
        %v287 = vld [vmem:[%s235] sm:$0xff]
        %v288 = vld [vmem:[%s235 + $0x8] sm:$0xff]
        %v289 = vld [vmem:[%s271] sm:$0xf]
        %v290 = vld [vmem:[%s271 + $0x4] sm:$0xf]
        %v291 = vld [vmem:[%s271 + $0x8] sm:$0xf]
        %v292 = vld [vmem:[%s271 + $0xc] sm:$0xf]
        %v293 = vld [vmem:[%s271 + $0x10] sm:$0xf]
        %v294 = vld [vmem:[%s271 + $0x14] sm:$0xf]
        %v295 = vld [vmem:[%s271 + $0x18] sm:$0xf]
        %v296 = vld [vmem:[%s271 + $0x1c] sm:$0xf]
        %v297 = vld [vmem:[%s271 + $0x20] sm:$0xf]
        %v298 = vld [vmem:[%s271 + $0x24] sm:$0xf]
        %v299 = vld [vmem:[%s271 + $0x28] sm:$0xf]
        %v300 = vld [vmem:[%s271 + $0x2c] sm:$0xf]
        %v301 = vld [vmem:[%s271 + $0x30] sm:$0xf]
        %v302 = vld [vmem:[%s271 + $0x34] sm:$0xf]
        %v303 = vld [vmem:[%s271 + $0x38] sm:$0xf]
        %v304 = vld [vmem:[%s271 + $0x3c] sm:$0xf]
        %v305 = vld [vmem:[%s271 + $0x40] sm:$0xf]
        %v306 = vld [vmem:[%s271 + $0x44] sm:$0xf]
        %v307 = vld [vmem:[%s271 + $0x48] sm:$0xf]
        %v308 = vld [vmem:[%s271 + $0x4c] sm:$0xf]
        %v309 = vld [vmem:[%s271 + $0x50] sm:$0xf]
        %v310 = vld [vmem:[%s271 + $0x54] sm:$0xf]
        %v311 = vld [vmem:[%s271 + $0x58] sm:$0xf]
        %v312 = vld [vmem:[%s271 + $0x5c] sm:$0xf]
        %v313 = vld [vmem:[%s271 + $0x60] sm:$0xf]
        %v314 = vld [vmem:[%s271 + $0x64] sm:$0xf]
        %v315 = vld [vmem:[%s271 + $0x68] sm:$0xf]
        %v316 = vld [vmem:[%s271 + $0x6c] sm:$0xf]
        %v317 = vld [vmem:[%s271 + $0x70] sm:$0xf]
        %v318 = vld [vmem:[%s271 + $0x74] sm:$0xf]
        %v319 = vld [vmem:[%s271 + $0x78] sm:$0xf]
        %v320 = vld [vmem:[%s271 + $0x7c] sm:$0xf]
        %v323 = vunpack.c.l.b16 %v287
        %v324 = vunpack.c.h.b16 %v287
        %v325 = vunpack.c.l.b16 %v288
        %v326 = vunpack.c.h.b16 %v288
        %v327 = vpack.c.b16 %v325, %v323
        %v328 = vpack.c.b16 %v326, %v324
        %v363 = vunpack.c.l.b16 %v289
        %v364 = vunpack.c.l.b16 %v290
        %v365 = vunpack.c.l.b16 %v291
        %v366 = vunpack.c.l.b16 %v292
        %v367 = vunpack.c.l.b16 %v293
        %v368 = vunpack.c.l.b16 %v294
        %v369 = vunpack.c.l.b16 %v295
        %v370 = vunpack.c.l.b16 %v296
        %v371 = vunpack.c.l.b16 %v297
        %v372 = vunpack.c.l.b16 %v298
        %v373 = vunpack.c.l.b16 %v299
        %v374 = vunpack.c.l.b16 %v300
        %v375 = vunpack.c.l.b16 %v301
        %v376 = vunpack.c.l.b16 %v302
        %v377 = vunpack.c.l.b16 %v303
        %v378 = vunpack.c.l.b16 %v304
        %v379 = vunpack.c.l.b16 %v305
        %v380 = vunpack.c.l.b16 %v306
        %v381 = vunpack.c.l.b16 %v307
        %v382 = vunpack.c.l.b16 %v308
        %v383 = vunpack.c.l.b16 %v309
        %v384 = vunpack.c.l.b16 %v310
        %v385 = vunpack.c.l.b16 %v311
        %v386 = vunpack.c.l.b16 %v312
        %v387 = vunpack.c.l.b16 %v313
        %v388 = vunpack.c.l.b16 %v314
        %v389 = vunpack.c.l.b16 %v315
        %v390 = vunpack.c.l.b16 %v316
        %v391 = vunpack.c.l.b16 %v317
        %v392 = vunpack.c.l.b16 %v318
        %v393 = vunpack.c.l.b16 %v319
        %v394 = vunpack.c.l.b16 %v320
        %v395 = vpack.c.b16 %v364, %v363
        %v396 = vpack.c.b16 %v366, %v365
        %v397 = vpack.c.b16 %v368, %v367
        %v398 = vpack.c.b16 %v370, %v369
        %v399 = vpack.c.b16 %v372, %v371
        %v400 = vpack.c.b16 %v374, %v373
        %v401 = vpack.c.b16 %v376, %v375
        %v402 = vpack.c.b16 %v378, %v377
        %v403 = vpack.c.b16 %v380, %v379
        %v404 = vpack.c.b16 %v382, %v381
        %v405 = vpack.c.b16 %v384, %v383
        %v406 = vpack.c.b16 %v386, %v385
        %v407 = vpack.c.b16 %v388, %v387
        %v408 = vpack.c.b16 %v390, %v389
        %v409 = vpack.c.b16 %v392, %v391
        %v410 = vpack.c.b16 %v394, %v393
        %427 = vmatprep.subr.bf16.mxu0 0
        %428 = vmatpush1.bf16.msra.mxu0 %v395
        %429 = vmatprep.subr.bf16.mxu0 0
        %430 = vmatpush1.bf16.msra.mxu0 %v396
        %431 = vmatprep.subr.bf16.mxu0 0
        %432 = vmatpush1.bf16.msra.mxu0 %v397
        %433 = vmatprep.subr.bf16.mxu0 0
        %434 = vmatpush1.bf16.msra.mxu0 %v398
        %435 = vmatprep.subr.bf16.mxu0 0
        %436 = vmatpush1.bf16.msra.mxu0 %v399
        %437 = vmatprep.subr.bf16.mxu0 0
        %438 = vmatpush1.bf16.msra.mxu0 %v400
        %439 = vmatprep.subr.bf16.mxu0 0
        %440 = vmatpush1.bf16.msra.mxu0 %v401
        %441 = vmatprep.subr.bf16.mxu0 0
        %442 = vmatpush1.bf16.msra.mxu0 %v402
        %443 = vmatprep.subr.bf16.mxu0 0
        %444 = vmatpush1.bf16.msra.mxu0 %v403
        %445 = vmatprep.subr.bf16.mxu0 0
        %446 = vmatpush1.bf16.msra.mxu0 %v404
        %447 = vmatprep.subr.bf16.mxu0 0
        %448 = vmatpush1.bf16.msra.mxu0 %v405
        %449 = vmatprep.subr.bf16.mxu0 0
        %450 = vmatpush1.bf16.msra.mxu0 %v406
        %451 = vmatprep.subr.bf16.mxu0 0
        %452 = vmatpush1.bf16.msra.mxu0 %v407
        %453 = vmatprep.subr.bf16.mxu0 0
        %454 = vmatpush1.bf16.msra.mxu0 %v408
        %455 = vmatprep.subr.bf16.mxu0 0
        %456 = vmatpush1.bf16.msra.mxu0 %v409
        %457 = vmatprep.subr.bf16.mxu0 0
        %458 = vmatpush1.bf16.msra.mxu0 %v410
        %459 = vmatprep.mubr.bf16.mxu0 %v328
        %460 = vmatmul.mubr.bf16.gmra.mrb[0].mxu0 %v327
        %v461 = vpop.f32.mrb[0].mxu0
        %v462 = vadd.f32 0.0, %v461
        %v463 = vpop.f32.mrb[0].mxu0
        %v464 = vpop.f32.mrb[0].mxu0
        %v465 = vadd.f32 0.0, %v464
        %v466 = vpop.f32.mrb[0].mxu0
        %467 = vdwg.mxu0
        %v468 = vadd.f32 %v285, %v462
        %v469 = vadd.f32 %v286, %v465
        %vm470 = vcmask 261120
        %471 = vst.msk [vmem:[#allocation2] sm:$0xff] %vm470, %v468
        %472 = vst.msk [vmem:[#allocation2 + $0x8] sm:$0xff] %vm470, %v469
        %p473 = scmp.eq.s32.totalorder %s22, 1
        // Predicated region
        $region75: #{attention_forward.5} parent=65 // pred_check
          %p474 = pneg %p473
        $region76: #{attention_forward.5} parent=65 // pred_check_branch
          %476 = sbr.rel (%p474) target = $region78
        $region77: #{attention_forward.5} parent=65 // pred_region
          %v477 = vld [vmem:[#allocation2] sm:$0xff]
          %v478 = vld [vmem:[#allocation2 + $0x8] sm:$0xff]
          %v479 = vld [vmem:[%s275] sm:$0x1]
          %v481 = vlaneseq
          %v482 = vshrl.u32 %v481, 7
          %v483 = vsub.s32 0, %v482
          %v484 = vrot.slane %v479, %v483
          %v486 = vadd.f32 %v477, %v484
          %v487 = vadd.f32 %v478, %v484
          %488 = vst.msk [vmem:[#allocation4] sm:$0xff] %vm470, %v486
          %489 = vst.msk [vmem:[#allocation4 + $0x8] sm:$0xff] %vm470, %v487
        $region78: #{attention_forward.5} parent=65 // pred_fallthru
          _
        // Predicated region
        $region79: #{attention_forward.5} parent=65 // pred_check
          %p490 = pneg %p136
        $region80: #{attention_forward.5} parent=65 // pred_check_branch
          %492 = sbr.rel (%p490) target = $region82
        $region81: #{attention_forward.5} parent=65 // pred_region
          %s493 = smul.u32 2, %s20
          %s495 = ssub.s32 256, 256
          %496 = vsyncadd [#allocation5], %s495
          %s497 = sadd.s32 %s21, %s493
          %s498 = smul.addr %s497, 128
          %s499 = scalar_lea.hbm %s3, %s498
          %s500 = sshll.u32 [#allocation4], 4
          %s501 = int_to_ptr.vmem [resolvable:$true] %s500
          %506 = dma.vmem_to_hbm [thread:$0]  %s501, 256, %s499, [#allocation5], 128, 128, 8
        $region82: #{attention_forward.5} parent=65 // pred_fallthru
          _
        // Predicated region
        $region83: #{attention_forward.5} parent=65 // pred_check
          %p507 = pneg %p136
        $region84: #{attention_forward.5} parent=65 // pred_check_branch
          %509 = sbr.rel (%p507) target = $region86
        $region85: #{attention_forward.5} parent=65 // pred_region
          %510 = dma.done [#allocation5], 256
        $region86: #{attention_forward.5} parent=65 // pred_fallthru
          _
      $region66: #{attention_forward.5} parent=5 // pred_fallthru
        _
      %p511 = scmp.le.s32.totalorder 2, %s10
      // Predicated region
      $region87: #{attention_forward.5} parent=5 // pred_check
        %p512 = pneg %p511
      $region88: #{attention_forward.5} parent=5 // pred_check_branch
        %514 = sbr.rel (%p512) target = $region90
      $region89: #{attention_forward.5} parent=5 // pred_region
        %s515 = ssub.s32 %s10, 2
      $region90: #{attention_forward.5} parent=5 // pred_fallthru
        _
    $region6: #{attention_forward.5} parent=1 // loop_footer
      %s14 = sadd.s32 1, %s10
    $region7: #{attention_forward.5} parent=1 // loop_footer_branch
      %9 = sbr.rel target = $region3
    $region8: #{attention_forward.5} parent=1 // loop_exit
      _
    %516 = vsyncpa [#allocation5], 1
    %s517 = scalar_lea.sflag [#allocation5], 1
    %518 = vsyncpa %s517, 1

// kernel: attention_forward.4
$region0: #{attention_forward.4}
  #allocation0 [shape = 'u32[]', space=smem, size = 0x4, offset = 0x4, fixed_abs, tag = 'smem constant byte address 0x4 - core index']
  #allocation1 [shape = 'u32[144,128]{1,0:T(1,128)}', space=vmem, size = 0x12000, scoped, tag = 'internal scratch']
  #allocation2 [shape = 'bf16[8,8,64]{2,1,0:T(8,128)(2,1)}', space=vmem, size = 0x4000, scoped, tag = 'scratch operand']
  #allocation3 [shape = 'f32[8,8,1]{2,1,0:T(8,128)}', space=vmem, size = 0x8000, scoped, tag = 'scratch operand']
  #allocation4 [shape = 'f32[8,8,1]{2,1,0:T(8,128)}', space=vmem, size = 0x8000, scoped, tag = 'scratch operand']
  #allocation5 [shape = 'f32[8,8,64]{2,1,0:T(8,128)}', space=vmem, size = 0x8000, scoped, tag = 'scratch operand']
  %s0 = inlined_call_operand.vmem [shape: bf16[2,8,24,64], index: 0, kind: input, shape index: {}, may-alias: {0,1,2}]
  %s1 = inlined_call_operand.vmem [shape: bf16[2,8,24,64], index: 1, kind: input, shape index: {}, may-alias: {0,1,2}]
  %s2 = inlined_call_operand.vmem [shape: bf16[2,8,24,64], index: 2, kind: input, shape index: {}, may-alias: {0,1,2}]
  %s3 = inlined_call_operand.vmem [shape: bf16[2,8,8,64], index: 3, kind: output, shape index: {}]
  %s4 = sld [smem:[#allocation0]]
  $region176: #{attention_forward.4} parent=0
    _
  %s6 = ssub.s32 1, %s4
  %s7 = scalar_select 0, %s6, %s4
  $region1: #{attention_forward.4} parent=0
    #allocation6 [shape = 'u8[32768]{0}', space=vmem, size = 0x8000, scoped, tag = 'input window, operand 0']
    #allocation7 [shape = 'u8[32768]{0}', space=vmem, size = 0x8000, scoped, tag = 'input window, operand 1']
    #allocation8 [shape = 'u8[32768]{0}', space=vmem, size = 0x8000, scoped, tag = 'input window, operand 2']
    loop: start=0, step=1, limit=4
    $region2: #{attention_forward.4} parent=1 // loop_pre_header
      _
    $region3: #{attention_forward.4} parent=1 // loop_header
      %s9 = sphi 0, %s13
      %p10 = scmp.ge.s32.totalorder %s9, 4
      %s16 = sphi 0, %s35
      %s17 = sphi 0, %s31
      %s18 = sphi 0, %s27
      %s19 = sphi 0, %s16
      %s20 = sphi 0, %s17
      %s21 = sphi 0, %s18
      %s22 = sphi 0, %s19
      %s23 = sphi 0, %s20
      %s24 = sphi 0, %s21
      %s40 = sphi 0, %s42
      %s43 = sphi 0, %s40
      %s44 = sphi 0, %s43
      %s60 = sphi 0, %s44
      %s68 = sphi 0, %s70
      %s71 = sphi 0, %s68
      %s72 = sphi 0, %s71
      %s88 = sphi 0, %s72
      %s96 = sphi 0, %s98
      %s99 = sphi 0, %s96
      %s100 = sphi 0, %s99
      %s116 = sphi 0, %s100
      %s124 = sphi 0, %s126
      %s127 = sphi 0, %s124
      %s128 = sphi 0, %s127
      %s144 = sphi 0, %s128
    $region4: #{attention_forward.4} parent=1 // loop_header_branch
      %12 = sbr.rel (%p10) target = $region8
    $region5: #{attention_forward.4} parent=1 // loop_body
      %s14 = ssub.s32 %s9, 1
      %s15 = ssub.s32 %s9, 2
      %s25 = sadd.s32 1, %s18
      %p26 = scmp.ge.s32.totalorder %s25, 1
      %s27 = scalar_select %p26, 0, %s25
      %s28 = sadd.s32 1, %s17
      %s29 = scalar_select %p26, %s28, %s17
      %p30 = scmp.ge.s32.totalorder %s29, 1
      %s31 = scalar_select %p30, 0, %s29
      %s32 = sadd.s32 1, %s16
      %s33 = scalar_select %p30, %s32, %s16
      %p34 = scmp.ge.s32.totalorder %s33, 2
      %s35 = scalar_select %p34, 0, %s33
      %s36 = ssub.s32 %s16, %s35
      %s37 = ssub.s32 %s17, %s31
      %s38 = sor.u32 %s36, %s37
      %p39 = scmp.eq.s32.totalorder %s38, 0
      %s41 = sadd.s32 %s40, 1
      %s42 = scalar_select %p39, %s40, %s41
      %p45 = pneg %p39
      %p46 = scmp.eq.s32.totalorder %s9, 1
      %p47 = por %p45, %p46
      %p48 = scmp.ne.s32.totalorder %s40, %s43
      %p49 = scmp.eq.s32.totalorder %s9, 0
      %p50 = por %p48, %p49
      %p51 = scmp.ne.s32.totalorder %s40, %s43
      %p52 = scmp.eq.s32.totalorder %s14, 1
      %p53 = por %p51, %p52
      %p54 = scmp.ne.s32.totalorder %s43, %s44
      %p55 = scmp.eq.s32.totalorder %s14, 0
      %p56 = por %p54, %p55
      %p57 = scmp.ne.s32.totalorder %s43, %s44
      %p58 = scmp.eq.s32.totalorder %s15, 1
      %p59 = por %p57, %p58
      %p61 = scmp.ne.s32.totalorder %s44, %s60
      %p62 = scmp.eq.s32.totalorder %s15, 0
      %p63 = por %p61, %p62
      %s64 = ssub.s32 %s16, %s35
      %s65 = ssub.s32 %s18, %s27
      %s66 = sor.u32 %s64, %s65
      %p67 = scmp.eq.s32.totalorder %s66, 0
      %s69 = sadd.s32 %s68, 1
      %s70 = scalar_select %p67, %s68, %s69
      %p73 = pneg %p67
      %p74 = scmp.eq.s32.totalorder %s9, 1
      %p75 = por %p73, %p74
      %p76 = scmp.ne.s32.totalorder %s68, %s71
      %p77 = scmp.eq.s32.totalorder %s9, 0
      %p78 = por %p76, %p77
      %p79 = scmp.ne.s32.totalorder %s68, %s71
      %p80 = scmp.eq.s32.totalorder %s14, 1
      %p81 = por %p79, %p80
      %p82 = scmp.ne.s32.totalorder %s71, %s72
      %p83 = scmp.eq.s32.totalorder %s14, 0
      %p84 = por %p82, %p83
      %p85 = scmp.ne.s32.totalorder %s71, %s72
      %p86 = scmp.eq.s32.totalorder %s15, 1
      %p87 = por %p85, %p86
      %p89 = scmp.ne.s32.totalorder %s72, %s88
      %p90 = scmp.eq.s32.totalorder %s15, 0
      %p91 = por %p89, %p90
      %s92 = ssub.s32 %s16, %s35
      %s93 = ssub.s32 %s18, %s27
      %s94 = sor.u32 %s92, %s93
      %p95 = scmp.eq.s32.totalorder %s94, 0
      %s97 = sadd.s32 %s96, 1
      %s98 = scalar_select %p95, %s96, %s97
      %p101 = pneg %p95
      %p102 = scmp.eq.s32.totalorder %s9, 1
      %p103 = por %p101, %p102
      %p104 = scmp.ne.s32.totalorder %s96, %s99
      %p105 = scmp.eq.s32.totalorder %s9, 0
      %p106 = por %p104, %p105
      %p107 = scmp.ne.s32.totalorder %s96, %s99
      %p108 = scmp.eq.s32.totalorder %s14, 1
      %p109 = por %p107, %p108
      %p110 = scmp.ne.s32.totalorder %s99, %s100
      %p111 = scmp.eq.s32.totalorder %s14, 0
      %p112 = por %p110, %p111
      %p113 = scmp.ne.s32.totalorder %s99, %s100
      %p114 = scmp.eq.s32.totalorder %s15, 1
      %p115 = por %p113, %p114
      %p117 = scmp.ne.s32.totalorder %s100, %s116
      %p118 = scmp.eq.s32.totalorder %s15, 0
      %p119 = por %p117, %p118
      %s120 = ssub.s32 %s16, %s35
      %s121 = ssub.s32 %s17, %s31
      %s122 = sor.u32 %s120, %s121
      %p123 = scmp.eq.s32.totalorder %s122, 0
      %s125 = sadd.s32 %s124, 1
      %s126 = scalar_select %p123, %s124, %s125
      %p129 = pneg %p123
      %p130 = scmp.eq.s32.totalorder %s9, 1
      %p131 = por %p129, %p130
      %p132 = scmp.ne.s32.totalorder %s124, %s127
      %p133 = scmp.eq.s32.totalorder %s9, 0
      %p134 = por %p132, %p133
      %p135 = scmp.ne.s32.totalorder %s124, %s127
      %p136 = scmp.eq.s32.totalorder %s14, 1
      %p137 = por %p135, %p136
      %p138 = scmp.ne.s32.totalorder %s127, %s128
      %p139 = scmp.eq.s32.totalorder %s14, 0
      %p140 = por %p138, %p139
      %p141 = scmp.ne.s32.totalorder %s127, %s128
      %p142 = scmp.eq.s32.totalorder %s15, 1
      %p143 = por %p141, %p142
      %p145 = scmp.ne.s32.totalorder %s128, %s144
      %p146 = scmp.eq.s32.totalorder %s15, 0
      %p147 = por %p145, %p146
      %p148 = scmp.le.s32.totalorder 1, %s9
      %p149 = scmp.lt.s32.totalorder %s9, 3
      %p150 = pnand %p148, %p149
      %p151 = pneg %p150
      // Predicated region
      $region9: #{attention_forward.4} parent=5 // pred_check
        _
      $region10: #{attention_forward.4} parent=5 // pred_check_branch
        %153 = sbr.rel (%p150) target = $region12
      $region11: #{attention_forward.4} parent=5 // pred_region
        %s154 = ssub.s32 %s9, 1
      $region12: #{attention_forward.4} parent=5 // pred_fallthru
        _
      %p155 = scmp.lt.s32.totalorder %s9, 2
      // Predicated region
      $region13: #{attention_forward.4} parent=5 // pred_check
        %p156 = pneg %p155
      $region14: #{attention_forward.4} parent=5 // pred_check_branch
        %158 = sbr.rel (%p156) target = $region16
      $region15: #{attention_forward.4} parent=5 // pred_region
        // Predicated region
        $region17: #{attention_forward.4} parent=15 // pred_check
          %p159 = pneg %p50
        $region18: #{attention_forward.4} parent=15 // pred_check_branch
          %161 = sbr.rel (%p159) target = $region20
        $region19: #{attention_forward.4} parent=15 // pred_region
          %s162 = sand.u32 %s40, 1
          %s163 = sand.u32 %s40, 1
          %s164 = smul.addr %s163, 32
          %s165 = scalar_lea.vmem [#allocation6], %s164
          %s166 = smul.u32 8, %s17
          %s167 = smul.addr %s166, 3
          %s168 = smul.addr %s16, 24
          %s169 = sadd.s32 %s167, %s168
          %s170 = smul.addr %s169, 4
          %s171 = scalar_lea.vmem %s0, %s170
          // Predicated region
          $region21: #{attention_forward.4} parent=19 // pred_check
            _
          $region22: #{attention_forward.4} parent=19 // pred_check_branch
            %173 = sbr.rel (0) target = $region24
          $region23: #{attention_forward.4} parent=19 // pred_region
            // Predicated region
            $region25: #{attention_forward.4} parent=23 // pred_check
              _
            $region26: #{attention_forward.4} parent=23 // pred_check_branch
              %175 = sbr.rel target = $region28
            $region27: #{attention_forward.4} parent=23 // pred_region
              // Predicated region
              $region40: #{attention_forward.4} parent=27 // pred_check
                _
              $region41: #{attention_forward.4} parent=27 // pred_check_branch
                %204 = sbr.rel (0) target = $region43
              $region42: #{attention_forward.4} parent=27 // pred_region
                loop: start=0, step=1, limit=1
                $region44: #{attention_forward.4} parent=42 // loop_pre_header
                  _
                $region45: #{attention_forward.4} parent=42 // loop_header
                  %s206 = sphi 0, %s210
                  %p207 = scmp.ge.s32.totalorder %s206, 1
                  %s211 = sphi %s171, %s171
                  %s212 = sphi %s165, %s165
                $region46: #{attention_forward.4} parent=42 // loop_header_branch
                  %209 = sbr.rel (%p207) target = $region50
                $region47: #{attention_forward.4} parent=42 // loop_body
                  _
                $region48: #{attention_forward.4} parent=42 // loop_footer
                  %s210 = sadd.s32 1, %s206
                $region49: #{attention_forward.4} parent=42 // loop_footer_branch
                  %205 = sbr.rel target = $region45
                $region50: #{attention_forward.4} parent=42 // loop_exit
                  _
                loop: start=0, step=1, limit=1
                $region51: #{attention_forward.4} parent=42 // loop_pre_header
                  _
                $region52: #{attention_forward.4} parent=42 // loop_header
                  %s215 = sphi 0, %s219
                  %p216 = scmp.ge.s32.totalorder %s215, 1
                  %s220 = sphi %s171, %s171
                  %s221 = sphi %s165, %s165
                $region53: #{attention_forward.4} parent=42 // loop_header_branch
                  %218 = sbr.rel (%p216) target = $region57
                $region54: #{attention_forward.4} parent=42 // loop_body
                  %v222 = vld [vmem:[%s220] sm:$0xf]
                  %223 = vst [vmem:[%s221] sm:$0xf] %v222
                  %v224 = vld [vmem:[%s220 + $0xc] sm:$0xf]
                  %225 = vst [vmem:[%s221 + $0x4] sm:$0xf] %v224
                  %v226 = vld [vmem:[%s220 + $0x18] sm:$0xf]
                  %227 = vst [vmem:[%s221 + $0x8] sm:$0xf] %v226
                  %v228 = vld [vmem:[%s220 + $0x24] sm:$0xf]
                  %229 = vst [vmem:[%s221 + $0xc] sm:$0xf] %v228
                  %v230 = vld [vmem:[%s220 + $0x30] sm:$0xf]
                  %231 = vst [vmem:[%s221 + $0x10] sm:$0xf] %v230
                  %v232 = vld [vmem:[%s220 + $0x3c] sm:$0xf]
                  %233 = vst [vmem:[%s221 + $0x14] sm:$0xf] %v232
                  %v234 = vld [vmem:[%s220 + $0x48] sm:$0xf]
                  %235 = vst [vmem:[%s221 + $0x18] sm:$0xf] %v234
                  %v236 = vld [vmem:[%s220 + $0x54] sm:$0xf]
                  %237 = vst [vmem:[%s221 + $0x1c] sm:$0xf] %v236
                $region55: #{attention_forward.4} parent=42 // loop_footer
                  %s219 = sadd.s32 1, %s215
                $region56: #{attention_forward.4} parent=42 // loop_footer_branch
                  %214 = sbr.rel target = $region52
                $region57: #{attention_forward.4} parent=42 // loop_exit
                  _
              $region43: #{attention_forward.4} parent=27 // pred_fallthru
                _
            $region28: #{attention_forward.4} parent=23 // pred_fallthru
              _
            // Predicated region
            $region29: #{attention_forward.4} parent=23 // pred_check
              _
            $region30: #{attention_forward.4} parent=23 // pred_check_branch
              %177 = sbr.rel (0) target = $region32
            $region31: #{attention_forward.4} parent=23 // pred_region
              loop: start=0, step=1, limit=1
              $region33: #{attention_forward.4} parent=31 // loop_pre_header
                _
              $region34: #{attention_forward.4} parent=31 // loop_header
                %s180 = sphi 0, %s184
                %p181 = scmp.ge.s32.totalorder %s180, 1
                %s185 = sphi %s171, %s171
                %s186 = sphi %s165, %s165
              $region35: #{attention_forward.4} parent=31 // loop_header_branch
                %183 = sbr.rel (%p181) target = $region39
              $region36: #{attention_forward.4} parent=31 // loop_body
                %v187 = vld [vmem:[%s185] sm:$0xf]
                %188 = vst [vmem:[%s186] sm:$0xf] %v187
                %v189 = vld [vmem:[%s185 + $0xc] sm:$0xf]
                %190 = vst [vmem:[%s186 + $0x4] sm:$0xf] %v189
                %v191 = vld [vmem:[%s185 + $0x18] sm:$0xf]
                %192 = vst [vmem:[%s186 + $0x8] sm:$0xf] %v191
                %v193 = vld [vmem:[%s185 + $0x24] sm:$0xf]
                %194 = vst [vmem:[%s186 + $0xc] sm:$0xf] %v193
                %v195 = vld [vmem:[%s185 + $0x30] sm:$0xf]
                %196 = vst [vmem:[%s186 + $0x10] sm:$0xf] %v195
                %v197 = vld [vmem:[%s185 + $0x3c] sm:$0xf]
                %198 = vst [vmem:[%s186 + $0x14] sm:$0xf] %v197
                %v199 = vld [vmem:[%s185 + $0x48] sm:$0xf]
                %200 = vst [vmem:[%s186 + $0x18] sm:$0xf] %v199
                %v201 = vld [vmem:[%s185 + $0x54] sm:$0xf]
                %202 = vst [vmem:[%s186 + $0x1c] sm:$0xf] %v201
              $region37: #{attention_forward.4} parent=31 // loop_footer
                %s184 = sadd.s32 1, %s180
              $region38: #{attention_forward.4} parent=31 // loop_footer_branch
                %179 = sbr.rel target = $region34
              $region39: #{attention_forward.4} parent=31 // loop_exit
                _
            $region32: #{attention_forward.4} parent=23 // pred_fallthru
              _
          $region24: #{attention_forward.4} parent=19 // pred_fallthru
            _
          %238 = vnop
        $region20: #{attention_forward.4} parent=15 // pred_fallthru
          _
        // Predicated region
        $region58: #{attention_forward.4} parent=15 // pred_check
          %p239 = pneg %p78
        $region59: #{attention_forward.4} parent=15 // pred_check_branch
          %241 = sbr.rel (%p239) target = $region61
        $region60: #{attention_forward.4} parent=15 // pred_region
          %s242 = sand.u32 %s68, 1
          %s243 = sand.u32 %s68, 1
          %s244 = smul.addr %s243, 32
          %s245 = scalar_lea.vmem [#allocation7], %s244
          %s246 = smul.u32 8, %s18
          %s247 = smul.addr %s246, 3
          %s248 = sadd.s32 1, %s247
          %s249 = smul.addr %s16, 24
          %s250 = sadd.s32 %s248, %s249
          %s251 = smul.addr %s250, 4
          %s252 = scalar_lea.vmem %s1, %s251
          // Predicated region
          $region62: #{attention_forward.4} parent=60 // pred_check
            _
          $region63: #{attention_forward.4} parent=60 // pred_check_branch
            %254 = sbr.rel (0) target = $region65
          $region64: #{attention_forward.4} parent=60 // pred_region
            // Predicated region
            $region66: #{attention_forward.4} parent=64 // pred_check
              _
            $region67: #{attention_forward.4} parent=64 // pred_check_branch
              %256 = sbr.rel target = $region69
            $region68: #{attention_forward.4} parent=64 // pred_region
              // Predicated region
              $region81: #{attention_forward.4} parent=68 // pred_check
                _
              $region82: #{attention_forward.4} parent=68 // pred_check_branch
                %285 = sbr.rel (0) target = $region84
              $region83: #{attention_forward.4} parent=68 // pred_region
                loop: start=0, step=1, limit=1
                $region85: #{attention_forward.4} parent=83 // loop_pre_header
                  _
                $region86: #{attention_forward.4} parent=83 // loop_header
                  %s287 = sphi 0, %s291
                  %p288 = scmp.ge.s32.totalorder %s287, 1
                  %s292 = sphi %s252, %s252
                  %s293 = sphi %s245, %s245
                $region87: #{attention_forward.4} parent=83 // loop_header_branch
                  %290 = sbr.rel (%p288) target = $region91
                $region88: #{attention_forward.4} parent=83 // loop_body
                  _
                $region89: #{attention_forward.4} parent=83 // loop_footer
                  %s291 = sadd.s32 1, %s287
                $region90: #{attention_forward.4} parent=83 // loop_footer_branch
                  %286 = sbr.rel target = $region86
                $region91: #{attention_forward.4} parent=83 // loop_exit
                  _
                loop: start=0, step=1, limit=1
                $region92: #{attention_forward.4} parent=83 // loop_pre_header
                  _
                $region93: #{attention_forward.4} parent=83 // loop_header
                  %s296 = sphi 0, %s300
                  %p297 = scmp.ge.s32.totalorder %s296, 1
                  %s301 = sphi %s252, %s252
                  %s302 = sphi %s245, %s245
                $region94: #{attention_forward.4} parent=83 // loop_header_branch
                  %299 = sbr.rel (%p297) target = $region98
                $region95: #{attention_forward.4} parent=83 // loop_body
                  %v303 = vld [vmem:[%s301] sm:$0xf]
                  %304 = vst [vmem:[%s302] sm:$0xf] %v303
                  %v305 = vld [vmem:[%s301 + $0xc] sm:$0xf]
                  %306 = vst [vmem:[%s302 + $0x4] sm:$0xf] %v305
                  %v307 = vld [vmem:[%s301 + $0x18] sm:$0xf]
                  %308 = vst [vmem:[%s302 + $0x8] sm:$0xf] %v307
                  %v309 = vld [vmem:[%s301 + $0x24] sm:$0xf]
                  %310 = vst [vmem:[%s302 + $0xc] sm:$0xf] %v309
                  %v311 = vld [vmem:[%s301 + $0x30] sm:$0xf]
                  %312 = vst [vmem:[%s302 + $0x10] sm:$0xf] %v311
                  %v313 = vld [vmem:[%s301 + $0x3c] sm:$0xf]
                  %314 = vst [vmem:[%s302 + $0x14] sm:$0xf] %v313
                  %v315 = vld [vmem:[%s301 + $0x48] sm:$0xf]
                  %316 = vst [vmem:[%s302 + $0x18] sm:$0xf] %v315
                  %v317 = vld [vmem:[%s301 + $0x54] sm:$0xf]
                  %318 = vst [vmem:[%s302 + $0x1c] sm:$0xf] %v317
                $region96: #{attention_forward.4} parent=83 // loop_footer
                  %s300 = sadd.s32 1, %s296
                $region97: #{attention_forward.4} parent=83 // loop_footer_branch
                  %295 = sbr.rel target = $region93
                $region98: #{attention_forward.4} parent=83 // loop_exit
                  _
              $region84: #{attention_forward.4} parent=68 // pred_fallthru
                _
            $region69: #{attention_forward.4} parent=64 // pred_fallthru
              _
            // Predicated region
            $region70: #{attention_forward.4} parent=64 // pred_check
              _
            $region71: #{attention_forward.4} parent=64 // pred_check_branch
              %258 = sbr.rel (0) target = $region73
            $region72: #{attention_forward.4} parent=64 // pred_region
              loop: start=0, step=1, limit=1
              $region74: #{attention_forward.4} parent=72 // loop_pre_header
                _
              $region75: #{attention_forward.4} parent=72 // loop_header
                %s261 = sphi 0, %s265
                %p262 = scmp.ge.s32.totalorder %s261, 1
                %s266 = sphi %s252, %s252
                %s267 = sphi %s245, %s245
              $region76: #{attention_forward.4} parent=72 // loop_header_branch
                %264 = sbr.rel (%p262) target = $region80
              $region77: #{attention_forward.4} parent=72 // loop_body
                %v268 = vld [vmem:[%s266] sm:$0xf]
                %269 = vst [vmem:[%s267] sm:$0xf] %v268
                %v270 = vld [vmem:[%s266 + $0xc] sm:$0xf]
                %271 = vst [vmem:[%s267 + $0x4] sm:$0xf] %v270
                %v272 = vld [vmem:[%s266 + $0x18] sm:$0xf]
                %273 = vst [vmem:[%s267 + $0x8] sm:$0xf] %v272
                %v274 = vld [vmem:[%s266 + $0x24] sm:$0xf]
                %275 = vst [vmem:[%s267 + $0xc] sm:$0xf] %v274
                %v276 = vld [vmem:[%s266 + $0x30] sm:$0xf]
                %277 = vst [vmem:[%s267 + $0x10] sm:$0xf] %v276
                %v278 = vld [vmem:[%s266 + $0x3c] sm:$0xf]
                %279 = vst [vmem:[%s267 + $0x14] sm:$0xf] %v278
                %v280 = vld [vmem:[%s266 + $0x48] sm:$0xf]
                %281 = vst [vmem:[%s267 + $0x18] sm:$0xf] %v280
                %v282 = vld [vmem:[%s266 + $0x54] sm:$0xf]
                %283 = vst [vmem:[%s267 + $0x1c] sm:$0xf] %v282
              $region78: #{attention_forward.4} parent=72 // loop_footer
                %s265 = sadd.s32 1, %s261
              $region79: #{attention_forward.4} parent=72 // loop_footer_branch
                %260 = sbr.rel target = $region75
              $region80: #{attention_forward.4} parent=72 // loop_exit
                _
            $region73: #{attention_forward.4} parent=64 // pred_fallthru
              _
          $region65: #{attention_forward.4} parent=60 // pred_fallthru
            _
          %319 = vnop
        $region61: #{attention_forward.4} parent=15 // pred_fallthru
          _
        // Predicated region
        $region99: #{attention_forward.4} parent=15 // pred_check
          %p320 = pneg %p106
        $region100: #{attention_forward.4} parent=15 // pred_check_branch
          %322 = sbr.rel (%p320) target = $region102
        $region101: #{attention_forward.4} parent=15 // pred_region
          %s323 = sand.u32 %s96, 1
          %s324 = sand.u32 %s96, 1
          %s325 = smul.addr %s324, 32
          %s326 = scalar_lea.vmem [#allocation8], %s325
          %s327 = smul.u32 8, %s18
          %s328 = smul.addr %s327, 3
          %s329 = sadd.s32 2, %s328
          %s330 = smul.addr %s16, 24
          %s331 = sadd.s32 %s329, %s330
          %s332 = smul.addr %s331, 4
          %s333 = scalar_lea.vmem %s2, %s332
          // Predicated region
          $region103: #{attention_forward.4} parent=101 // pred_check
            _
          $region104: #{attention_forward.4} parent=101 // pred_check_branch
            %335 = sbr.rel (0) target = $region106
          $region105: #{attention_forward.4} parent=101 // pred_region
            // Predicated region
            $region107: #{attention_forward.4} parent=105 // pred_check
              _
            $region108: #{attention_forward.4} parent=105 // pred_check_branch
              %337 = sbr.rel target = $region110
            $region109: #{attention_forward.4} parent=105 // pred_region
              // Predicated region
              $region122: #{attention_forward.4} parent=109 // pred_check
                _
              $region123: #{attention_forward.4} parent=109 // pred_check_branch
                %366 = sbr.rel (0) target = $region125
              $region124: #{attention_forward.4} parent=109 // pred_region
                loop: start=0, step=1, limit=1
                $region126: #{attention_forward.4} parent=124 // loop_pre_header
                  _
                $region127: #{attention_forward.4} parent=124 // loop_header
                  %s368 = sphi 0, %s372
                  %p369 = scmp.ge.s32.totalorder %s368, 1
                  %s373 = sphi %s333, %s333
                  %s374 = sphi %s326, %s326
                $region128: #{attention_forward.4} parent=124 // loop_header_branch
                  %371 = sbr.rel (%p369) target = $region132
                $region129: #{attention_forward.4} parent=124 // loop_body
                  _
                $region130: #{attention_forward.4} parent=124 // loop_footer
                  %s372 = sadd.s32 1, %s368
                $region131: #{attention_forward.4} parent=124 // loop_footer_branch
                  %367 = sbr.rel target = $region127
                $region132: #{attention_forward.4} parent=124 // loop_exit
                  _
                loop: start=0, step=1, limit=1
                $region133: #{attention_forward.4} parent=124 // loop_pre_header
                  _
                $region134: #{attention_forward.4} parent=124 // loop_header
                  %s377 = sphi 0, %s381
                  %p378 = scmp.ge.s32.totalorder %s377, 1
                  %s382 = sphi %s333, %s333
                  %s383 = sphi %s326, %s326
                $region135: #{attention_forward.4} parent=124 // loop_header_branch
                  %380 = sbr.rel (%p378) target = $region139
                $region136: #{attention_forward.4} parent=124 // loop_body
                  %v384 = vld [vmem:[%s382] sm:$0xf]
                  %385 = vst [vmem:[%s383] sm:$0xf] %v384
                  %v386 = vld [vmem:[%s382 + $0xc] sm:$0xf]
                  %387 = vst [vmem:[%s383 + $0x4] sm:$0xf] %v386
                  %v388 = vld [vmem:[%s382 + $0x18] sm:$0xf]
                  %389 = vst [vmem:[%s383 + $0x8] sm:$0xf] %v388
                  %v390 = vld [vmem:[%s382 + $0x24] sm:$0xf]
                  %391 = vst [vmem:[%s383 + $0xc] sm:$0xf] %v390
                  %v392 = vld [vmem:[%s382 + $0x30] sm:$0xf]
                  %393 = vst [vmem:[%s383 + $0x10] sm:$0xf] %v392
                  %v394 = vld [vmem:[%s382 + $0x3c] sm:$0xf]
                  %395 = vst [vmem:[%s383 + $0x14] sm:$0xf] %v394
                  %v396 = vld [vmem:[%s382 + $0x48] sm:$0xf]
                  %397 = vst [vmem:[%s383 + $0x18] sm:$0xf] %v396
                  %v398 = vld [vmem:[%s382 + $0x54] sm:$0xf]
                  %399 = vst [vmem:[%s383 + $0x1c] sm:$0xf] %v398
                $region137: #{attention_forward.4} parent=124 // loop_footer
                  %s381 = sadd.s32 1, %s377
                $region138: #{attention_forward.4} parent=124 // loop_footer_branch
                  %376 = sbr.rel target = $region134
                $region139: #{attention_forward.4} parent=124 // loop_exit
                  _
              $region125: #{attention_forward.4} parent=109 // pred_fallthru
                _
            $region110: #{attention_forward.4} parent=105 // pred_fallthru
              _
            // Predicated region
            $region111: #{attention_forward.4} parent=105 // pred_check
              _
            $region112: #{attention_forward.4} parent=105 // pred_check_branch
              %339 = sbr.rel (0) target = $region114
            $region113: #{attention_forward.4} parent=105 // pred_region
              loop: start=0, step=1, limit=1
              $region115: #{attention_forward.4} parent=113 // loop_pre_header
                _
              $region116: #{attention_forward.4} parent=113 // loop_header
                %s342 = sphi 0, %s346
                %p343 = scmp.ge.s32.totalorder %s342, 1
                %s347 = sphi %s333, %s333
                %s348 = sphi %s326, %s326
              $region117: #{attention_forward.4} parent=113 // loop_header_branch
                %345 = sbr.rel (%p343) target = $region121
              $region118: #{attention_forward.4} parent=113 // loop_body
                %v349 = vld [vmem:[%s347] sm:$0xf]
                %350 = vst [vmem:[%s348] sm:$0xf] %v349
                %v351 = vld [vmem:[%s347 + $0xc] sm:$0xf]
                %352 = vst [vmem:[%s348 + $0x4] sm:$0xf] %v351
                %v353 = vld [vmem:[%s347 + $0x18] sm:$0xf]
                %354 = vst [vmem:[%s348 + $0x8] sm:$0xf] %v353
                %v355 = vld [vmem:[%s347 + $0x24] sm:$0xf]
                %356 = vst [vmem:[%s348 + $0xc] sm:$0xf] %v355
                %v357 = vld [vmem:[%s347 + $0x30] sm:$0xf]
                %358 = vst [vmem:[%s348 + $0x10] sm:$0xf] %v357
                %v359 = vld [vmem:[%s347 + $0x3c] sm:$0xf]
                %360 = vst [vmem:[%s348 + $0x14] sm:$0xf] %v359
                %v361 = vld [vmem:[%s347 + $0x48] sm:$0xf]
                %362 = vst [vmem:[%s348 + $0x18] sm:$0xf] %v361
                %v363 = vld [vmem:[%s347 + $0x54] sm:$0xf]
                %364 = vst [vmem:[%s348 + $0x1c] sm:$0xf] %v363
              $region119: #{attention_forward.4} parent=113 // loop_footer
                %s346 = sadd.s32 1, %s342
              $region120: #{attention_forward.4} parent=113 // loop_footer_branch
                %341 = sbr.rel target = $region116
              $region121: #{attention_forward.4} parent=113 // loop_exit
                _
            $region114: #{attention_forward.4} parent=105 // pred_fallthru
              _
          $region106: #{attention_forward.4} parent=101 // pred_fallthru
            _
          %400 = vnop
        $region102: #{attention_forward.4} parent=15 // pred_fallthru
          _
      $region16: #{attention_forward.4} parent=5 // pred_fallthru
        _
      %p401 = scmp.le.s32.totalorder 1, %s9
      %p402 = scmp.lt.s32.totalorder %s9, 3
      %p403 = pnand %p401, %p402
      %p404 = pneg %p403
      // Predicated region
      $region140: #{attention_forward.4} parent=5 // pred_check
        _
      $region141: #{attention_forward.4} parent=5 // pred_check_branch
        %406 = sbr.rel (%p403) target = $region143
      $region142: #{attention_forward.4} parent=5 // pred_region
        %s407 = ssub.s32 %s9, 1
        %s408 = sand.u32 %s43, 1
        %s409 = sand.u32 %s43, 1
        %s410 = smul.addr %s409, 32
        %s411 = scalar_lea.vmem [#allocation6], %s410
        // Predicated region
        $region144: #{attention_forward.4} parent=142 // pred_check
          %p412 = pneg %p56
        $region145: #{attention_forward.4} parent=142 // pred_check_branch
          %414 = sbr.rel (%p412) target = $region147
        $region146: #{attention_forward.4} parent=142 // pred_region
          _
        $region147: #{attention_forward.4} parent=142 // pred_fallthru
          _
        %s415 = sand.u32 %s71, 1
        %s416 = sand.u32 %s71, 1
        %s417 = smul.addr %s416, 32
        %s418 = scalar_lea.vmem [#allocation7], %s417
        // Predicated region
        $region148: #{attention_forward.4} parent=142 // pred_check
          %p419 = pneg %p84
        $region149: #{attention_forward.4} parent=142 // pred_check_branch
          %421 = sbr.rel (%p419) target = $region151
        $region150: #{attention_forward.4} parent=142 // pred_region
          _
        $region151: #{attention_forward.4} parent=142 // pred_fallthru
          _
        %s422 = sand.u32 %s99, 1
        %s423 = sand.u32 %s99, 1
        %s424 = smul.addr %s423, 32
        %s425 = scalar_lea.vmem [#allocation8], %s424
        // Predicated region
        $region152: #{attention_forward.4} parent=142 // pred_check
          %p426 = pneg %p112
        $region153: #{attention_forward.4} parent=142 // pred_check_branch
          %428 = sbr.rel (%p426) target = $region155
        $region154: #{attention_forward.4} parent=142 // pred_region
          _
        $region155: #{attention_forward.4} parent=142 // pred_fallthru
          _
        %s429 = sand.u32 %s43, 1
        %s430 = sand.u32 %s43, 1
        %s431 = smul.addr %s430, 32
        %s432 = scalar_lea.vmem [#allocation6], %s431
        %p433 = pneg %p56
        %p434 = pneg %p53
        %s435 = sand.u32 %s71, 1
        %s436 = sand.u32 %s71, 1
        %s437 = smul.addr %s436, 32
        %s438 = scalar_lea.vmem [#allocation7], %s437
        %p439 = pneg %p84
        %p440 = pneg %p81
        %s441 = sand.u32 %s99, 1
        %s442 = sand.u32 %s99, 1
        %s443 = smul.addr %s442, 32
        %s444 = scalar_lea.vmem [#allocation8], %s443
        %p445 = pneg %p112
        %p446 = pneg %p109
        %p447 = pneg %p140
        %p448 = pneg %p137
        %s449 = smul.u32 8, %s20
        %p450 = scmp.lt.s32.totalorder %s19, 1
        %s451 = scalar_select %p450, %s19, 1
        %p452 = scmp.lt.s32.totalorder %s449, 7
        %s453 = scalar_select %p452, %s449, 7
        %s454 = smul.addr %s451, 8
        %s455 = sadd.s32 %s453, %s454
        %s456 = smul.addr %s455, 4
        %s457 = scalar_lea.vmem %s3, %s456
        %s458 = smul.u32 8, %s20
        %s459 = smul.u32 8, %s21
        %s460 = smul.u32 8, %s21
        %s461 = smul.u32 8, %s20
        %p462 = scmp.lt.s32.totalorder %s19, 1
        %s463 = scalar_select %p462, %s19, 1
        %p464 = scmp.lt.s32.totalorder %s461, 7
        %s465 = scalar_select %p464, %s461, 7
        %s466 = smul.addr %s463, 8
        %s467 = sadd.s32 %s465, %s466
        %s468 = smul.addr %s467, 4
        %s469 = scalar_lea.vmem %s3, %s468
        %s470 = smul.u32 8, %s20
        %p472 = scmp.eq.s32.totalorder %s21, 0
        // Predicated region
        $region156: #{attention_forward.4} parent=142 // pred_check
          %p473 = pneg %p472
        $region157: #{attention_forward.4} parent=142 // pred_check_branch
          %475 = sbr.rel (%p473) target = $region159
        $region158: #{attention_forward.4} parent=142 // pred_region
          %v476 = vld [vmem:[%s411] sm:$0xf]
          %v477 = vld [vmem:[%s411 + $0x4] sm:$0xf]
          %v478 = vld [vmem:[%s411 + $0x8] sm:$0xf]
          %v479 = vld [vmem:[%s411 + $0xc] sm:$0xf]
          %v480 = vld [vmem:[%s411 + $0x10] sm:$0xf]
          %v481 = vld [vmem:[%s411 + $0x14] sm:$0xf]
          %v482 = vld [vmem:[%s411 + $0x18] sm:$0xf]
          %v483 = vld [vmem:[%s411 + $0x1c] sm:$0xf]
          %v484 = vunpack.c.l.bf16 %v476
          %v485 = vunpack.c.l.bf16 %v477
          %v486 = vunpack.c.l.bf16 %v478
          %v487 = vunpack.c.l.bf16 %v479
          %v488 = vunpack.c.l.bf16 %v480
          %v489 = vunpack.c.l.bf16 %v481
          %v490 = vunpack.c.l.bf16 %v482
          %v491 = vunpack.c.l.bf16 %v483
          %v492 = vmul.f32 %v484, 0.125
          %v493 = vmul.f32 %v485, 0.125
          %v494 = vmul.f32 %v486, 0.125
          %v495 = vmul.f32 %v487, 0.125
          %v496 = vmul.f32 %v488, 0.125
          %v497 = vmul.f32 %v489, 0.125
          %v498 = vmul.f32 %v490, 0.125
          %v499 = vmul.f32 %v491, 0.125
          %v500 = vcombine.low %v492, %v494
          %v501 = vcombine.high %v492, %v494
          %v503 = vunpack.c.l.s4 1983009808
          %v504 = vunpack.c.0.s8 %v503
          %v505 = vlaneseq
          %v506 = vshrl.u32 %v505, 7
          %v507 = vsub.s32 %v504, %v506
          %v508 = vrot.slane %v500, %v507
          %v510 = vunpack.c.l.s4 1983009808
          %v511 = vunpack.c.0.s8 %v510
          %v512 = vlaneseq
          %v513 = vshrl.u32 %v512, 7
          %v514 = vsub.s32 %v511, %v513
          %v515 = vrot.slane %v501, %v514
          %v516 = vcombine.low %v493, %v495
          %v517 = vcombine.high %v493, %v495
          %v519 = vunpack.c.l.s4 1983009808
          %v520 = vunpack.c.0.s8 %v519
          %v521 = vlaneseq
          %v522 = vshrl.u32 %v521, 7
          %v523 = vsub.s32 %v520, %v522
          %v524 = vrot.slane %v516, %v523
          %v526 = vunpack.c.l.s4 1983009808
          %v527 = vunpack.c.0.s8 %v526
          %v528 = vlaneseq
          %v529 = vshrl.u32 %v528, 7
          %v530 = vsub.s32 %v527, %v529
          %v531 = vrot.slane %v517, %v530
          %v532 = vcombine.low %v496, %v498
          %v533 = vcombine.high %v496, %v498
          %v535 = vunpack.c.l.s4 1983009808
          %v536 = vunpack.c.0.s8 %v535
          %v537 = vlaneseq
          %v538 = vshrl.u32 %v537, 7
          %v539 = vsub.s32 %v536, %v538
          %v540 = vrot.slane %v532, %v539
          %v542 = vunpack.c.l.s4 1983009808
          %v543 = vunpack.c.0.s8 %v542
          %v544 = vlaneseq
          %v545 = vshrl.u32 %v544, 7
          %v546 = vsub.s32 %v543, %v545
          %v547 = vrot.slane %v533, %v546
          %v548 = vcombine.low %v497, %v499
          %v549 = vcombine.high %v497, %v499
          %v551 = vunpack.c.l.s4 1983009808
          %v552 = vunpack.c.0.s8 %v551
          %v553 = vlaneseq
          %v554 = vshrl.u32 %v553, 7
          %v555 = vsub.s32 %v552, %v554
          %v556 = vrot.slane %v548, %v555
          %v558 = vunpack.c.l.s4 1983009808
          %v559 = vunpack.c.0.s8 %v558
          %v560 = vlaneseq
          %v561 = vshrl.u32 %v560, 7
          %v562 = vsub.s32 %v559, %v561
          %v563 = vrot.slane %v549, %v562
          %v564 = vcombine.low %v508, %v524
          %v565 = vcombine.high %v508, %v524
          %v567 = vunpack.c.l.s4 1934713408
          %v568 = vunpack.c.0.s8 %v567
          %v569 = vlaneseq
          %v570 = vshrl.u32 %v569, 7
          %v571 = vsub.s32 %v568, %v570
          %v572 = vrot.slane %v564, %v571
          %v574 = vunpack.c.l.s4 1934713408
          %v575 = vunpack.c.0.s8 %v574
          %v576 = vlaneseq
          %v577 = vshrl.u32 %v576, 7
          %v578 = vsub.s32 %v575, %v577
          %v579 = vrot.slane %v565, %v578
          %v580 = vcombine.low %v515, %v531
          %v581 = vcombine.high %v515, %v531
          %v583 = vunpack.c.l.s4 1934713408
          %v584 = vunpack.c.0.s8 %v583
          %v585 = vlaneseq
          %v586 = vshrl.u32 %v585, 7
          %v587 = vsub.s32 %v584, %v586
          %v588 = vrot.slane %v580, %v587
          %v590 = vunpack.c.l.s4 1934713408
          %v591 = vunpack.c.0.s8 %v590
          %v592 = vlaneseq
          %v593 = vshrl.u32 %v592, 7
          %v594 = vsub.s32 %v591, %v593
          %v595 = vrot.slane %v581, %v594
          %v596 = vcombine.low %v540, %v556
          %v597 = vcombine.high %v540, %v556
          %v599 = vunpack.c.l.s4 1934713408
          %v600 = vunpack.c.0.s8 %v599
          %v601 = vlaneseq
          %v602 = vshrl.u32 %v601, 7
          %v603 = vsub.s32 %v600, %v602
          %v604 = vrot.slane %v596, %v603
          %v606 = vunpack.c.l.s4 1934713408
          %v607 = vunpack.c.0.s8 %v606
          %v608 = vlaneseq
          %v609 = vshrl.u32 %v608, 7
          %v610 = vsub.s32 %v607, %v609
          %v611 = vrot.slane %v597, %v610
          %v612 = vcombine.low %v547, %v563
          %v613 = vcombine.high %v547, %v563
          %v615 = vunpack.c.l.s4 1934713408
          %v616 = vunpack.c.0.s8 %v615
          %v617 = vlaneseq
          %v618 = vshrl.u32 %v617, 7
          %v619 = vsub.s32 %v616, %v618
          %v620 = vrot.slane %v612, %v619
          %v622 = vunpack.c.l.s4 1934713408
          %v623 = vunpack.c.0.s8 %v622
          %v624 = vlaneseq
          %v625 = vshrl.u32 %v624, 7
          %v626 = vsub.s32 %v623, %v625
          %v627 = vrot.slane %v613, %v626
          %v628 = vcombine.low %v572, %v604
          %v629 = vcombine.high %v572, %v604
          %v630 = vcombine.low %v579, %v611
          %v631 = vcombine.high %v579, %v611
          %v632 = vcombine.low %v588, %v620
          %v633 = vcombine.high %v588, %v620
          %v634 = vcombine.low %v595, %v627
          %v635 = vcombine.high %v595, %v627
          %v636 = vpack.c.bf16 %v628, %v628
          %v637 = vpack.c.bf16 %v629, %v629
          %v638 = vpack.c.bf16 %v630, %v630
          %v639 = vpack.c.bf16 %v631, %v631
          %v640 = vpack.c.bf16 %v632, %v632
          %v641 = vpack.c.bf16 %v633, %v633
          %v642 = vpack.c.bf16 %v634, %v634
          %v643 = vpack.c.bf16 %v635, %v635
          %vm644 = vcmask 519168
          %645 = vst.msk [vmem:[#allocation2] sm:$0xf] %vm644, %v636
          %646 = vst.msk [vmem:[#allocation2 + $0x4] sm:$0xf] %vm644, %v637
          %647 = vst.msk [vmem:[#allocation2 + $0x8] sm:$0xf] %vm644, %v638
          %648 = vst.msk [vmem:[#allocation2 + $0xc] sm:$0xf] %vm644, %v639
          %649 = vst.msk [vmem:[#allocation2 + $0x10] sm:$0xf] %vm644, %v640
          %650 = vst.msk [vmem:[#allocation2 + $0x14] sm:$0xf] %vm644, %v641
          %651 = vst.msk [vmem:[#allocation2 + $0x18] sm:$0xf] %vm644, %v642
          %652 = vst.msk [vmem:[#allocation2 + $0x1c] sm:$0xf] %vm644, %v643
          %vm653 = vcmask 7168
          %654 = vst.msk [vmem:[#allocation3] sm:$0xff] %vm653, -inf
          %655 = vst.msk [vmem:[#allocation3 + $0x8] sm:$0xff] %vm653, -inf
          %656 = vst.msk [vmem:[#allocation3 + $0x10] sm:$0xff] %vm653, -inf
          %657 = vst.msk [vmem:[#allocation3 + $0x18] sm:$0xff] %vm653, -inf
          %658 = vst.msk [vmem:[#allocation3 + $0x20] sm:$0xff] %vm653, -inf
          %659 = vst.msk [vmem:[#allocation3 + $0x28] sm:$0xff] %vm653, -inf
          %660 = vst.msk [vmem:[#allocation3 + $0x30] sm:$0xff] %vm653, -inf
          %661 = vst.msk [vmem:[#allocation3 + $0x38] sm:$0xff] %vm653, -inf
          %662 = vst.msk [vmem:[#allocation4] sm:$0xff] %vm653, 0.0
          %663 = vst.msk [vmem:[#allocation4 + $0x8] sm:$0xff] %vm653, 0.0
          %664 = vst.msk [vmem:[#allocation4 + $0x10] sm:$0xff] %vm653, 0.0
          %665 = vst.msk [vmem:[#allocation4 + $0x18] sm:$0xff] %vm653, 0.0
          %666 = vst.msk [vmem:[#allocation4 + $0x20] sm:$0xff] %vm653, 0.0
          %667 = vst.msk [vmem:[#allocation4 + $0x28] sm:$0xff] %vm653, 0.0
          %668 = vst.msk [vmem:[#allocation4 + $0x30] sm:$0xff] %vm653, 0.0
          %669 = vst.msk [vmem:[#allocation4 + $0x38] sm:$0xff] %vm653, 0.0
          %vm670 = vcmask 523264
          %671 = vst.msk [vmem:[#allocation5] sm:$0xff] %vm670, 0.0
          %672 = vst.msk [vmem:[#allocation5 + $0x8] sm:$0xff] %vm670, 0.0
          %673 = vst.msk [vmem:[#allocation5 + $0x10] sm:$0xff] %vm670, 0.0
          %674 = vst.msk [vmem:[#allocation5 + $0x18] sm:$0xff] %vm670, 0.0
          %675 = vst.msk [vmem:[#allocation5 + $0x20] sm:$0xff] %vm670, 0.0
          %676 = vst.msk [vmem:[#allocation5 + $0x28] sm:$0xff] %vm670, 0.0
          %677 = vst.msk [vmem:[#allocation5 + $0x30] sm:$0xff] %vm670, 0.0
          %678 = vst.msk [vmem:[#allocation5 + $0x38] sm:$0xff] %vm670, 0.0
        $region159: #{attention_forward.4} parent=142 // pred_fallthru
          _
        %v679 = vld [vmem:[%s418] sm:$0xf]
        %v680 = vld [vmem:[%s418 + $0x4] sm:$0xf]
        %v681 = vld [vmem:[%s418 + $0x8] sm:$0xf]
        %v682 = vld [vmem:[%s418 + $0xc] sm:$0xf]
        %v683 = vld [vmem:[%s418 + $0x10] sm:$0xf]
        %v684 = vld [vmem:[%s418 + $0x14] sm:$0xf]
        %v685 = vld [vmem:[%s418 + $0x18] sm:$0xf]
        %v686 = vld [vmem:[%s418 + $0x1c] sm:$0xf]
        %v687 = vcombine.low %v679, %v683
        %v689 = vunpack.c.l.s4 1983009808
        %v690 = vunpack.c.0.s8 %v689
        %v691 = vlaneseq
        %v692 = vshrl.u32 %v691, 7
        %v693 = vsub.s32 %v690, %v692
        %v694 = vrot.slane %v687, %v693
        %v695 = vcombine.low %v681, %v685
        %v697 = vunpack.c.l.s4 1983009808
        %v698 = vunpack.c.0.s8 %v697
        %v699 = vlaneseq
        %v700 = vshrl.u32 %v699, 7
        %v701 = vsub.s32 %v698, %v700
        %v702 = vrot.slane %v695, %v701
        %v703 = vcombine.low %v694, %v702
        %v704 = vcombine.high %v694, %v702
        %v706 = vunpack.c.l.s4 1934713408
        %v707 = vunpack.c.0.s8 %v706
        %v708 = vlaneseq
        %v709 = vshrl.u32 %v708, 7
        %v710 = vsub.s32 %v707, %v709
        %v711 = vrot.slane %v703, %v710
        %v713 = vunpack.c.l.s4 1934713408
        %v714 = vunpack.c.0.s8 %v713
        %v715 = vlaneseq
        %v716 = vshrl.u32 %v715, 7
        %v717 = vsub.s32 %v714, %v716
        %v718 = vrot.slane %v704, %v717
        %v719 = vcombine.high %v711, 0
        %v720 = vcombine.high %v718, 0
        %v721 = vcombine.low %v680, %v684
        %v723 = vunpack.c.l.s4 1983009808
        %v724 = vunpack.c.0.s8 %v723
        %v725 = vlaneseq
        %v726 = vshrl.u32 %v725, 7
        %v727 = vsub.s32 %v724, %v726
        %v728 = vrot.slane %v721, %v727
        %v729 = vcombine.low %v682, %v686
        %v731 = vunpack.c.l.s4 1983009808
        %v732 = vunpack.c.0.s8 %v731
        %v733 = vlaneseq
        %v734 = vshrl.u32 %v733, 7
        %v735 = vsub.s32 %v732, %v734
        %v736 = vrot.slane %v729, %v735
        %v737 = vcombine.low %v728, %v736
        %v738 = vcombine.high %v728, %v736
        %v740 = vunpack.c.l.s4 1934713408
        %v741 = vunpack.c.0.s8 %v740
        %v742 = vlaneseq
        %v743 = vshrl.u32 %v742, 7
        %v744 = vsub.s32 %v741, %v743
        %v745 = vrot.slane %v737, %v744
        %v747 = vunpack.c.l.s4 1934713408
        %v748 = vunpack.c.0.s8 %v747
        %v749 = vlaneseq
        %v750 = vshrl.u32 %v749, 7
        %v751 = vsub.s32 %v748, %v750
        %v752 = vrot.slane %v738, %v751
        %v753 = vcombine.high %v745, 0
        %v754 = vcombine.high %v752, 0
        %v757 = vpack.i.b16 %v745, %v711
        %v758 = vshrl.u32 %v711, 16
        %v759 = vshrl.u32 %v745, 16
        %v760 = vpack.i.b16 %v759, %v758
        %v763 = vpack.i.b16 %v753, %v719
        %v764 = vshrl.u32 %v719, 16
        %v765 = vshrl.u32 %v753, 16
        %v766 = vpack.i.b16 %v765, %v764
        %v769 = vpack.i.b16 %v752, %v718
        %v770 = vshrl.u32 %v718, 16
        %v771 = vshrl.u32 %v752, 16
        %v772 = vpack.i.b16 %v771, %v770
        %v775 = vpack.i.b16 %v754, %v720
        %v776 = vshrl.u32 %v720, 16
        %v777 = vshrl.u32 %v754, 16
        %v778 = vpack.i.b16 %v777, %v776
        %v779 = vld [vmem:[%s425] sm:$0xf]
        %v780 = vld [vmem:[%s425 + $0x4] sm:$0xf]
        %v781 = vld [vmem:[%s425 + $0x8] sm:$0xf]
        %v782 = vld [vmem:[%s425 + $0xc] sm:$0xf]
        %v783 = vld [vmem:[%s425 + $0x10] sm:$0xf]
        %v784 = vld [vmem:[%s425 + $0x14] sm:$0xf]
        %v785 = vld [vmem:[%s425 + $0x18] sm:$0xf]
        %v786 = vld [vmem:[%s425 + $0x1c] sm:$0xf]
        %v787 = vcombine.low %v779, %v783
        %v789 = vunpack.c.l.s4 1983009808
        %v790 = vunpack.c.0.s8 %v789
        %v791 = vlaneseq
        %v792 = vshrl.u32 %v791, 7
        %v793 = vsub.s32 %v790, %v792
        %v794 = vrot.slane %v787, %v793
        %v795 = vcombine.low %v781, %v785
        %v797 = vunpack.c.l.s4 1983009808
        %v798 = vunpack.c.0.s8 %v797
        %v799 = vlaneseq
        %v800 = vshrl.u32 %v799, 7
        %v801 = vsub.s32 %v798, %v800
        %v802 = vrot.slane %v795, %v801
        %v803 = vcombine.low %v794, %v802
        %v804 = vcombine.high %v794, %v802
        %v806 = vunpack.c.l.s4 1934713408
        %v807 = vunpack.c.0.s8 %v806
        %v808 = vlaneseq
        %v809 = vshrl.u32 %v808, 7
        %v810 = vsub.s32 %v807, %v809
        %v811 = vrot.slane %v803, %v810
        %v813 = vunpack.c.l.s4 1934713408
        %v814 = vunpack.c.0.s8 %v813
        %v815 = vlaneseq
        %v816 = vshrl.u32 %v815, 7
        %v817 = vsub.s32 %v814, %v816
        %v818 = vrot.slane %v804, %v817
        %v819 = vcombine.high %v811, 0
        %v820 = vcombine.high %v818, 0
        %v821 = vcombine.low %v780, %v784
        %v823 = vunpack.c.l.s4 1983009808
        %v824 = vunpack.c.0.s8 %v823
        %v825 = vlaneseq
        %v826 = vshrl.u32 %v825, 7
        %v827 = vsub.s32 %v824, %v826
        %v828 = vrot.slane %v821, %v827
        %v829 = vcombine.low %v782, %v786
        %v831 = vunpack.c.l.s4 1983009808
        %v832 = vunpack.c.0.s8 %v831
        %v833 = vlaneseq
        %v834 = vshrl.u32 %v833, 7
        %v835 = vsub.s32 %v832, %v834
        %v836 = vrot.slane %v829, %v835
        %v837 = vcombine.low %v828, %v836
        %v838 = vcombine.high %v828, %v836
        %v840 = vunpack.c.l.s4 1934713408
        %v841 = vunpack.c.0.s8 %v840
        %v842 = vlaneseq
        %v843 = vshrl.u32 %v842, 7
        %v844 = vsub.s32 %v841, %v843
        %v845 = vrot.slane %v837, %v844
        %v847 = vunpack.c.l.s4 1934713408
        %v848 = vunpack.c.0.s8 %v847
        %v849 = vlaneseq
        %v850 = vshrl.u32 %v849, 7
        %v851 = vsub.s32 %v848, %v850
        %v852 = vrot.slane %v838, %v851
        %v853 = vcombine.high %v845, 0
        %v854 = vcombine.high %v852, 0
        %v857 = vpack.i.b16 %v845, %v811
        %v858 = vshrl.u32 %v811, 16
        %v859 = vshrl.u32 %v845, 16
        %v860 = vpack.i.b16 %v859, %v858
        %v863 = vpack.i.b16 %v853, %v819
        %v864 = vshrl.u32 %v819, 16
        %v865 = vshrl.u32 %v853, 16
        %v866 = vpack.i.b16 %v865, %v864
        %v869 = vpack.i.b16 %v852, %v818
        %v870 = vshrl.u32 %v818, 16
        %v871 = vshrl.u32 %v852, 16
        %v872 = vpack.i.b16 %v871, %v870
        %v875 = vpack.i.b16 %v854, %v820
        %v876 = vshrl.u32 %v820, 16
        %v877 = vshrl.u32 %v854, 16
        %v878 = vpack.i.b16 %v877, %v876
        %v879 = vld [vmem:[#allocation2] sm:$0xf]
        %v880 = vld [vmem:[#allocation2 + $0x4] sm:$0xf]
        %v881 = vld [vmem:[#allocation2 + $0x8] sm:$0xf]
        %v882 = vld [vmem:[#allocation2 + $0xc] sm:$0xf]
        %v883 = vld [vmem:[#allocation2 + $0x10] sm:$0xf]
        %v884 = vld [vmem:[#allocation2 + $0x14] sm:$0xf]
        %v885 = vld [vmem:[#allocation2 + $0x18] sm:$0xf]
        %v886 = vld [vmem:[#allocation2 + $0x1c] sm:$0xf]
        %vm887 = vcmask 523264
        %v889 = vsel %vm887, %v879, 0
        %v892 = vsel %vm887, %v757, 0
        %894 = vmatprep.subr.bf16.mxu0 0
        %895 = vmatpush1.bf16.xpose.msra.mxu0 %v892
        %896 = vmatprep.subr.bf16.mxu0 0
        %897 = vmatpush1.bf16.xpose.msra.mxu0 0
        %898 = vmatprep.subr.bf16.mxu0 0
        %899 = vmatpush1.bf16.xpose.msra.mxu0 0
        %900 = vmatprep.subr.bf16.mxu0 0
        %901 = vmatpush1.bf16.xpose.msra.mxu0 0
        %902 = vmatprep.subr.bf16.mxu0 0
        %903 = vmatpush1.bf16.xpose.msra.mxu0 0
        %904 = vmatprep.subr.bf16.mxu0 0
        %905 = vmatpush1.bf16.xpose.msra.mxu0 0
        %906 = vmatprep.subr.bf16.mxu0 0
        %907 = vmatpush1.bf16.xpose.msra.mxu0 0
        %908 = vmatprep.subr.bf16.mxu0 0
        %909 = vmatpush1.bf16.xpose.msra.mxu0 0
        %910 = vmatprep.subr.bf16.mxu0 0
        %911 = vmatpush1.bf16.xpose.msra.mxu0 0
        %912 = vmatprep.subr.bf16.mxu0 0
        %913 = vmatpush1.bf16.xpose.msra.mxu0 0
        %914 = vmatprep.subr.bf16.mxu0 0
        %915 = vmatpush1.bf16.xpose.msra.mxu0 0
        %916 = vmatprep.subr.bf16.mxu0 0
        %917 = vmatpush1.bf16.xpose.msra.mxu0 0
        %918 = vmatprep.subr.bf16.mxu0 0
        %919 = vmatpush1.bf16.xpose.msra.mxu0 0
        %920 = vmatprep.subr.bf16.mxu0 0
        %921 = vmatpush1.bf16.xpose.msra.mxu0 0
        %922 = vmatprep.subr.bf16.mxu0 0
        %923 = vmatpush1.bf16.xpose.msra.mxu0 0
        %924 = vmatprep.subr.bf16.mxu0 0
        %925 = vmatpush1.bf16.xpose.msra.mxu0 0
        %926 = vmatprep.mubr.bf16.mxu0 0
        %927 = vmatmul.mubr.bf16.gmra.mrb[0].mxu0 %v889
        %v928 = vpop.f32.mrb[0].mxu0
        %v929 = vadd.f32 0.0, %v928
        %v930 = vpop.f32.mrb[0].mxu0
        %v931 = vpop.f32.mrb[0].mxu0
        %v932 = vpop.f32.mrb[0].mxu0
        %933 = vdwg.mxu0
        %v935 = vsel %vm887, %v880, 0
        %v938 = vsel %vm887, %v760, 0
        %940 = vmatprep.subr.bf16.mxu0 0
        %941 = vmatpush1.bf16.xpose.msra.mxu0 %v938
        %942 = vmatprep.subr.bf16.mxu0 0
        %943 = vmatpush1.bf16.xpose.msra.mxu0 0
        %944 = vmatprep.subr.bf16.mxu0 0
        %945 = vmatpush1.bf16.xpose.msra.mxu0 0
        %946 = vmatprep.subr.bf16.mxu0 0
        %947 = vmatpush1.bf16.xpose.msra.mxu0 0
        %948 = vmatprep.subr.bf16.mxu0 0
        %949 = vmatpush1.bf16.xpose.msra.mxu0 0
        %950 = vmatprep.subr.bf16.mxu0 0
        %951 = vmatpush1.bf16.xpose.msra.mxu0 0
        %952 = vmatprep.subr.bf16.mxu0 0
        %953 = vmatpush1.bf16.xpose.msra.mxu0 0
        %954 = vmatprep.subr.bf16.mxu0 0
        %955 = vmatpush1.bf16.xpose.msra.mxu0 0
        %956 = vmatprep.subr.bf16.mxu0 0
        %957 = vmatpush1.bf16.xpose.msra.mxu0 0
        %958 = vmatprep.subr.bf16.mxu0 0
        %959 = vmatpush1.bf16.xpose.msra.mxu0 0
        %960 = vmatprep.subr.bf16.mxu0 0
        %961 = vmatpush1.bf16.xpose.msra.mxu0 0
        %962 = vmatprep.subr.bf16.mxu0 0
        %963 = vmatpush1.bf16.xpose.msra.mxu0 0
        %964 = vmatprep.subr.bf16.mxu0 0
        %965 = vmatpush1.bf16.xpose.msra.mxu0 0
        %966 = vmatprep.subr.bf16.mxu0 0
        %967 = vmatpush1.bf16.xpose.msra.mxu0 0
        %968 = vmatprep.subr.bf16.mxu0 0
        %969 = vmatpush1.bf16.xpose.msra.mxu0 0
        %970 = vmatprep.subr.bf16.mxu0 0
        %971 = vmatpush1.bf16.xpose.msra.mxu0 0
        %972 = vmatprep.mubr.bf16.mxu0 0
        %973 = vmatmul.mubr.bf16.gmra.mrb[0].mxu0 %v935
        %v974 = vpop.f32.mrb[0].mxu0
        %v975 = vadd.f32 0.0, %v974
        %v976 = vpop.f32.mrb[0].mxu0
        %v977 = vpop.f32.mrb[0].mxu0
        %v978 = vpop.f32.mrb[0].mxu0
        %979 = vdwg.mxu0
        %v981 = vsel %vm887, %v881, 0
        %v984 = vsel %vm887, %v763, 0
        %986 = vmatprep.subr.bf16.mxu0 0
        %987 = vmatpush1.bf16.xpose.msra.mxu0 %v984
        %988 = vmatprep.subr.bf16.mxu0 0
        %989 = vmatpush1.bf16.xpose.msra.mxu0 0
        %990 = vmatprep.subr.bf16.mxu0 0
        %991 = vmatpush1.bf16.xpose.msra.mxu0 0
        %992 = vmatprep.subr.bf16.mxu0 0
        %993 = vmatpush1.bf16.xpose.msra.mxu0 0
        %994 = vmatprep.subr.bf16.mxu0 0
        %995 = vmatpush1.bf16.xpose.msra.mxu0 0
        %996 = vmatprep.subr.bf16.mxu0 0
        %997 = vmatpush1.bf16.xpose.msra.mxu0 0
        %998 = vmatprep.subr.bf16.mxu0 0
        %999 = vmatpush1.bf16.xpose.msra.mxu0 0
        %1000 = vmatprep.subr.bf16.mxu0 0
        %1001 = vmatpush1.bf16.xpose.msra.mxu0 0
        %1002 = vmatprep.subr.bf16.mxu0 0
        %1003 = vmatpush1.bf16.xpose.msra.mxu0 0
        %1004 = vmatprep.subr.bf16.mxu0 0
        %1005 = vmatpush1.bf16.xpose.msra.mxu0 0
        %1006 = vmatprep.subr.bf16.mxu0 0
        %1007 = vmatpush1.bf16.xpose.msra.mxu0 0
        %1008 = vmatprep.subr.bf16.mxu0 0
        %1009 = vmatpush1.bf16.xpose.msra.mxu0 0
        %1010 = vmatprep.subr.bf16.mxu0 0
        %1011 = vmatpush1.bf16.xpose.msra.mxu0 0
        %1012 = vmatprep.subr.bf16.mxu0 0
        %1013 = vmatpush1.bf16.xpose.msra.mxu0 0
        %1014 = vmatprep.subr.bf16.mxu0 0
        %1015 = vmatpush1.bf16.xpose.msra.mxu0 0
        %1016 = vmatprep.subr.bf16.mxu0 0
        %1017 = vmatpush1.bf16.xpose.msra.mxu0 0
        %1018 = vmatprep.mubr.bf16.mxu0 0
        %1019 = vmatmul.mubr.bf16.gmra.mrb[0].mxu0 %v981
        %v1020 = vpop.f32.mrb[0].mxu0
        %v1021 = vadd.f32 0.0, %v1020
        %v1022 = vpop.f32.mrb[0].mxu0
        %v1023 = vpop.f32.mrb[0].mxu0
        %v1024 = vpop.f32.mrb[0].mxu0
        %1025 = vdwg.mxu0
        %v1027 = vsel %vm887, %v882, 0
        %v1030 = vsel %vm887, %v766, 0
        %1032 = vmatprep.subr.bf16.mxu0 0
        %1033 = vmatpush1.bf16.xpose.msra.mxu0 %v1030
        %1034 = vmatprep.subr.bf16.mxu0 0
        %1035 = vmatpush1.bf16.xpose.msra.mxu0 0
        %1036 = vmatprep.subr.bf16.mxu0 0
        %1037 = vmatpush1.bf16.xpose.msra.mxu0 0
        %1038 = vmatprep.subr.bf16.mxu0 0
        %1039 = vmatpush1.bf16.xpose.msra.mxu0 0
        %1040 = vmatprep.subr.bf16.mxu0 0
        %1041 = vmatpush1.bf16.xpose.msra.mxu0 0
        %1042 = vmatprep.subr.bf16.mxu0 0
        %1043 = vmatpush1.bf16.xpose.msra.mxu0 0
        %1044 = vmatprep.subr.bf16.mxu0 0
        %1045 = vmatpush1.bf16.xpose.msra.mxu0 0
        %1046 = vmatprep.subr.bf16.mxu0 0
        %1047 = vmatpush1.bf16.xpose.msra.mxu0 0
        %1048 = vmatprep.subr.bf16.mxu0 0
        %1049 = vmatpush1.bf16.xpose.msra.mxu0 0
        %1050 = vmatprep.subr.bf16.mxu0 0
        %1051 = vmatpush1.bf16.xpose.msra.mxu0 0
        %1052 = vmatprep.subr.bf16.mxu0 0
        %1053 = vmatpush1.bf16.xpose.msra.mxu0 0
        %1054 = vmatprep.subr.bf16.mxu0 0
        %1055 = vmatpush1.bf16.xpose.msra.mxu0 0
        %1056 = vmatprep.subr.bf16.mxu0 0
        %1057 = vmatpush1.bf16.xpose.msra.mxu0 0
        %1058 = vmatprep.subr.bf16.mxu0 0
        %1059 = vmatpush1.bf16.xpose.msra.mxu0 0
        %1060 = vmatprep.subr.bf16.mxu0 0
        %1061 = vmatpush1.bf16.xpose.msra.mxu0 0
        %1062 = vmatprep.subr.bf16.mxu0 0
        %1063 = vmatpush1.bf16.xpose.msra.mxu0 0
        %1064 = vmatprep.mubr.bf16.mxu0 0
        %1065 = vmatmul.mubr.bf16.gmra.mrb[0].mxu0 %v1027
        %v1066 = vpop.f32.mrb[0].mxu0
        %v1067 = vadd.f32 0.0, %v1066
        %v1068 = vpop.f32.mrb[0].mxu0
        %v1069 = vpop.f32.mrb[0].mxu0
        %v1070 = vpop.f32.mrb[0].mxu0
        %1071 = vdwg.mxu0
        %v1073 = vsel %vm887, %v883, 0
        %v1076 = vsel %vm887, %v769, 0
        %1078 = vmatprep.subr.bf16.mxu0 0
        %1079 = vmatpush1.bf16.xpose.msra.mxu0 %v1076
        %1080 = vmatprep.subr.bf16.mxu0 0
        %1081 = vmatpush1.bf16.xpose.msra.mxu0 0
        %1082 = vmatprep.subr.bf16.mxu0 0
        %1083 = vmatpush1.bf16.xpose.msra.mxu0 0
        %1084 = vmatprep.subr.bf16.mxu0 0
        %1085 = vmatpush1.bf16.xpose.msra.mxu0 0
        %1086 = vmatprep.subr.bf16.mxu0 0
        %1087 = vmatpush1.bf16.xpose.msra.mxu0 0
        %1088 = vmatprep.subr.bf16.mxu0 0
        %1089 = vmatpush1.bf16.xpose.msra.mxu0 0
        %1090 = vmatprep.subr.bf16.mxu0 0
        %1091 = vmatpush1.bf16.xpose.msra.mxu0 0
        %1092 = vmatprep.subr.bf16.mxu0 0
        %1093 = vmatpush1.bf16.xpose.msra.mxu0 0
        %1094 = vmatprep.subr.bf16.mxu0 0
        %1095 = vmatpush1.bf16.xpose.msra.mxu0 0
        %1096 = vmatprep.subr.bf16.mxu0 0
        %1097 = vmatpush1.bf16.xpose.msra.mxu0 0
        %1098 = vmatprep.subr.bf16.mxu0 0
        %1099 = vmatpush1.bf16.xpose.msra.mxu0 0
        %1100 = vmatprep.subr.bf16.mxu0 0
        %1101 = vmatpush1.bf16.xpose.msra.mxu0 0
        %1102 = vmatprep.subr.bf16.mxu0 0
        %1103 = vmatpush1.bf16.xpose.msra.mxu0 0
        %1104 = vmatprep.subr.bf16.mxu0 0
        %1105 = vmatpush1.bf16.xpose.msra.mxu0 0
        %1106 = vmatprep.subr.bf16.mxu0 0
        %1107 = vmatpush1.bf16.xpose.msra.mxu0 0
        %1108 = vmatprep.subr.bf16.mxu0 0
        %1109 = vmatpush1.bf16.xpose.msra.mxu0 0
        %1110 = vmatprep.mubr.bf16.mxu0 0
        %1111 = vmatmul.mubr.bf16.gmra.mrb[0].mxu0 %v1073
        %v1112 = vpop.f32.mrb[0].mxu0
        %v1113 = vadd.f32 0.0, %v1112
        %v1114 = vpop.f32.mrb[0].mxu0
        %v1115 = vpop.f32.mrb[0].mxu0
        %v1116 = vpop.f32.mrb[0].mxu0
        %1117 = vdwg.mxu0
        %v1119 = vsel %vm887, %v884, 0
        %v1122 = vsel %vm887, %v772, 0
        %1124 = vmatprep.subr.bf16.mxu0 0
        %1125 = vmatpush1.bf16.xpose.msra.mxu0 %v1122
        %1126 = vmatprep.subr.bf16.mxu0 0
        %1127 = vmatpush1.bf16.xpose.msra.mxu0 0
        %1128 = vmatprep.subr.bf16.mxu0 0
        %1129 = vmatpush1.bf16.xpose.msra.mxu0 0
        %1130 = vmatprep.subr.bf16.mxu0 0
        %1131 = vmatpush1.bf16.xpose.msra.mxu0 0
        %1132 = vmatprep.subr.bf16.mxu0 0
        %1133 = vmatpush1.bf16.xpose.msra.mxu0 0
        %1134 = vmatprep.subr.bf16.mxu0 0
        %1135 = vmatpush1.bf16.xpose.msra.mxu0 0
        %1136 = vmatprep.subr.bf16.mxu0 0
        %1137 = vmatpush1.bf16.xpose.msra.mxu0 0
        %1138 = vmatprep.subr.bf16.mxu0 0
        %1139 = vmatpush1.bf16.xpose.msra.mxu0 0
        %1140 = vmatprep.subr.bf16.mxu0 0
        %1141 = vmatpush1.bf16.xpose.msra.mxu0 0
        %1142 = vmatprep.subr.bf16.mxu0 0
        %1143 = vmatpush1.bf16.xpose.msra.mxu0 0
        %1144 = vmatprep.subr.bf16.mxu0 0
        %1145 = vmatpush1.bf16.xpose.msra.mxu0 0
        %1146 = vmatprep.subr.bf16.mxu0 0
        %1147 = vmatpush1.bf16.xpose.msra.mxu0 0
        %1148 = vmatprep.subr.bf16.mxu0 0
        %1149 = vmatpush1.bf16.xpose.msra.mxu0 0
        %1150 = vmatprep.subr.bf16.mxu0 0
        %1151 = vmatpush1.bf16.xpose.msra.mxu0 0
        %1152 = vmatprep.subr.bf16.mxu0 0
        %1153 = vmatpush1.bf16.xpose.msra.mxu0 0
        %1154 = vmatprep.subr.bf16.mxu0 0
        %1155 = vmatpush1.bf16.xpose.msra.mxu0 0
        %1156 = vmatprep.mubr.bf16.mxu0 0
        %1157 = vmatmul.mubr.bf16.gmra.mrb[0].mxu0 %v1119
        %v1158 = vpop.f32.mrb[0].mxu0
        %v1159 = vadd.f32 0.0, %v1158
        %v1160 = vpop.f32.mrb[0].mxu0
        %v1161 = vpop.f32.mrb[0].mxu0
        %v1162 = vpop.f32.mrb[0].mxu0
        %1163 = vdwg.mxu0
        %v1165 = vsel %vm887, %v885, 0
        %v1168 = vsel %vm887, %v775, 0
        %1170 = vmatprep.subr.bf16.mxu0 0
        %1171 = vmatpush1.bf16.xpose.msra.mxu0 %v1168
        %1172 = vmatprep.subr.bf16.mxu0 0
        %1173 = vmatpush1.bf16.xpose.msra.mxu0 0
        %1174 = vmatprep.subr.bf16.mxu0 0
        %1175 = vmatpush1.bf16.xpose.msra.mxu0 0
        %1176 = vmatprep.subr.bf16.mxu0 0
        %1177 = vmatpush1.bf16.xpose.msra.mxu0 0
        %1178 = vmatprep.subr.bf16.mxu0 0
        %1179 = vmatpush1.bf16.xpose.msra.mxu0 0
        %1180 = vmatprep.subr.bf16.mxu0 0
        %1181 = vmatpush1.bf16.xpose.msra.mxu0 0
        %1182 = vmatprep.subr.bf16.mxu0 0
        %1183 = vmatpush1.bf16.xpose.msra.mxu0 0
        %1184 = vmatprep.subr.bf16.mxu0 0
        %1185 = vmatpush1.bf16.xpose.msra.mxu0 0
        %1186 = vmatprep.subr.bf16.mxu0 0
        %1187 = vmatpush1.bf16.xpose.msra.mxu0 0
        %1188 = vmatprep.subr.bf16.mxu0 0
        %1189 = vmatpush1.bf16.xpose.msra.mxu0 0
        %1190 = vmatprep.subr.bf16.mxu0 0
        %1191 = vmatpush1.bf16.xpose.msra.mxu0 0
        %1192 = vmatprep.subr.bf16.mxu0 0
        %1193 = vmatpush1.bf16.xpose.msra.mxu0 0
        %1194 = vmatprep.subr.bf16.mxu0 0
        %1195 = vmatpush1.bf16.xpose.msra.mxu0 0
        %1196 = vmatprep.subr.bf16.mxu0 0
        %1197 = vmatpush1.bf16.xpose.msra.mxu0 0
        %1198 = vmatprep.subr.bf16.mxu0 0
        %1199 = vmatpush1.bf16.xpose.msra.mxu0 0
        %1200 = vmatprep.subr.bf16.mxu0 0
        %1201 = vmatpush1.bf16.xpose.msra.mxu0 0
        %1202 = vmatprep.mubr.bf16.mxu0 0
        %1203 = vmatmul.mubr.bf16.gmra.mrb[0].mxu0 %v1165
        %v1204 = vpop.f32.mrb[0].mxu0
        %v1205 = vadd.f32 0.0, %v1204
        %v1206 = vpop.f32.mrb[0].mxu0
        %v1207 = vpop.f32.mrb[0].mxu0
        %v1208 = vpop.f32.mrb[0].mxu0
        %1209 = vdwg.mxu0
        %v1211 = vsel %vm887, %v886, 0
        %v1214 = vsel %vm887, %v778, 0
        %1216 = vmatprep.subr.bf16.mxu0 0
        %1217 = vmatpush1.bf16.xpose.msra.mxu0 %v1214
        %1218 = vmatprep.subr.bf16.mxu0 0
        %1219 = vmatpush1.bf16.xpose.msra.mxu0 0
        %1220 = vmatprep.subr.bf16.mxu0 0
        %1221 = vmatpush1.bf16.xpose.msra.mxu0 0
        %1222 = vmatprep.subr.bf16.mxu0 0
        %1223 = vmatpush1.bf16.xpose.msra.mxu0 0
        %1224 = vmatprep.subr.bf16.mxu0 0
        %1225 = vmatpush1.bf16.xpose.msra.mxu0 0
        %1226 = vmatprep.subr.bf16.mxu0 0
        %1227 = vmatpush1.bf16.xpose.msra.mxu0 0
        %1228 = vmatprep.subr.bf16.mxu0 0
        %1229 = vmatpush1.bf16.xpose.msra.mxu0 0
        %1230 = vmatprep.subr.bf16.mxu0 0
        %1231 = vmatpush1.bf16.xpose.msra.mxu0 0
        %1232 = vmatprep.subr.bf16.mxu0 0
        %1233 = vmatpush1.bf16.xpose.msra.mxu0 0
        %1234 = vmatprep.subr.bf16.mxu0 0
        %1235 = vmatpush1.bf16.xpose.msra.mxu0 0
        %1236 = vmatprep.subr.bf16.mxu0 0
        %1237 = vmatpush1.bf16.xpose.msra.mxu0 0
        %1238 = vmatprep.subr.bf16.mxu0 0
        %1239 = vmatpush1.bf16.xpose.msra.mxu0 0
        %1240 = vmatprep.subr.bf16.mxu0 0
        %1241 = vmatpush1.bf16.xpose.msra.mxu0 0
        %1242 = vmatprep.subr.bf16.mxu0 0
        %1243 = vmatpush1.bf16.xpose.msra.mxu0 0
        %1244 = vmatprep.subr.bf16.mxu0 0
        %1245 = vmatpush1.bf16.xpose.msra.mxu0 0
        %1246 = vmatprep.subr.bf16.mxu0 0
        %1247 = vmatpush1.bf16.xpose.msra.mxu0 0
        %1248 = vmatprep.mubr.bf16.mxu0 0
        %1249 = vmatmul.mubr.bf16.gmra.mrb[0].mxu0 %v1211
        %v1250 = vpop.f32.mrb[0].mxu0
        %v1251 = vadd.f32 0.0, %v1250
        %v1252 = vpop.f32.mrb[0].mxu0
        %v1253 = vpop.f32.mrb[0].mxu0
        %v1254 = vpop.f32.mrb[0].mxu0
        %1255 = vdwg.mxu0
        %v1256 = vld [vmem:[#allocation3] sm:$0xff]
        %v1257 = vld [vmem:[#allocation3 + $0x8] sm:$0xff]
        %v1258 = vld [vmem:[#allocation3 + $0x10] sm:$0xff]
        %v1259 = vld [vmem:[#allocation3 + $0x18] sm:$0xff]
        %v1260 = vld [vmem:[#allocation3 + $0x20] sm:$0xff]
        %v1261 = vld [vmem:[#allocation3 + $0x28] sm:$0xff]
        %v1262 = vld [vmem:[#allocation3 + $0x30] sm:$0xff]
        %v1263 = vld [vmem:[#allocation3 + $0x38] sm:$0xff]
        %vm1264 = vcmask 64512
        %v1265 = vsel %vm1264, %v929, -inf
        %1266 = vmax.xlane.f32.xlu0 %v1265
        %v1267 = vpop.xlane.xlu0 %1266
        %v1268 = vsel %vm1264, %v975, -inf
        %1269 = vmax.xlane.f32.xlu0 %v1268
        %v1270 = vpop.xlane.xlu0 %1269
        %v1271 = vsel %vm1264, %v1021, -inf
        %1272 = vmax.xlane.f32.xlu0 %v1271
        %v1273 = vpop.xlane.xlu0 %1272
        %v1274 = vsel %vm1264, %v1067, -inf
        %1275 = vmax.xlane.f32.xlu0 %v1274
        %v1276 = vpop.xlane.xlu0 %1275
        %v1277 = vsel %vm1264, %v1113, -inf
        %1278 = vmax.xlane.f32.xlu0 %v1277
        %v1279 = vpop.xlane.xlu0 %1278
        %v1280 = vsel %vm1264, %v1159, -inf
        %1281 = vmax.xlane.f32.xlu0 %v1280
        %v1282 = vpop.xlane.xlu0 %1281
        %v1283 = vsel %vm1264, %v1205, -inf
        %1284 = vmax.xlane.f32.xlu0 %v1283
        %v1285 = vpop.xlane.xlu0 %1284
        %v1286 = vsel %vm1264, %v1251, -inf
        %1287 = vmax.xlane.f32.xlu0 %v1286
        %v1288 = vpop.xlane.xlu0 %1287
        %v1289 = vmax.f32 %v1256, %v1267
        %v1290 = vmax.f32 %v1257, %v1270
        %v1291 = vmax.f32 %v1258, %v1273
        %v1292 = vmax.f32 %v1259, %v1276
        %v1293 = vmax.f32 %v1260, %v1279
        %v1294 = vmax.f32 %v1261, %v1282
        %v1295 = vmax.f32 %v1262, %v1285
        %v1296 = vmax.f32 %v1263, %v1288
        %v1297 = vsub.f32 %v1256, %v1289
        %v1298 = vsub.f32 %v1257, %v1290
        %v1299 = vsub.f32 %v1258, %v1291
        %v1300 = vsub.f32 %v1259, %v1292
        %v1301 = vsub.f32 %v1260, %v1293
        %v1302 = vsub.f32 %v1261, %v1294
        %v1303 = vsub.f32 %v1262, %v1295
        %v1304 = vsub.f32 %v1263, %v1296
        %v1305 = vmul.f32 %v1297, 1.442695
        %v1306 = vpow.pop %v1305
        %v1307 = vmul.f32 %v1298, 1.442695
        %v1308 = vpow.pop %v1307
        %v1309 = vmul.f32 %v1299, 1.442695
        %v1310 = vpow.pop %v1309
        %v1311 = vmul.f32 %v1300, 1.442695
        %v1312 = vpow.pop %v1311
        %v1313 = vmul.f32 %v1301, 1.442695
        %v1314 = vpow.pop %v1313
        %v1315 = vmul.f32 %v1302, 1.442695
        %v1316 = vpow.pop %v1315
        %v1317 = vmul.f32 %v1303, 1.442695
        %v1318 = vpow.pop %v1317
        %v1319 = vmul.f32 %v1304, 1.442695
        %v1320 = vpow.pop %v1319
        %1322 = vset.pattern.permute.xlu0 0
        %1323 = vperm.xlu0 %1322, %v1289
        %v1324 = vpop.permute.xlu0 %1323
        %1327 = vset.pattern.permute.xlu0 0
        %1328 = vperm.xlu0 %1327, %v1290
        %v1329 = vpop.permute.xlu0 %1328
        %1332 = vset.pattern.permute.xlu0 0
        %1333 = vperm.xlu0 %1332, %v1291
        %v1334 = vpop.permute.xlu0 %1333
        %1337 = vset.pattern.permute.xlu0 0
        %1338 = vperm.xlu0 %1337, %v1292
        %v1339 = vpop.permute.xlu0 %1338
        %1342 = vset.pattern.permute.xlu0 0
        %1343 = vperm.xlu0 %1342, %v1293
        %v1344 = vpop.permute.xlu0 %1343
        %1347 = vset.pattern.permute.xlu0 0
        %1348 = vperm.xlu0 %1347, %v1294
        %v1349 = vpop.permute.xlu0 %1348
        %1352 = vset.pattern.permute.xlu0 0
        %1353 = vperm.xlu0 %1352, %v1295
        %v1354 = vpop.permute.xlu0 %1353
        %1357 = vset.pattern.permute.xlu0 0
        %1358 = vperm.xlu0 %1357, %v1296
        %v1359 = vpop.permute.xlu0 %1358
        %v1361 = vsub.f32 %v929, %v1324
        %v1362 = vsub.f32 %v975, %v1329
        %v1363 = vsub.f32 %v1021, %v1334
        %v1364 = vsub.f32 %v1067, %v1339
        %v1365 = vsub.f32 %v1113, %v1344
        %v1366 = vsub.f32 %v1159, %v1349
        %v1367 = vsub.f32 %v1205, %v1354
        %v1368 = vsub.f32 %v1251, %v1359
        %v1369 = vmul.f32 %v1361, 1.442695
        %v1370 = vpow.pop %v1369
        %v1371 = vmul.f32 %v1362, 1.442695
        %v1372 = vpow.pop %v1371
        %v1373 = vmul.f32 %v1363, 1.442695
        %v1374 = vpow.pop %v1373
        %v1375 = vmul.f32 %v1364, 1.442695
        %v1376 = vpow.pop %v1375
        %v1377 = vmul.f32 %v1365, 1.442695
        %v1378 = vpow.pop %v1377
        %v1379 = vmul.f32 %v1366, 1.442695
        %v1380 = vpow.pop %v1379
        %v1381 = vmul.f32 %v1367, 1.442695
        %v1382 = vpow.pop %v1381
        %v1383 = vmul.f32 %v1368, 1.442695
        %v1384 = vpow.pop %v1383
        %v1385 = vld [vmem:[#allocation4] sm:$0xff]
        %v1386 = vld [vmem:[#allocation4 + $0x8] sm:$0xff]
        %v1387 = vld [vmem:[#allocation4 + $0x10] sm:$0xff]
        %v1388 = vld [vmem:[#allocation4 + $0x18] sm:$0xff]
        %v1389 = vld [vmem:[#allocation4 + $0x20] sm:$0xff]
        %v1390 = vld [vmem:[#allocation4 + $0x28] sm:$0xff]
        %v1391 = vld [vmem:[#allocation4 + $0x30] sm:$0xff]
        %v1392 = vld [vmem:[#allocation4 + $0x38] sm:$0xff]
        %v1393 = vmul.f32 %v1306, %v1385
        %v1394 = vmul.f32 %v1308, %v1386
        %v1395 = vmul.f32 %v1310, %v1387
        %v1396 = vmul.f32 %v1312, %v1388
        %v1397 = vmul.f32 %v1314, %v1389
        %v1398 = vmul.f32 %v1316, %v1390
        %v1399 = vmul.f32 %v1318, %v1391
        %v1400 = vmul.f32 %v1320, %v1392
        %v1401 = vsel %vm1264, %v1370, 0.0
        %1402 = vadd.xlane.f32.xlu0 %v1401
        %v1403 = vpop.xlane.xlu0 %1402
        %v1404 = vsel %vm1264, %v1372, 0.0
        %1405 = vadd.xlane.f32.xlu0 %v1404
        %v1406 = vpop.xlane.xlu0 %1405
        %v1407 = vsel %vm1264, %v1374, 0.0
        %1408 = vadd.xlane.f32.xlu0 %v1407
        %v1409 = vpop.xlane.xlu0 %1408
        %v1410 = vsel %vm1264, %v1376, 0.0
        %1411 = vadd.xlane.f32.xlu0 %v1410
        %v1412 = vpop.xlane.xlu0 %1411
        %v1413 = vsel %vm1264, %v1378, 0.0
        %1414 = vadd.xlane.f32.xlu0 %v1413
        %v1415 = vpop.xlane.xlu0 %1414
        %v1416 = vsel %vm1264, %v1380, 0.0
        %1417 = vadd.xlane.f32.xlu0 %v1416
        %v1418 = vpop.xlane.xlu0 %1417
        %v1419 = vsel %vm1264, %v1382, 0.0
        %1420 = vadd.xlane.f32.xlu0 %v1419
        %v1421 = vpop.xlane.xlu0 %1420
        %v1422 = vsel %vm1264, %v1384, 0.0
        %1423 = vadd.xlane.f32.xlu0 %v1422
        %v1424 = vpop.xlane.xlu0 %1423
        %v1425 = vadd.f32 %v1393, %v1403
        %v1426 = vadd.f32 %v1394, %v1406
        %v1427 = vadd.f32 %v1395, %v1409
        %v1428 = vadd.f32 %v1396, %v1412
        %v1429 = vadd.f32 %v1397, %v1415
        %v1430 = vadd.f32 %v1398, %v1418
        %v1431 = vadd.f32 %v1399, %v1421
        %v1432 = vadd.f32 %v1400, %v1424
        %vm1433 = vcmask 7168
        %1434 = vst.msk [vmem:[#allocation4] sm:$0xff] %vm1433, %v1425
        %1435 = vst.msk [vmem:[#allocation4 + $0x8] sm:$0xff] %vm1433, %v1426
        %1436 = vst.msk [vmem:[#allocation4 + $0x10] sm:$0xff] %vm1433, %v1427
        %1437 = vst.msk [vmem:[#allocation4 + $0x18] sm:$0xff] %vm1433, %v1428
        %1438 = vst.msk [vmem:[#allocation4 + $0x20] sm:$0xff] %vm1433, %v1429
        %1439 = vst.msk [vmem:[#allocation4 + $0x28] sm:$0xff] %vm1433, %v1430
        %1440 = vst.msk [vmem:[#allocation4 + $0x30] sm:$0xff] %vm1433, %v1431
        %1441 = vst.msk [vmem:[#allocation4 + $0x38] sm:$0xff] %vm1433, %v1432
        %v1442 = vpack.c.bf16 %v1370, %v1370
        %v1443 = vpack.c.bf16 %v1372, %v1372
        %v1444 = vpack.c.bf16 %v1374, %v1374
        %v1445 = vpack.c.bf16 %v1376, %v1376
        %v1446 = vpack.c.bf16 %v1378, %v1378
        %v1447 = vpack.c.bf16 %v1380, %v1380
        %v1448 = vpack.c.bf16 %v1382, %v1382
        %v1449 = vpack.c.bf16 %v1384, %v1384
        %v1451 = vsel %vm1264, %v1442, 0
        %vm1453 = vcmask 1043456
        %v1455 = vsel %vm1453, %v857, 0
        %1457 = vmatprep.subr.bf16.mxu0 0
        %1458 = vmatpush1.bf16.msra.mxu0 %v1455
        %1459 = vmatprep.subr.bf16.mxu0 0
        %1460 = vmatpush1.bf16.msra.mxu0 0
        %1461 = vmatprep.subr.bf16.mxu0 0
        %1462 = vmatpush1.bf16.msra.mxu0 0
        %1463 = vmatprep.subr.bf16.mxu0 0
        %1464 = vmatpush1.bf16.msra.mxu0 0
        %1465 = vmatprep.subr.bf16.mxu0 0
        %1466 = vmatpush1.bf16.msra.mxu0 0
        %1467 = vmatprep.subr.bf16.mxu0 0
        %1468 = vmatpush1.bf16.msra.mxu0 0
        %1469 = vmatprep.subr.bf16.mxu0 0
        %1470 = vmatpush1.bf16.msra.mxu0 0
        %1471 = vmatprep.subr.bf16.mxu0 0
        %1472 = vmatpush1.bf16.msra.mxu0 0
        %1473 = vmatprep.subr.bf16.mxu0 0
        %1474 = vmatpush1.bf16.msra.mxu0 0
        %1475 = vmatprep.subr.bf16.mxu0 0
        %1476 = vmatpush1.bf16.msra.mxu0 0
        %1477 = vmatprep.subr.bf16.mxu0 0
        %1478 = vmatpush1.bf16.msra.mxu0 0
        %1479 = vmatprep.subr.bf16.mxu0 0
        %1480 = vmatpush1.bf16.msra.mxu0 0
        %1481 = vmatprep.subr.bf16.mxu0 0
        %1482 = vmatpush1.bf16.msra.mxu0 0
        %1483 = vmatprep.subr.bf16.mxu0 0
        %1484 = vmatpush1.bf16.msra.mxu0 0
        %1485 = vmatprep.subr.bf16.mxu0 0
        %1486 = vmatpush1.bf16.msra.mxu0 0
        %1487 = vmatprep.subr.bf16.mxu0 0
        %1488 = vmatpush1.bf16.msra.mxu0 0
        %1489 = vmatprep.mubr.bf16.mxu0 0
        %1490 = vmatmul.mubr.bf16.gmra.mrb[0].mxu0 %v1451
        %v1491 = vpop.f32.mrb[0].mxu0
        %v1492 = vadd.f32 0.0, %v1491
        %v1493 = vpop.f32.mrb[0].mxu0
        %v1494 = vpop.f32.mrb[0].mxu0
        %v1495 = vpop.f32.mrb[0].mxu0
        %1496 = vdwg.mxu0
        %v1498 = vsel %vm1264, %v1443, 0
        %v1501 = vsel %vm1453, %v860, 0
        %1503 = vmatprep.subr.bf16.mxu0 0
        %1504 = vmatpush1.bf16.msra.mxu0 %v1501
        %1505 = vmatprep.subr.bf16.mxu0 0
        %1506 = vmatpush1.bf16.msra.mxu0 0
        %1507 = vmatprep.subr.bf16.mxu0 0
        %1508 = vmatpush1.bf16.msra.mxu0 0
        %1509 = vmatprep.subr.bf16.mxu0 0
        %1510 = vmatpush1.bf16.msra.mxu0 0
        %1511 = vmatprep.subr.bf16.mxu0 0
        %1512 = vmatpush1.bf16.msra.mxu0 0
        %1513 = vmatprep.subr.bf16.mxu0 0
        %1514 = vmatpush1.bf16.msra.mxu0 0
        %1515 = vmatprep.subr.bf16.mxu0 0
        %1516 = vmatpush1.bf16.msra.mxu0 0
        %1517 = vmatprep.subr.bf16.mxu0 0
        %1518 = vmatpush1.bf16.msra.mxu0 0
        %1519 = vmatprep.subr.bf16.mxu0 0
        %1520 = vmatpush1.bf16.msra.mxu0 0
        %1521 = vmatprep.subr.bf16.mxu0 0
        %1522 = vmatpush1.bf16.msra.mxu0 0
        %1523 = vmatprep.subr.bf16.mxu0 0
        %1524 = vmatpush1.bf16.msra.mxu0 0
        %1525 = vmatprep.subr.bf16.mxu0 0
        %1526 = vmatpush1.bf16.msra.mxu0 0
        %1527 = vmatprep.subr.bf16.mxu0 0
        %1528 = vmatpush1.bf16.msra.mxu0 0
        %1529 = vmatprep.subr.bf16.mxu0 0
        %1530 = vmatpush1.bf16.msra.mxu0 0
        %1531 = vmatprep.subr.bf16.mxu0 0
        %1532 = vmatpush1.bf16.msra.mxu0 0
        %1533 = vmatprep.subr.bf16.mxu0 0
        %1534 = vmatpush1.bf16.msra.mxu0 0
        %1535 = vmatprep.mubr.bf16.mxu0 0
        %1536 = vmatmul.mubr.bf16.gmra.mrb[0].mxu0 %v1498
        %v1537 = vpop.f32.mrb[0].mxu0
        %v1538 = vadd.f32 0.0, %v1537
        %v1539 = vpop.f32.mrb[0].mxu0
        %v1540 = vpop.f32.mrb[0].mxu0
        %v1541 = vpop.f32.mrb[0].mxu0
        %1542 = vdwg.mxu0
        %v1544 = vsel %vm1264, %v1444, 0
        %v1547 = vsel %vm1453, %v863, 0
        %1549 = vmatprep.subr.bf16.mxu0 0
        %1550 = vmatpush1.bf16.msra.mxu0 %v1547
        %1551 = vmatprep.subr.bf16.mxu0 0
        %1552 = vmatpush1.bf16.msra.mxu0 0
        %1553 = vmatprep.subr.bf16.mxu0 0
        %1554 = vmatpush1.bf16.msra.mxu0 0
        %1555 = vmatprep.subr.bf16.mxu0 0
        %1556 = vmatpush1.bf16.msra.mxu0 0
        %1557 = vmatprep.subr.bf16.mxu0 0
        %1558 = vmatpush1.bf16.msra.mxu0 0
        %1559 = vmatprep.subr.bf16.mxu0 0
        %1560 = vmatpush1.bf16.msra.mxu0 0
        %1561 = vmatprep.subr.bf16.mxu0 0
        %1562 = vmatpush1.bf16.msra.mxu0 0
        %1563 = vmatprep.subr.bf16.mxu0 0
        %1564 = vmatpush1.bf16.msra.mxu0 0
        %1565 = vmatprep.subr.bf16.mxu0 0
        %1566 = vmatpush1.bf16.msra.mxu0 0
        %1567 = vmatprep.subr.bf16.mxu0 0
        %1568 = vmatpush1.bf16.msra.mxu0 0
        %1569 = vmatprep.subr.bf16.mxu0 0
        %1570 = vmatpush1.bf16.msra.mxu0 0
        %1571 = vmatprep.subr.bf16.mxu0 0
        %1572 = vmatpush1.bf16.msra.mxu0 0
        %1573 = vmatprep.subr.bf16.mxu0 0
        %1574 = vmatpush1.bf16.msra.mxu0 0
        %1575 = vmatprep.subr.bf16.mxu0 0
        %1576 = vmatpush1.bf16.msra.mxu0 0
        %1577 = vmatprep.subr.bf16.mxu0 0
        %1578 = vmatpush1.bf16.msra.mxu0 0
        %1579 = vmatprep.subr.bf16.mxu0 0
        %1580 = vmatpush1.bf16.msra.mxu0 0
        %1581 = vmatprep.mubr.bf16.mxu0 0
        %1582 = vmatmul.mubr.bf16.gmra.mrb[0].mxu0 %v1544
        %v1583 = vpop.f32.mrb[0].mxu0
        %v1584 = vadd.f32 0.0, %v1583
        %v1585 = vpop.f32.mrb[0].mxu0
        %v1586 = vpop.f32.mrb[0].mxu0
        %v1587 = vpop.f32.mrb[0].mxu0
        %1588 = vdwg.mxu0
        %v1590 = vsel %vm1264, %v1445, 0
        %v1593 = vsel %vm1453, %v866, 0
        %1595 = vmatprep.subr.bf16.mxu0 0
        %1596 = vmatpush1.bf16.msra.mxu0 %v1593
        %1597 = vmatprep.subr.bf16.mxu0 0
        %1598 = vmatpush1.bf16.msra.mxu0 0
        %1599 = vmatprep.subr.bf16.mxu0 0
        %1600 = vmatpush1.bf16.msra.mxu0 0
        %1601 = vmatprep.subr.bf16.mxu0 0
        %1602 = vmatpush1.bf16.msra.mxu0 0
        %1603 = vmatprep.subr.bf16.mxu0 0
        %1604 = vmatpush1.bf16.msra.mxu0 0
        %1605 = vmatprep.subr.bf16.mxu0 0
        %1606 = vmatpush1.bf16.msra.mxu0 0
        %1607 = vmatprep.subr.bf16.mxu0 0
        %1608 = vmatpush1.bf16.msra.mxu0 0
        %1609 = vmatprep.subr.bf16.mxu0 0
        %1610 = vmatpush1.bf16.msra.mxu0 0
        %1611 = vmatprep.subr.bf16.mxu0 0
        %1612 = vmatpush1.bf16.msra.mxu0 0
        %1613 = vmatprep.subr.bf16.mxu0 0
        %1614 = vmatpush1.bf16.msra.mxu0 0
        %1615 = vmatprep.subr.bf16.mxu0 0
        %1616 = vmatpush1.bf16.msra.mxu0 0
        %1617 = vmatprep.subr.bf16.mxu0 0
        %1618 = vmatpush1.bf16.msra.mxu0 0
        %1619 = vmatprep.subr.bf16.mxu0 0
        %1620 = vmatpush1.bf16.msra.mxu0 0
        %1621 = vmatprep.subr.bf16.mxu0 0
        %1622 = vmatpush1.bf16.msra.mxu0 0
        %1623 = vmatprep.subr.bf16.mxu0 0
        %1624 = vmatpush1.bf16.msra.mxu0 0
        %1625 = vmatprep.subr.bf16.mxu0 0
        %1626 = vmatpush1.bf16.msra.mxu0 0
        %1627 = vmatprep.mubr.bf16.mxu0 0
        %1628 = vmatmul.mubr.bf16.gmra.mrb[0].mxu0 %v1590
        %v1629 = vpop.f32.mrb[0].mxu0
        %v1630 = vadd.f32 0.0, %v1629
        %v1631 = vpop.f32.mrb[0].mxu0
        %v1632 = vpop.f32.mrb[0].mxu0
        %v1633 = vpop.f32.mrb[0].mxu0
        %1634 = vdwg.mxu0
        %v1636 = vsel %vm1264, %v1446, 0
        %v1639 = vsel %vm1453, %v869, 0
        %1641 = vmatprep.subr.bf16.mxu0 0
        %1642 = vmatpush1.bf16.msra.mxu0 %v1639
        %1643 = vmatprep.subr.bf16.mxu0 0
        %1644 = vmatpush1.bf16.msra.mxu0 0
        %1645 = vmatprep.subr.bf16.mxu0 0
        %1646 = vmatpush1.bf16.msra.mxu0 0
        %1647 = vmatprep.subr.bf16.mxu0 0
        %1648 = vmatpush1.bf16.msra.mxu0 0
        %1649 = vmatprep.subr.bf16.mxu0 0
        %1650 = vmatpush1.bf16.msra.mxu0 0
        %1651 = vmatprep.subr.bf16.mxu0 0
        %1652 = vmatpush1.bf16.msra.mxu0 0
        %1653 = vmatprep.subr.bf16.mxu0 0
        %1654 = vmatpush1.bf16.msra.mxu0 0
        %1655 = vmatprep.subr.bf16.mxu0 0
        %1656 = vmatpush1.bf16.msra.mxu0 0
        %1657 = vmatprep.subr.bf16.mxu0 0
        %1658 = vmatpush1.bf16.msra.mxu0 0
        %1659 = vmatprep.subr.bf16.mxu0 0
        %1660 = vmatpush1.bf16.msra.mxu0 0
        %1661 = vmatprep.subr.bf16.mxu0 0
        %1662 = vmatpush1.bf16.msra.mxu0 0
        %1663 = vmatprep.subr.bf16.mxu0 0
        %1664 = vmatpush1.bf16.msra.mxu0 0
        %1665 = vmatprep.subr.bf16.mxu0 0
        %1666 = vmatpush1.bf16.msra.mxu0 0
        %1667 = vmatprep.subr.bf16.mxu0 0
        %1668 = vmatpush1.bf16.msra.mxu0 0
        %1669 = vmatprep.subr.bf16.mxu0 0
        %1670 = vmatpush1.bf16.msra.mxu0 0
        %1671 = vmatprep.subr.bf16.mxu0 0
        %1672 = vmatpush1.bf16.msra.mxu0 0
        %1673 = vmatprep.mubr.bf16.mxu0 0
        %1674 = vmatmul.mubr.bf16.gmra.mrb[0].mxu0 %v1636
        %v1675 = vpop.f32.mrb[0].mxu0
        %v1676 = vadd.f32 0.0, %v1675
        %v1677 = vpop.f32.mrb[0].mxu0
        %v1678 = vpop.f32.mrb[0].mxu0
        %v1679 = vpop.f32.mrb[0].mxu0
        %1680 = vdwg.mxu0
        %v1682 = vsel %vm1264, %v1447, 0
        %v1685 = vsel %vm1453, %v872, 0
        %1687 = vmatprep.subr.bf16.mxu0 0
        %1688 = vmatpush1.bf16.msra.mxu0 %v1685
        %1689 = vmatprep.subr.bf16.mxu0 0
        %1690 = vmatpush1.bf16.msra.mxu0 0
        %1691 = vmatprep.subr.bf16.mxu0 0
        %1692 = vmatpush1.bf16.msra.mxu0 0
        %1693 = vmatprep.subr.bf16.mxu0 0
        %1694 = vmatpush1.bf16.msra.mxu0 0
        %1695 = vmatprep.subr.bf16.mxu0 0
        %1696 = vmatpush1.bf16.msra.mxu0 0
        %1697 = vmatprep.subr.bf16.mxu0 0
        %1698 = vmatpush1.bf16.msra.mxu0 0
        %1699 = vmatprep.subr.bf16.mxu0 0
        %1700 = vmatpush1.bf16.msra.mxu0 0
        %1701 = vmatprep.subr.bf16.mxu0 0
        %1702 = vmatpush1.bf16.msra.mxu0 0
        %1703 = vmatprep.subr.bf16.mxu0 0
        %1704 = vmatpush1.bf16.msra.mxu0 0
        %1705 = vmatprep.subr.bf16.mxu0 0
        %1706 = vmatpush1.bf16.msra.mxu0 0
        %1707 = vmatprep.subr.bf16.mxu0 0
        %1708 = vmatpush1.bf16.msra.mxu0 0
        %1709 = vmatprep.subr.bf16.mxu0 0
        %1710 = vmatpush1.bf16.msra.mxu0 0
        %1711 = vmatprep.subr.bf16.mxu0 0
        %1712 = vmatpush1.bf16.msra.mxu0 0
        %1713 = vmatprep.subr.bf16.mxu0 0
        %1714 = vmatpush1.bf16.msra.mxu0 0
        %1715 = vmatprep.subr.bf16.mxu0 0
        %1716 = vmatpush1.bf16.msra.mxu0 0
        %1717 = vmatprep.subr.bf16.mxu0 0
        %1718 = vmatpush1.bf16.msra.mxu0 0
        %1719 = vmatprep.mubr.bf16.mxu0 0
        %1720 = vmatmul.mubr.bf16.gmra.mrb[0].mxu0 %v1682
        %v1721 = vpop.f32.mrb[0].mxu0
        %v1722 = vadd.f32 0.0, %v1721
        %v1723 = vpop.f32.mrb[0].mxu0
        %v1724 = vpop.f32.mrb[0].mxu0
        %v1725 = vpop.f32.mrb[0].mxu0
        %1726 = vdwg.mxu0
        %v1728 = vsel %vm1264, %v1448, 0
        %v1731 = vsel %vm1453, %v875, 0
        %1733 = vmatprep.subr.bf16.mxu0 0
        %1734 = vmatpush1.bf16.msra.mxu0 %v1731
        %1735 = vmatprep.subr.bf16.mxu0 0
        %1736 = vmatpush1.bf16.msra.mxu0 0
        %1737 = vmatprep.subr.bf16.mxu0 0
        %1738 = vmatpush1.bf16.msra.mxu0 0
        %1739 = vmatprep.subr.bf16.mxu0 0
        %1740 = vmatpush1.bf16.msra.mxu0 0
        %1741 = vmatprep.subr.bf16.mxu0 0
        %1742 = vmatpush1.bf16.msra.mxu0 0
        %1743 = vmatprep.subr.bf16.mxu0 0
        %1744 = vmatpush1.bf16.msra.mxu0 0
        %1745 = vmatprep.subr.bf16.mxu0 0
        %1746 = vmatpush1.bf16.msra.mxu0 0
        %1747 = vmatprep.subr.bf16.mxu0 0
        %1748 = vmatpush1.bf16.msra.mxu0 0
        %1749 = vmatprep.subr.bf16.mxu0 0
        %1750 = vmatpush1.bf16.msra.mxu0 0
        %1751 = vmatprep.subr.bf16.mxu0 0
        %1752 = vmatpush1.bf16.msra.mxu0 0
        %1753 = vmatprep.subr.bf16.mxu0 0
        %1754 = vmatpush1.bf16.msra.mxu0 0
        %1755 = vmatprep.subr.bf16.mxu0 0
        %1756 = vmatpush1.bf16.msra.mxu0 0
        %1757 = vmatprep.subr.bf16.mxu0 0
        %1758 = vmatpush1.bf16.msra.mxu0 0
        %1759 = vmatprep.subr.bf16.mxu0 0
        %1760 = vmatpush1.bf16.msra.mxu0 0
        %1761 = vmatprep.subr.bf16.mxu0 0
        %1762 = vmatpush1.bf16.msra.mxu0 0
        %1763 = vmatprep.subr.bf16.mxu0 0
        %1764 = vmatpush1.bf16.msra.mxu0 0
        %1765 = vmatprep.mubr.bf16.mxu0 0
        %1766 = vmatmul.mubr.bf16.gmra.mrb[0].mxu0 %v1728
        %v1767 = vpop.f32.mrb[0].mxu0
        %v1768 = vadd.f32 0.0, %v1767
        %v1769 = vpop.f32.mrb[0].mxu0
        %v1770 = vpop.f32.mrb[0].mxu0
        %v1771 = vpop.f32.mrb[0].mxu0
        %1772 = vdwg.mxu0
        %v1774 = vsel %vm1264, %v1449, 0
        %v1777 = vsel %vm1453, %v878, 0
        %1779 = vmatprep.subr.bf16.mxu0 0
        %1780 = vmatpush1.bf16.msra.mxu0 %v1777
        %1781 = vmatprep.subr.bf16.mxu0 0
        %1782 = vmatpush1.bf16.msra.mxu0 0
        %1783 = vmatprep.subr.bf16.mxu0 0
        %1784 = vmatpush1.bf16.msra.mxu0 0
        %1785 = vmatprep.subr.bf16.mxu0 0
        %1786 = vmatpush1.bf16.msra.mxu0 0
        %1787 = vmatprep.subr.bf16.mxu0 0
        %1788 = vmatpush1.bf16.msra.mxu0 0
        %1789 = vmatprep.subr.bf16.mxu0 0
        %1790 = vmatpush1.bf16.msra.mxu0 0
        %1791 = vmatprep.subr.bf16.mxu0 0
        %1792 = vmatpush1.bf16.msra.mxu0 0
        %1793 = vmatprep.subr.bf16.mxu0 0
        %1794 = vmatpush1.bf16.msra.mxu0 0
        %1795 = vmatprep.subr.bf16.mxu0 0
        %1796 = vmatpush1.bf16.msra.mxu0 0
        %1797 = vmatprep.subr.bf16.mxu0 0
        %1798 = vmatpush1.bf16.msra.mxu0 0
        %1799 = vmatprep.subr.bf16.mxu0 0
        %1800 = vmatpush1.bf16.msra.mxu0 0
        %1801 = vmatprep.subr.bf16.mxu0 0
        %1802 = vmatpush1.bf16.msra.mxu0 0
        %1803 = vmatprep.subr.bf16.mxu0 0
        %1804 = vmatpush1.bf16.msra.mxu0 0
        %1805 = vmatprep.subr.bf16.mxu0 0
        %1806 = vmatpush1.bf16.msra.mxu0 0
        %1807 = vmatprep.subr.bf16.mxu0 0
        %1808 = vmatpush1.bf16.msra.mxu0 0
        %1809 = vmatprep.subr.bf16.mxu0 0
        %1810 = vmatpush1.bf16.msra.mxu0 0
        %1811 = vmatprep.mubr.bf16.mxu0 0
        %1812 = vmatmul.mubr.bf16.gmra.mrb[0].mxu0 %v1774
        %v1813 = vpop.f32.mrb[0].mxu0
        %v1814 = vadd.f32 0.0, %v1813
        %v1815 = vpop.f32.mrb[0].mxu0
        %v1816 = vpop.f32.mrb[0].mxu0
        %v1817 = vpop.f32.mrb[0].mxu0
        %1818 = vdwg.mxu0
        %v1819 = vld [vmem:[#allocation5] sm:$0xff]
        %v1820 = vld [vmem:[#allocation5 + $0x8] sm:$0xff]
        %v1821 = vld [vmem:[#allocation5 + $0x10] sm:$0xff]
        %v1822 = vld [vmem:[#allocation5 + $0x18] sm:$0xff]
        %v1823 = vld [vmem:[#allocation5 + $0x20] sm:$0xff]
        %v1824 = vld [vmem:[#allocation5 + $0x28] sm:$0xff]
        %v1825 = vld [vmem:[#allocation5 + $0x30] sm:$0xff]
        %v1826 = vld [vmem:[#allocation5 + $0x38] sm:$0xff]
        %1828 = vset.pattern.permute.xlu0 0
        %1829 = vperm.xlu0 %1828, %v1306
        %v1830 = vpop.permute.xlu0 %1829
        %1833 = vset.pattern.permute.xlu0 0
        %1834 = vperm.xlu0 %1833, %v1308
        %v1835 = vpop.permute.xlu0 %1834
        %1838 = vset.pattern.permute.xlu0 0
        %1839 = vperm.xlu0 %1838, %v1310
        %v1840 = vpop.permute.xlu0 %1839
        %1843 = vset.pattern.permute.xlu0 0
        %1844 = vperm.xlu0 %1843, %v1312
        %v1845 = vpop.permute.xlu0 %1844
        %1848 = vset.pattern.permute.xlu0 0
        %1849 = vperm.xlu0 %1848, %v1314
        %v1850 = vpop.permute.xlu0 %1849
        %1853 = vset.pattern.permute.xlu0 0
        %1854 = vperm.xlu0 %1853, %v1316
        %v1855 = vpop.permute.xlu0 %1854
        %1858 = vset.pattern.permute.xlu0 0
        %1859 = vperm.xlu0 %1858, %v1318
        %v1860 = vpop.permute.xlu0 %1859
        %1863 = vset.pattern.permute.xlu0 0
        %1864 = vperm.xlu0 %1863, %v1320
        %v1865 = vpop.permute.xlu0 %1864
        %v1867 = vmul.f32 %v1830, %v1819
        %v1868 = vmul.f32 %v1835, %v1820
        %v1869 = vmul.f32 %v1840, %v1821
        %v1870 = vmul.f32 %v1845, %v1822
        %v1871 = vmul.f32 %v1850, %v1823
        %v1872 = vmul.f32 %v1855, %v1824
        %v1873 = vmul.f32 %v1860, %v1825
        %v1874 = vmul.f32 %v1865, %v1826
        %v1875 = vadd.f32 %v1867, %v1492
        %v1876 = vadd.f32 %v1868, %v1538
        %v1877 = vadd.f32 %v1869, %v1584
        %v1878 = vadd.f32 %v1870, %v1630
        %v1879 = vadd.f32 %v1871, %v1676
        %v1880 = vadd.f32 %v1872, %v1722
        %v1881 = vadd.f32 %v1873, %v1768
        %v1882 = vadd.f32 %v1874, %v1814
        %1883 = vst.msk [vmem:[#allocation5] sm:$0xff] %vm887, %v1875
        %1884 = vst.msk [vmem:[#allocation5 + $0x8] sm:$0xff] %vm887, %v1876
        %1885 = vst.msk [vmem:[#allocation5 + $0x10] sm:$0xff] %vm887, %v1877
        %1886 = vst.msk [vmem:[#allocation5 + $0x18] sm:$0xff] %vm887, %v1878
        %1887 = vst.msk [vmem:[#allocation5 + $0x20] sm:$0xff] %vm887, %v1879
        %1888 = vst.msk [vmem:[#allocation5 + $0x28] sm:$0xff] %vm887, %v1880
        %1889 = vst.msk [vmem:[#allocation5 + $0x30] sm:$0xff] %vm887, %v1881
        %1890 = vst.msk [vmem:[#allocation5 + $0x38] sm:$0xff] %vm887, %v1882
        %1891 = vst.msk [vmem:[#allocation3] sm:$0xff] %vm1433, %v1289
        %1892 = vst.msk [vmem:[#allocation3 + $0x8] sm:$0xff] %vm1433, %v1290
        %1893 = vst.msk [vmem:[#allocation3 + $0x10] sm:$0xff] %vm1433, %v1291
        %1894 = vst.msk [vmem:[#allocation3 + $0x18] sm:$0xff] %vm1433, %v1292
        %1895 = vst.msk [vmem:[#allocation3 + $0x20] sm:$0xff] %vm1433, %v1293
        %1896 = vst.msk [vmem:[#allocation3 + $0x28] sm:$0xff] %vm1433, %v1294
        %1897 = vst.msk [vmem:[#allocation3 + $0x30] sm:$0xff] %vm1433, %v1295
        %1898 = vst.msk [vmem:[#allocation3 + $0x38] sm:$0xff] %vm1433, %v1296
        // Predicated region
        $region160: #{attention_forward.4} parent=142 // pred_check
          %p1899 = pneg %p472
        $region161: #{attention_forward.4} parent=142 // pred_check_branch
          %1901 = sbr.rel (%p1899) target = $region163
        $region162: #{attention_forward.4} parent=142 // pred_region
          %v1902 = vld [vmem:[#allocation5] sm:$0xff]
          %v1903 = vld [vmem:[#allocation5 + $0x8] sm:$0xff]
          %v1904 = vld [vmem:[#allocation5 + $0x10] sm:$0xff]
          %v1905 = vld [vmem:[#allocation5 + $0x18] sm:$0xff]
          %v1906 = vld [vmem:[#allocation5 + $0x20] sm:$0xff]
          %v1907 = vld [vmem:[#allocation5 + $0x28] sm:$0xff]
          %v1908 = vld [vmem:[#allocation5 + $0x30] sm:$0xff]
          %v1909 = vld [vmem:[#allocation5 + $0x38] sm:$0xff]
          %v1910 = vld [vmem:[#allocation4] sm:$0xff]
          %v1911 = vld [vmem:[#allocation4 + $0x8] sm:$0xff]
          %v1912 = vld [vmem:[#allocation4 + $0x10] sm:$0xff]
          %v1913 = vld [vmem:[#allocation4 + $0x18] sm:$0xff]
          %v1914 = vld [vmem:[#allocation4 + $0x20] sm:$0xff]
          %v1915 = vld [vmem:[#allocation4 + $0x28] sm:$0xff]
          %v1916 = vld [vmem:[#allocation4 + $0x30] sm:$0xff]
          %v1917 = vld [vmem:[#allocation4 + $0x38] sm:$0xff]
          %1919 = vset.pattern.permute.xlu0 0
          %1920 = vperm.xlu0 %1919, %v1910
          %v1921 = vpop.permute.xlu0 %1920
          %1924 = vset.pattern.permute.xlu0 0
          %1925 = vperm.xlu0 %1924, %v1911
          %v1926 = vpop.permute.xlu0 %1925
          %1929 = vset.pattern.permute.xlu0 0
          %1930 = vperm.xlu0 %1929, %v1912
          %v1931 = vpop.permute.xlu0 %1930
          %1934 = vset.pattern.permute.xlu0 0
          %1935 = vperm.xlu0 %1934, %v1913
          %v1936 = vpop.permute.xlu0 %1935
          %1939 = vset.pattern.permute.xlu0 0
          %1940 = vperm.xlu0 %1939, %v1914
          %v1941 = vpop.permute.xlu0 %1940
          %1944 = vset.pattern.permute.xlu0 0
          %1945 = vperm.xlu0 %1944, %v1915
          %v1946 = vpop.permute.xlu0 %1945
          %1949 = vset.pattern.permute.xlu0 0
          %1950 = vperm.xlu0 %1949, %v1916
          %v1951 = vpop.permute.xlu0 %1950
          %1954 = vset.pattern.permute.xlu0 0
          %1955 = vperm.xlu0 %1954, %v1917
          %v1956 = vpop.permute.xlu0 %1955
          %v1958 = vrcp.pop %v1921
          %v1959 = vmul.f32 %v1902, %v1958
          %v1960 = vrcp.pop %v1926
          %v1961 = vmul.f32 %v1903, %v1960
          %v1962 = vrcp.pop %v1931
          %v1963 = vmul.f32 %v1904, %v1962
          %v1964 = vrcp.pop %v1936
          %v1965 = vmul.f32 %v1905, %v1964
          %v1966 = vrcp.pop %v1941
          %v1967 = vmul.f32 %v1906, %v1966
          %v1968 = vrcp.pop %v1946
          %v1969 = vmul.f32 %v1907, %v1968
          %v1970 = vrcp.pop %v1951
          %v1971 = vmul.f32 %v1908, %v1970
          %v1972 = vrcp.pop %v1956
          %v1973 = vmul.f32 %v1909, %v1972
          %v1974 = vcombine.low %v1959, %v1963
          %v1975 = vcombine.high %v1959, %v1963
          %v1977 = vunpack.c.l.s4 1983009808
          %v1978 = vunpack.c.0.s8 %v1977
          %v1979 = vlaneseq
          %v1980 = vshrl.u32 %v1979, 7
          %v1981 = vsub.s32 %v1978, %v1980
          %v1982 = vrot.slane %v1974, %v1981
          %v1984 = vunpack.c.l.s4 1983009808
          %v1985 = vunpack.c.0.s8 %v1984
          %v1986 = vlaneseq
          %v1987 = vshrl.u32 %v1986, 7
          %v1988 = vsub.s32 %v1985, %v1987
          %v1989 = vrot.slane %v1975, %v1988
          %v1990 = vcombine.low %v1961, %v1965
          %v1991 = vcombine.high %v1961, %v1965
          %v1993 = vunpack.c.l.s4 1983009808
          %v1994 = vunpack.c.0.s8 %v1993
          %v1995 = vlaneseq
          %v1996 = vshrl.u32 %v1995, 7
          %v1997 = vsub.s32 %v1994, %v1996
          %v1998 = vrot.slane %v1990, %v1997
          %v2000 = vunpack.c.l.s4 1983009808
          %v2001 = vunpack.c.0.s8 %v2000
          %v2002 = vlaneseq
          %v2003 = vshrl.u32 %v2002, 7
          %v2004 = vsub.s32 %v2001, %v2003
          %v2005 = vrot.slane %v1991, %v2004
          %v2006 = vcombine.low %v1967, %v1971
          %v2007 = vcombine.high %v1967, %v1971
          %v2009 = vunpack.c.l.s4 1983009808
          %v2010 = vunpack.c.0.s8 %v2009
          %v2011 = vlaneseq
          %v2012 = vshrl.u32 %v2011, 7
          %v2013 = vsub.s32 %v2010, %v2012
          %v2014 = vrot.slane %v2006, %v2013
          %v2016 = vunpack.c.l.s4 1983009808
          %v2017 = vunpack.c.0.s8 %v2016
          %v2018 = vlaneseq
          %v2019 = vshrl.u32 %v2018, 7
          %v2020 = vsub.s32 %v2017, %v2019
          %v2021 = vrot.slane %v2007, %v2020
          %v2022 = vcombine.low %v1969, %v1973
          %v2023 = vcombine.high %v1969, %v1973
          %v2025 = vunpack.c.l.s4 1983009808
          %v2026 = vunpack.c.0.s8 %v2025
          %v2027 = vlaneseq
          %v2028 = vshrl.u32 %v2027, 7
          %v2029 = vsub.s32 %v2026, %v2028
          %v2030 = vrot.slane %v2022, %v2029
          %v2032 = vunpack.c.l.s4 1983009808
          %v2033 = vunpack.c.0.s8 %v2032
          %v2034 = vlaneseq
          %v2035 = vshrl.u32 %v2034, 7
          %v2036 = vsub.s32 %v2033, %v2035
          %v2037 = vrot.slane %v2023, %v2036
          %v2038 = vcombine.low %v1982, %v1998
          %v2039 = vcombine.high %v1982, %v1998
          %v2041 = vunpack.c.l.s4 1934713408
          %v2042 = vunpack.c.0.s8 %v2041
          %v2043 = vlaneseq
          %v2044 = vshrl.u32 %v2043, 7
          %v2045 = vsub.s32 %v2042, %v2044
          %v2046 = vrot.slane %v2038, %v2045
          %v2048 = vunpack.c.l.s4 1934713408
          %v2049 = vunpack.c.0.s8 %v2048
          %v2050 = vlaneseq
          %v2051 = vshrl.u32 %v2050, 7
          %v2052 = vsub.s32 %v2049, %v2051
          %v2053 = vrot.slane %v2039, %v2052
          %v2054 = vcombine.low %v1989, %v2005
          %v2055 = vcombine.high %v1989, %v2005
          %v2057 = vunpack.c.l.s4 1934713408
          %v2058 = vunpack.c.0.s8 %v2057
          %v2059 = vlaneseq
          %v2060 = vshrl.u32 %v2059, 7
          %v2061 = vsub.s32 %v2058, %v2060
          %v2062 = vrot.slane %v2054, %v2061
          %v2064 = vunpack.c.l.s4 1934713408
          %v2065 = vunpack.c.0.s8 %v2064
          %v2066 = vlaneseq
          %v2067 = vshrl.u32 %v2066, 7
          %v2068 = vsub.s32 %v2065, %v2067
          %v2069 = vrot.slane %v2055, %v2068
          %v2070 = vcombine.low %v2014, %v2030
          %v2071 = vcombine.high %v2014, %v2030
          %v2073 = vunpack.c.l.s4 1934713408
          %v2074 = vunpack.c.0.s8 %v2073
          %v2075 = vlaneseq
          %v2076 = vshrl.u32 %v2075, 7
          %v2077 = vsub.s32 %v2074, %v2076
          %v2078 = vrot.slane %v2070, %v2077
          %v2080 = vunpack.c.l.s4 1934713408
          %v2081 = vunpack.c.0.s8 %v2080
          %v2082 = vlaneseq
          %v2083 = vshrl.u32 %v2082, 7
          %v2084 = vsub.s32 %v2081, %v2083
          %v2085 = vrot.slane %v2071, %v2084
          %v2086 = vcombine.low %v2021, %v2037
          %v2087 = vcombine.high %v2021, %v2037
          %v2089 = vunpack.c.l.s4 1934713408
          %v2090 = vunpack.c.0.s8 %v2089
          %v2091 = vlaneseq
          %v2092 = vshrl.u32 %v2091, 7
          %v2093 = vsub.s32 %v2090, %v2092
          %v2094 = vrot.slane %v2086, %v2093
          %v2096 = vunpack.c.l.s4 1934713408
          %v2097 = vunpack.c.0.s8 %v2096
          %v2098 = vlaneseq
          %v2099 = vshrl.u32 %v2098, 7
          %v2100 = vsub.s32 %v2097, %v2099
          %v2101 = vrot.slane %v2087, %v2100
          %v2102 = vcombine.low %v2046, %v2078
          %v2103 = vcombine.high %v2046, %v2078
          %v2104 = vcombine.low %v2053, %v2085
          %v2105 = vcombine.high %v2053, %v2085
          %v2106 = vcombine.low %v2062, %v2094
          %v2107 = vcombine.high %v2062, %v2094
          %v2108 = vcombine.low %v2069, %v2101
          %v2109 = vcombine.high %v2069, %v2101
          %v2110 = vpack.c.bf16 %v2102, %v2102
          %v2111 = vpack.c.bf16 %v2103, %v2103
          %v2112 = vpack.c.bf16 %v2104, %v2104
          %v2113 = vpack.c.bf16 %v2105, %v2105
          %v2114 = vpack.c.bf16 %v2106, %v2106
          %v2115 = vpack.c.bf16 %v2107, %v2107
          %v2116 = vpack.c.bf16 %v2108, %v2108
          %v2117 = vpack.c.bf16 %v2109, %v2109
          %vm2118 = vcmask 519168
          %2119 = vst.msk [vmem:[%s469] sm:$0xf] %vm2118, %v2110
          %2120 = vst.msk [vmem:[%s469 + $0x4] sm:$0xf] %vm2118, %v2111
          %2121 = vst.msk [vmem:[%s469 + $0x8] sm:$0xf] %vm2118, %v2112
          %2122 = vst.msk [vmem:[%s469 + $0xc] sm:$0xf] %vm2118, %v2113
          %2123 = vst.msk [vmem:[%s469 + $0x10] sm:$0xf] %vm2118, %v2114
          %2124 = vst.msk [vmem:[%s469 + $0x14] sm:$0xf] %vm2118, %v2115
          %2125 = vst.msk [vmem:[%s469 + $0x18] sm:$0xf] %vm2118, %v2116
          %2126 = vst.msk [vmem:[%s469 + $0x1c] sm:$0xf] %vm2118, %v2117
        $region163: #{attention_forward.4} parent=142 // pred_fallthru
          _
        %s2127 = smul.u32 8, %s20
        %p2128 = scmp.lt.s32.totalorder %s19, 1
        %s2129 = scalar_select %p2128, %s19, 1
        %p2130 = scmp.lt.s32.totalorder %s2127, 7
        %s2131 = scalar_select %p2130, %s2127, 7
        %s2132 = smul.addr %s2129, 8
        %s2133 = sadd.s32 %s2131, %s2132
        %s2134 = smul.addr %s2133, 4
        %s2135 = scalar_lea.vmem %s3, %s2134
        // Predicated region
        $region164: #{attention_forward.4} parent=142 // pred_check
          %p2136 = pneg %p137
        $region165: #{attention_forward.4} parent=142 // pred_check_branch
          %2138 = sbr.rel (%p2136) target = $region167
        $region166: #{attention_forward.4} parent=142 // pred_region
          %s2139 = smul.u32 8, %s20
        $region167: #{attention_forward.4} parent=142 // pred_fallthru
          _
      $region143: #{attention_forward.4} parent=5 // pred_fallthru
        _
      %p2140 = scmp.le.s32.totalorder 2, %s9
      // Predicated region
      $region168: #{attention_forward.4} parent=5 // pred_check
        %p2141 = pneg %p2140
      $region169: #{attention_forward.4} parent=5 // pred_check_branch
        %2143 = sbr.rel (%p2141) target = $region171
      $region170: #{attention_forward.4} parent=5 // pred_region
        %s2144 = ssub.s32 %s9, 2
        // Predicated region
        $region172: #{attention_forward.4} parent=170 // pred_check
          %p2145 = pneg %p143
        $region173: #{attention_forward.4} parent=170 // pred_check_branch
          %2147 = sbr.rel (%p2145) target = $region175
        $region174: #{attention_forward.4} parent=170 // pred_region
          %s2148 = smul.u32 8, %s23
          %p2149 = scmp.lt.s32.totalorder %s22, 1
          %s2150 = scalar_select %p2149, %s22, 1
          %p2151 = scmp.lt.s32.totalorder %s2148, 7
          %s2152 = scalar_select %p2151, %s2148, 7
          %s2153 = smul.addr %s2150, 8
          %s2154 = sadd.s32 %s2152, %s2153
          %s2155 = smul.addr %s2154, 4
          %s2156 = scalar_lea.vmem %s3, %s2155
        $region175: #{attention_forward.4} parent=170 // pred_fallthru
          _
      $region171: #{attention_forward.4} parent=5 // pred_fallthru
        _
    $region6: #{attention_forward.4} parent=1 // loop_footer
      %s13 = sadd.s32 1, %s9
    $region7: #{attention_forward.4} parent=1 // loop_footer_branch
      %8 = sbr.rel target = $region3
    $region8: #{attention_forward.4} parent=1 // loop_exit
      _

</llo_original>
